<compile_context>
chip_gen: v7x
topology: tpu7x:2x2x1
jax: 0.10.0
libtpu: 0.0.40
codegen_flags: <defaults>
</compile_context>

<pallas_src>
import functools
import math

import jax
import jax.numpy as jnp
from jax import lax
from jax.experimental import pallas as pl
from jax.experimental.pallas import tpu as pltpu

_POOL_DTYPE = jnp.float32   # v6e/v7x: jnp.bfloat16 halves pooling traffic


def _round_up(v, m):
    return (v + m - 1) // m * m


def _silu(z):
    # z is f32; exp and the approximate reciprocal both run on the EUP slot.
    return z * pl.reciprocal(1.0 + jnp.exp(-z), approx=True)


# ----------------------------- fused kernel ---------------------------------


def spp_fused_kernel(x_ref, w1_ref, b1_ref, w2_ref, b2_ref, o_ref, pad_ref,
                     *, ks, wl):
    """Fused cv1 -> {maxpool_k} -> concat -> cv2 for one NHWC image.

    x_ref:  (1, H, W, C1)   bf16 input image block
    w1_ref: (C1, c_)        bf16 cv1 weight (BN scale pre-folded)
    b1_ref: (1, c_)         f32 cv1 folded BN bias
    w2_ref: (n_src*c_, C2)  bf16 cv2 weight (BN scale pre-folded, concat-split)
    b2_ref: (1, C2)         f32 cv2 folded BN bias
    o_ref:  (1, H, W, C2)   f32 output block
    pad_ref:(Hp, Wp, c_)    VMEM scratch, -inf-bordered cv1 output
    """
    H, W, C1 = x_ref.shape[1], x_ref.shape[2], x_ref.shape[3]
    c_ = w1_ref.shape[1]
    C2 = o_ref.shape[3]
    Hp, Wp = pad_ref.shape[0], pad_ref.shape[1]
    P = max(ks) // 2
    neg = float("-inf")

    # ---- cv1: 1x1 conv (bf16 matmul, f32 acc) + folded BN bias + SiLU ------
    x2 = x_ref[0].reshape(H * W, C1)
    y = _silu(jnp.dot(x2, w1_ref[...], preferred_element_type=jnp.float32)
              + b1_ref[...])                                  # (H*W, c_) f32

    # ---- cv2 accumulator: identity (un-pooled) branch first ----------------
    z = jnp.dot(y.astype(w2_ref.dtype), w2_ref[0:c_, :],
                preferred_element_type=jnp.float32)

    # ---- refresh only the -inf border bands (interior overwritten below) ---
    pad_ref[0:P, :, :] = jnp.full((P, Wp, c_), neg, pad_ref.dtype)
    pad_ref[P + H:Hp, :, :] = jnp.full((Hp - P - H, Wp, c_), neg, pad_ref.dtype)
    pad_ref[P:P + H, 0:wl, :] = jnp.full((H, wl, c_), neg, pad_ref.dtype)
    pad_ref[P:P + H, wl + W:Wp, :] = jnp.full((H, Wp - wl - W, c_), neg,
                                              pad_ref.dtype)
    # sublane-aligned interior write (column offset wl, multiple of 8)
    pad_ref[P:P + H, wl:wl + W, :] = y.reshape(H, W, c_).astype(pad_ref.dtype)

    # ---- shared column (W-axis) sliding maxima via log-doubling ------------
    # invariant: col[m] = max over padded columns [m, m + 2*a]
    col = jnp.maximum(jnp.maximum(pad_ref[:, 0:Wp - 2, :],
                                  pad_ref[:, 1:Wp - 1, :]),
                      pad_ref[:, 2:Wp, :])
    a = 1
    ks_list = list(ks)
    for k in sorted(ks_list):
        r = k // 2
        j = ks_list.index(k) + 1              # cv2 weight row block for this level
        while a < r:
            s = min(a, r - a)
            L = col.shape[1] - 2 * s
            col = jnp.maximum(col[:, 0:L, :], col[:, 2 * s:2 * s + L, :])
            a += s
        lvl = col[:, wl - r:wl - r + W, :]    # (Hp, W, c_): interior columns only

        # ---- per-level row (H-axis) maxima: leading-axis slices are cheap --
        row = jnp.maximum(jnp.maximum(lvl[0:Hp - 2], lvl[1:Hp - 1]), lvl[2:Hp])
        b = 1
        while b < r:
            s = min(b, r - b)
            L = row.shape[0] - 2 * s
            row = jnp.maximum(row[0:L], row[2 * s:2 * s + L])
            b += s
        pool = row[P - r:P - r + H]           # (H, W, c_) == maxpool_k(y)

        # fuse this level straight into the cv2 accumulation; pool then dies
        z = z + jnp.dot(pool.reshape(H * W, c_).astype(w2_ref.dtype),
                        w2_ref[j * c_:(j + 1) * c_, :],
                        preferred_element_type=jnp.float32)

    # ---- cv2 bias + SiLU, lane-dense output store ---------------------------
    z = _silu(z + b2_ref[...])
    o_ref[0] = z.reshape(H, W, C2).astype(o_ref.dtype)


# ----------------------------- SPP module -----------------------------------


def fold_bn(gamma, beta, mean, var, eps=1e-5):
    scale = gamma / jnp.sqrt(var + eps)
    bias = beta - mean * scale
    return scale.reshape(1, -1), bias.reshape(1, -1)


def make_spp_params(key, c1, c2, ks=(5, 9, 13)):
    c_ = c1 // 2
    c_cat = c_ * (len(ks) + 1)
    k1, k2 = jax.random.split(key)
    # conv weights stored as (Cin, Cout) matmul weights (== PyTorch (Cout,Cin,1,1).T)
    w1 = jax.random.normal(k1, (c1, c_), jnp.float32) / math.sqrt(c1)
    w2 = jax.random.normal(k2, (c_cat, c2), jnp.float32) / math.sqrt(c_cat)
    # deterministic, non-trivial BatchNorm params (eval-mode running stats)
    s1, b1 = fold_bn(jnp.linspace(0.9, 1.1, c_), jnp.linspace(-0.05, 0.05, c_),
                     jnp.linspace(-0.1, 0.1, c_), jnp.linspace(0.5, 1.5, c_))
    s2, b2 = fold_bn(jnp.linspace(0.8, 1.2, c2), jnp.linspace(-0.1, 0.1, c2),
                     jnp.linspace(-0.2, 0.2, c2), jnp.linspace(0.6, 1.4, c2))
    return dict(w1=w1, s1=s1, b1=b1, w2=w2, s2=s2, b2=b2, ks=tuple(ks))


def spp_forward(x_nchw, params):
    """SPP forward.  x_nchw: (N, C1, H, W) -> (N, C2, H, W)."""
    N, C1, H, W = x_nchw.shape
    ks = tuple(params["ks"])
    assert all(k % 2 == 1 and k >= 3 for k in ks), "SPP kernel sizes must be odd"
    P = max(ks) // 2
    WL = _round_up(P, 8)                    # sublane-aligned interior column start
    Wp = _round_up(WL + W + P, 8)           # padded width, multiple of 8
    Hp = H + 2 * P

    x = jnp.transpose(x_nchw, (0, 2, 3, 1)).astype(jnp.bfloat16)   # -> NHWC bf16

    # fold BN scale into the matmul weights (trace-time, tiny), bf16 for the MXU
    w1 = (params["w1"] * params["s1"]).astype(jnp.bfloat16)        # (C1, c_)
    b1 = params["b1"].astype(jnp.float32)                          # (1,  c_)
    w2 = (params["w2"] * params["s2"]).astype(jnp.bfloat16)        # (n_src*c_, C2)
    b2 = params["b2"].astype(jnp.float32)                          # (1,  C2)
    c_ = w1.shape[1]
    C2 = w2.shape[1]
    n_src = len(ks) + 1
    M = N * H * W

    # scoped-VMEM budget: double-buffered blocks + weights + pad scratch
    # + headroom for compiler-managed pooling temporaries.
    def nbytes(shape, dt):
        return math.prod(shape) * jnp.dtype(dt).itemsize

    slab = nbytes((Hp, Wp, c_), _POOL_DTYPE)
    est = (2 * nbytes((1, H, W, C1), jnp.bfloat16)
           + 2 * nbytes((1, H, W, C2), jnp.float32)
           + 2 * (w1.size * 2 + w2.size * 2 + b1.size * 4 + b2.size * 4)
           + slab                                   # pad scratch
           + 8 * slab                               # pooling temporaries
           + 4 * nbytes((H * W, C2), jnp.float32)   # f32 accumulators
           + (4 << 20))                             # slack
    vmem_limit = int(min(max(est, 16 << 20), 64 << 20))

    cost = pl.CostEstimate(
        flops=2 * M * C1 * c_ + 2 * M * n_src * c_ * C2,
        transcendentals=M * (c_ + C2),
        bytes_accessed=2 * M * C1 + 4 * M * C2 + 2 * (int(w1.size) + int(w2.size))
        + 4 * (int(b1.size) + int(b2.size)),
    )

    kern = functools.partial(spp_fused_kernel, ks=ks, wl=WL)
    out_nhwc = pl.pallas_call(
        kern,
        out_shape=jax.ShapeDtypeStruct((N, H, W, C2), jnp.float32),
        grid_spec=pltpu.PrefetchScalarGridSpec(
            num_scalar_prefetch=0,
            grid=(N,),
            in_specs=[
                pl.BlockSpec((1, H, W, C1), lambda n: (n, 0, 0, 0)),
                pl.BlockSpec((C1, c_), lambda n: (0, 0)),
                pl.BlockSpec((1, c_), lambda n: (0, 0)),
                pl.BlockSpec((n_src * c_, C2), lambda n: (0, 0)),
                pl.BlockSpec((1, C2), lambda n: (0, 0)),
            ],
            out_specs=pl.BlockSpec((1, H, W, C2), lambda n: (n, 0, 0, 0)),
            scratch_shapes=[pltpu.VMEM((Hp, Wp, c_), _POOL_DTYPE)],
        ),
        compiler_params=pltpu.CompilerParams(
            dimension_semantics=("parallel",),
            vmem_limit_bytes=vmem_limit),
        cost_estimate=cost,
    )(x, w1, b1, w2, b2)

    return jnp.transpose(out_nhwc, (0, 3, 1, 2))                   # -> NCHW


# --------------------------- pure-JAX reference ------------------------------


def _silu_ref(x):
    return x * jax.nn.sigmoid(x)


def spp_reference(x_nchw, params):
    x = jnp.transpose(x_nchw, (0, 2, 3, 1)).astype(jnp.float32)
    y = _silu_ref(jnp.dot(x, params["w1"]) * params["s1"] + params["b1"])
    pools = [
        lax.reduce_window(y, -jnp.inf, lax.max,
                          (1, k, k, 1), (1, 1, 1, 1), "SAME")
        for k in params["ks"]
    ]
    cat = jnp.concatenate([y] + pools, axis=-1)
    z = _silu_ref(jnp.dot(cat, params["w2"]) * params["s2"] + params["b2"])
    return jnp.transpose(z, (0, 3, 1, 2))


# --------------------------------- main --------------------------------------


if __name__ == "__main__":
    key = jax.random.PRNGKey(0)
    kp, kx = jax.random.split(key)

    # Real-ish SPP channel counts (>=128 so the 128-lane axis is dense), small spatial.
    N, C1, H, W = 2, 256, 16, 16
    C2 = 256
    params = make_spp_params(kp, C1, C2)

    x = jax.random.normal(kx, (N, C1, H, W), jnp.float32)

    out = jax.block_until_ready(spp_forward(x, params))
    ref = spp_reference(x, params)

    assert out.shape == (N, C2, H, W), out.shape
    # bf16 MXU inputs + approx-reciprocal SiLU => loosened tolerance vs f32 ref.
    assert jnp.allclose(out, ref, atol=8e-2, rtol=8e-2), (
        float(jnp.max(jnp.abs(out - ref))))
    print("KERNEL_OK")
</pallas_src>

<mosaic_0001>
module attributes {stable_mosaic.version = 11 : i64} {
  func.func @spp_fused_kernel(%arg0: i32, %arg1: memref<1x16x16x256xbf16, #tpu.memory_space<vmem>>, %arg2: memref<256x128xbf16, #tpu.memory_space<vmem>>, %arg3: memref<1x128xf32, #tpu.memory_space<vmem>>, %arg4: memref<512x256xbf16, #tpu.memory_space<vmem>>, %arg5: memref<1x256xf32, #tpu.memory_space<vmem>>, %arg6: memref<1x16x16x256xf32, #tpu.memory_space<vmem>>, %arg7: memref<28x32x128xf32, #tpu.memory_space<vmem>>) attributes {dimension_semantics = [#tpu.dimension_semantics<parallel>], iteration_bounds = array<i64: 2>, scalar_prefetch = 0 : i64, scratch_operands = 1 : i64, tpu.core_type = #tpu.core_type<tc>, window_params = [{transform_indices = @transform_0, window_bounds = array<i64: 1, 16, 16, 256>}, {pipeline_mode = #tpu.pipeline_mode<synchronous>, transform_indices = @transform_1, window_bounds = array<i64: 256, 128>}, {pipeline_mode = #tpu.pipeline_mode<synchronous>, transform_indices = @transform_2, window_bounds = array<i64: 1, 128>}, {pipeline_mode = #tpu.pipeline_mode<synchronous>, transform_indices = @transform_3, window_bounds = array<i64: 512, 256>}, {pipeline_mode = #tpu.pipeline_mode<synchronous>, transform_indices = @transform_4, window_bounds = array<i64: 1, 256>}, {transform_indices = @transform_5, window_bounds = array<i64: 1, 16, 16, 256>}]} {
    %c0 = arith.constant 0 : index
    %c0_0 = arith.constant 0 : index
    %c0_1 = arith.constant 0 : index
    %c0_2 = arith.constant 0 : index
    %0 = vector.load %arg1[%c0, %c0_0, %c0_1, %c0_2] : memref<1x16x16x256xbf16, #tpu.memory_space<vmem>>, vector<1x16x16x256xbf16>
    %1 = vector.shape_cast %0 : vector<1x16x16x256xbf16> to vector<16x16x256xbf16>
    %2 = vector.shape_cast %1 : vector<16x16x256xbf16> to vector<256x256xbf16>
    %c0_3 = arith.constant 0 : index
    %c0_4 = arith.constant 0 : index
    %3 = vector.load %arg2[%c0_3, %c0_4] : memref<256x128xbf16, #tpu.memory_space<vmem>>, vector<256x128xbf16>
    %cst = arith.constant dense<0.000000e+00> : vector<256x128xf32>
    %4 = tpu.matmul %2, %3, %cst {dimension_numbers = #tpu.dot_dimension_numbers<[1], [0], [0], [1], [0, 0, 1, 1], [], []>} : vector<256x256xbf16>, vector<256x128xbf16>, vector<256x128xf32> -> vector<256x128xf32>
    %c0_5 = arith.constant 0 : index
    %c0_6 = arith.constant 0 : index
    %5 = vector.load %arg3[%c0_5, %c0_6] : memref<1x128xf32, #tpu.memory_space<vmem>>, vector<1x128xf32>
    %6 = vector.broadcast %5 : vector<1x128xf32> to vector<256x128xf32>
    %7 = arith.addf %4, %6 : vector<256x128xf32>
    %cst_7 = arith.constant 0.000000e+00 : f32
    %8 = vector.broadcast %cst_7 : f32 to vector<256x128xf32>
    %9 = arith.subf %8, %7 : vector<256x128xf32>
    %10 = math.exp %9 : vector<256x128xf32>
    %cst_8 = arith.constant 1.000000e+00 : f32
    %11 = vector.broadcast %cst_8 : f32 to vector<256x128xf32>
    %12 = arith.addf %11, %10 : vector<256x128xf32>
    %13 = tpu.reciprocal %12 {approx = true} : vector<256x128xf32> -> vector<256x128xf32>
    %14 = arith.mulf %7, %13 : vector<256x128xf32>
    %15 = arith.truncf %14 : vector<256x128xf32> to vector<256x128xbf16>
    %c0_9 = arith.constant 0 : index
    %c0_10 = arith.constant 0 : index
    %16 = vector.load %arg4[%c0_9, %c0_10] : memref<512x256xbf16, #tpu.memory_space<vmem>>, vector<128x256xbf16>
    %cst_11 = arith.constant dense<0.000000e+00> : vector<256x256xf32>
    %17 = tpu.matmul %15, %16, %cst_11 {dimension_numbers = #tpu.dot_dimension_numbers<[1], [0], [0], [1], [0, 0, 1, 1], [], []>} : vector<256x128xbf16>, vector<128x256xbf16>, vector<256x256xf32> -> vector<256x256xf32>
    %cst_12 = arith.constant 0xFF800000 : f32
    %18 = vector.broadcast %cst_12 : f32 to vector<6x32x128xf32>
    %c0_13 = arith.constant 0 : index
    %c0_14 = arith.constant 0 : index
    %c0_15 = arith.constant 0 : index
    %19 = vector.load %arg7[%c0_13, %c0_14, %c0_15] : memref<28x32x128xf32, #tpu.memory_space<vmem>>, vector<6x32x128xf32>
    tpu.vector_store %arg7[%c0_13, %c0_14, %c0_15], %18 {strides = array<i32>} : memref<28x32x128xf32, #tpu.memory_space<vmem>>, vector<6x32x128xf32>,
    %cst_16 = arith.constant 0xFF800000 : f32
    %20 = vector.broadcast %cst_16 : f32 to vector<6x32x128xf32>
    %c22 = arith.constant 22 : index
    %c0_17 = arith.constant 0 : index
    %c0_18 = arith.constant 0 : index
    %21 = vector.load %arg7[%c22, %c0_17, %c0_18] : memref<28x32x128xf32, #tpu.memory_space<vmem>>, vector<6x32x128xf32>
    tpu.vector_store %arg7[%c22, %c0_17, %c0_18], %20 {strides = array<i32>} : memref<28x32x128xf32, #tpu.memory_space<vmem>>, vector<6x32x128xf32>,
    %cst_19 = arith.constant 0xFF800000 : f32
    %22 = vector.broadcast %cst_19 : f32 to vector<16x8x128xf32>
    %c6 = arith.constant 6 : index
    %c0_20 = arith.constant 0 : index
    %c0_21 = arith.constant 0 : index
    %23 = vector.load %arg7[%c6, %c0_20, %c0_21] : memref<28x32x128xf32, #tpu.memory_space<vmem>>, vector<16x8x128xf32>
    tpu.vector_store %arg7[%c6, %c0_20, %c0_21], %22 {strides = array<i32>} : memref<28x32x128xf32, #tpu.memory_space<vmem>>, vector<16x8x128xf32>,
    %cst_22 = arith.constant 0xFF800000 : f32
    %24 = vector.broadcast %cst_22 : f32 to vector<16x8x128xf32>
    %c6_23 = arith.constant 6 : index
    %c24 = arith.constant 24 : index
    %c0_24 = arith.constant 0 : index
    %25 = vector.load %arg7[%c6_23, %c24, %c0_24] : memref<28x32x128xf32, #tpu.memory_space<vmem>>, vector<16x8x128xf32>
    tpu.vector_store %arg7[%c6_23, %c24, %c0_24], %24 {strides = array<i32>} : memref<28x32x128xf32, #tpu.memory_space<vmem>>, vector<16x8x128xf32>,
    %26 = vector.shape_cast %14 : vector<256x128xf32> to vector<16x16x128xf32>
    %c6_25 = arith.constant 6 : index
    %c8 = arith.constant 8 : index
    %c0_26 = arith.constant 0 : index
    %27 = vector.load %arg7[%c6_25, %c8, %c0_26] : memref<28x32x128xf32, #tpu.memory_space<vmem>>, vector<16x16x128xf32>
    tpu.vector_store %arg7[%c6_25, %c8, %c0_26], %26 {strides = array<i32>} : memref<28x32x128xf32, #tpu.memory_space<vmem>>, vector<16x16x128xf32>,
    %c0_27 = arith.constant 0 : index
    %c0_28 = arith.constant 0 : index
    %c0_29 = arith.constant 0 : index
    %28 = vector.load %arg7[%c0_27, %c0_28, %c0_29] : memref<28x32x128xf32, #tpu.memory_space<vmem>>, vector<28x30x128xf32>
    %c0_30 = arith.constant 0 : index
    %c1 = arith.constant 1 : index
    %c0_31 = arith.constant 0 : index
    %29 = vector.load %arg7[%c0_30, %c1, %c0_31] : memref<28x32x128xf32, #tpu.memory_space<vmem>>, vector<28x30x128xf32>
    %30 = arith.maximumf %28, %29 : vector<28x30x128xf32>
    %c0_32 = arith.constant 0 : index
    %c2 = arith.constant 2 : index
    %c0_33 = arith.constant 0 : index
    %31 = vector.load %arg7[%c0_32, %c2, %c0_33] : memref<28x32x128xf32, #tpu.memory_space<vmem>>, vector<28x30x128xf32>
    %32 = arith.maximumf %30, %31 : vector<28x30x128xf32>
    %33 = vector.extract_strided_slice %32 {offsets = [0, 0, 0], sizes = [28, 28, 128], strides = [1, 1, 1]} : vector<28x30x128xf32> to vector<28x28x128xf32>
    %34 = vector.extract_strided_slice %32 {offsets = [0, 2, 0], sizes = [28, 28, 128], strides = [1, 1, 1]} : vector<28x30x128xf32> to vector<28x28x128xf32>
    %35 = arith.maximumf %33, %34 : vector<28x28x128xf32>
    %36 = vector.extract_strided_slice %35 {offsets = [0, 6, 0], sizes = [28, 16, 128], strides = [1, 1, 1]} : vector<28x28x128xf32> to vector<28x16x128xf32>
    %37 = vector.extract_strided_slice %36 {offsets = [0, 0, 0], sizes = [26, 16, 128], strides = [1, 1, 1]} : vector<28x16x128xf32> to vector<26x16x128xf32>
    %38 = vector.extract_strided_slice %36 {offsets = [1, 0, 0], sizes = [26, 16, 128], strides = [1, 1, 1]} : vector<28x16x128xf32> to vector<26x16x128xf32>
    %39 = arith.maximumf %37, %38 : vector<26x16x128xf32>
    %40 = vector.extract_strided_slice %36 {offsets = [2, 0, 0], sizes = [26, 16, 128], strides = [1, 1, 1]} : vector<28x16x128xf32> to vector<26x16x128xf32>
    %41 = arith.maximumf %39, %40 : vector<26x16x128xf32>
    %42 = vector.extract_strided_slice %41 {offsets = [0, 0, 0], sizes = [24, 16, 128], strides = [1, 1, 1]} : vector<26x16x128xf32> to vector<24x16x128xf32>
    %43 = vector.extract_strided_slice %41 {offsets = [2, 0, 0], sizes = [24, 16, 128], strides = [1, 1, 1]} : vector<26x16x128xf32> to vector<24x16x128xf32>
    %44 = arith.maximumf %42, %43 : vector<24x16x128xf32>
    %45 = vector.extract_strided_slice %44 {offsets = [4, 0, 0], sizes = [16, 16, 128], strides = [1, 1, 1]} : vector<24x16x128xf32> to vector<16x16x128xf32>
    %46 = vector.shape_cast %45 : vector<16x16x128xf32> to vector<256x128xf32>
    %47 = arith.truncf %46 : vector<256x128xf32> to vector<256x128xbf16>
    %c128 = arith.constant 128 : index
    %c0_34 = arith.constant 0 : index
    %48 = vector.load %arg4[%c128, %c0_34] : memref<512x256xbf16, #tpu.memory_space<vmem>>, vector<128x256xbf16>
    %cst_35 = arith.constant dense<0.000000e+00> : vector<256x256xf32>
    %49 = tpu.matmul %47, %48, %cst_35 {dimension_numbers = #tpu.dot_dimension_numbers<[1], [0], [0], [1], [0, 0, 1, 1], [], []>} : vector<256x128xbf16>, vector<128x256xbf16>, vector<256x256xf32> -> vector<256x256xf32>
    %50 = arith.addf %17, %49 : vector<256x256xf32>
    %51 = vector.extract_strided_slice %35 {offsets = [0, 0, 0], sizes = [28, 24, 128], strides = [1, 1, 1]} : vector<28x28x128xf32> to vector<28x24x128xf32>
    %52 = vector.extract_strided_slice %35 {offsets = [0, 4, 0], sizes = [28, 24, 128], strides = [1, 1, 1]} : vector<28x28x128xf32> to vector<28x24x128xf32>
    %53 = arith.maximumf %51, %52 : vector<28x24x128xf32>
    %54 = vector.extract_strided_slice %53 {offsets = [0, 4, 0], sizes = [28, 16, 128], strides = [1, 1, 1]} : vector<28x24x128xf32> to vector<28x16x128xf32>
    %55 = vector.extract_strided_slice %54 {offsets = [0, 0, 0], sizes = [26, 16, 128], strides = [1, 1, 1]} : vector<28x16x128xf32> to vector<26x16x128xf32>
    %56 = vector.extract_strided_slice %54 {offsets = [1, 0, 0], sizes = [26, 16, 128], strides = [1, 1, 1]} : vector<28x16x128xf32> to vector<26x16x128xf32>
    %57 = arith.maximumf %55, %56 : vector<26x16x128xf32>
    %58 = vector.extract_strided_slice %54 {offsets = [2, 0, 0], sizes = [26, 16, 128], strides = [1, 1, 1]} : vector<28x16x128xf32> to vector<26x16x128xf32>
    %59 = arith.maximumf %57, %58 : vector<26x16x128xf32>
    %60 = vector.extract_strided_slice %59 {offsets = [0, 0, 0], sizes = [24, 16, 128], strides = [1, 1, 1]} : vector<26x16x128xf32> to vector<24x16x128xf32>
    %61 = vector.extract_strided_slice %59 {offsets = [2, 0, 0], sizes = [24, 16, 128], strides = [1, 1, 1]} : vector<26x16x128xf32> to vector<24x16x128xf32>
    %62 = arith.maximumf %60, %61 : vector<24x16x128xf32>
    %63 = vector.extract_strided_slice %62 {offsets = [0, 0, 0], sizes = [20, 16, 128], strides = [1, 1, 1]} : vector<24x16x128xf32> to vector<20x16x128xf32>
    %64 = vector.extract_strided_slice %62 {offsets = [4, 0, 0], sizes = [20, 16, 128], strides = [1, 1, 1]} : vector<24x16x128xf32> to vector<20x16x128xf32>
    %65 = arith.maximumf %63, %64 : vector<20x16x128xf32>
    %66 = vector.extract_strided_slice %65 {offsets = [2, 0, 0], sizes = [16, 16, 128], strides = [1, 1, 1]} : vector<20x16x128xf32> to vector<16x16x128xf32>
    %67 = vector.shape_cast %66 : vector<16x16x128xf32> to vector<256x128xf32>
    %68 = arith.truncf %67 : vector<256x128xf32> to vector<256x128xbf16>
    %c256 = arith.constant 256 : index
    %c0_36 = arith.constant 0 : index
    %69 = vector.load %arg4[%c256, %c0_36] : memref<512x256xbf16, #tpu.memory_space<vmem>>, vector<128x256xbf16>
    %cst_37 = arith.constant dense<0.000000e+00> : vector<256x256xf32>
    %70 = tpu.matmul %68, %69, %cst_37 {dimension_numbers = #tpu.dot_dimension_numbers<[1], [0], [0], [1], [0, 0, 1, 1], [], []>} : vector<256x128xbf16>, vector<128x256xbf16>, vector<256x256xf32> -> vector<256x256xf32>
    %71 = arith.addf %50, %70 : vector<256x256xf32>
    %72 = vector.extract_strided_slice %53 {offsets = [0, 0, 0], sizes = [28, 20, 128], strides = [1, 1, 1]} : vector<28x24x128xf32> to vector<28x20x128xf32>
    %73 = vector.extract_strided_slice %53 {offsets = [0, 4, 0], sizes = [28, 20, 128], strides = [1, 1, 1]} : vector<28x24x128xf32> to vector<28x20x128xf32>
    %74 = arith.maximumf %72, %73 : vector<28x20x128xf32>
    %75 = vector.extract_strided_slice %74 {offsets = [0, 2, 0], sizes = [28, 16, 128], strides = [1, 1, 1]} : vector<28x20x128xf32> to vector<28x16x128xf32>
    %76 = vector.extract_strided_slice %75 {offsets = [0, 0, 0], sizes = [26, 16, 128], strides = [1, 1, 1]} : vector<28x16x128xf32> to vector<26x16x128xf32>
    %77 = vector.extract_strided_slice %75 {offsets = [1, 0, 0], sizes = [26, 16, 128], strides = [1, 1, 1]} : vector<28x16x128xf32> to vector<26x16x128xf32>
    %78 = arith.maximumf %76, %77 : vector<26x16x128xf32>
    %79 = vector.extract_strided_slice %75 {offsets = [2, 0, 0], sizes = [26, 16, 128], strides = [1, 1, 1]} : vector<28x16x128xf32> to vector<26x16x128xf32>
    %80 = arith.maximumf %78, %79 : vector<26x16x128xf32>
    %81 = vector.extract_strided_slice %80 {offsets = [0, 0, 0], sizes = [24, 16, 128], strides = [1, 1, 1]} : vector<26x16x128xf32> to vector<24x16x128xf32>
    %82 = vector.extract_strided_slice %80 {offsets = [2, 0, 0], sizes = [24, 16, 128], strides = [1, 1, 1]} : vector<26x16x128xf32> to vector<24x16x128xf32>
    %83 = arith.maximumf %81, %82 : vector<24x16x128xf32>
    %84 = vector.extract_strided_slice %83 {offsets = [0, 0, 0], sizes = [20, 16, 128], strides = [1, 1, 1]} : vector<24x16x128xf32> to vector<20x16x128xf32>
    %85 = vector.extract_strided_slice %83 {offsets = [4, 0, 0], sizes = [20, 16, 128], strides = [1, 1, 1]} : vector<24x16x128xf32> to vector<20x16x128xf32>
    %86 = arith.maximumf %84, %85 : vector<20x16x128xf32>
    %87 = vector.extract_strided_slice %86 {offsets = [0, 0, 0], sizes = [16, 16, 128], strides = [1, 1, 1]} : vector<20x16x128xf32> to vector<16x16x128xf32>
    %88 = vector.extract_strided_slice %86 {offsets = [4, 0, 0], sizes = [16, 16, 128], strides = [1, 1, 1]} : vector<20x16x128xf32> to vector<16x16x128xf32>
    %89 = arith.maximumf %87, %88 : vector<16x16x128xf32>
    %90 = vector.shape_cast %89 : vector<16x16x128xf32> to vector<256x128xf32>
    %91 = arith.truncf %90 : vector<256x128xf32> to vector<256x128xbf16>
    %c384 = arith.constant 384 : index
    %c0_38 = arith.constant 0 : index
    %92 = vector.load %arg4[%c384, %c0_38] : memref<512x256xbf16, #tpu.memory_space<vmem>>, vector<128x256xbf16>
    %cst_39 = arith.constant dense<0.000000e+00> : vector<256x256xf32>
    %93 = tpu.matmul %91, %92, %cst_39 {dimension_numbers = #tpu.dot_dimension_numbers<[1], [0], [0], [1], [0, 0, 1, 1], [], []>} : vector<256x128xbf16>, vector<128x256xbf16>, vector<256x256xf32> -> vector<256x256xf32>
    %94 = arith.addf %71, %93 : vector<256x256xf32>
    %c0_40 = arith.constant 0 : index
    %c0_41 = arith.constant 0 : index
    %95 = vector.load %arg5[%c0_40, %c0_41] : memref<1x256xf32, #tpu.memory_space<vmem>>, vector<1x256xf32>
    %96 = vector.broadcast %95 : vector<1x256xf32> to vector<256x256xf32>
    %97 = arith.addf %94, %96 : vector<256x256xf32>
    %cst_42 = arith.constant 0.000000e+00 : f32
    %98 = vector.broadcast %cst_42 : f32 to vector<256x256xf32>
    %99 = arith.subf %98, %97 : vector<256x256xf32>
    %100 = math.exp %99 : vector<256x256xf32>
    %cst_43 = arith.constant 1.000000e+00 : f32
    %101 = vector.broadcast %cst_43 : f32 to vector<256x256xf32>
    %102 = arith.addf %101, %100 : vector<256x256xf32>
    %103 = tpu.reciprocal %102 {approx = true} : vector<256x256xf32> -> vector<256x256xf32>
    %104 = arith.mulf %97, %103 : vector<256x256xf32>
    %105 = vector.shape_cast %104 : vector<256x256xf32> to vector<16x16x256xf32>
    %c0_44 = arith.constant 0 : index
    %c0_45 = arith.constant 0 : index
    %c0_46 = arith.constant 0 : index
    %c0_47 = arith.constant 0 : index
    %106 = vector.load %arg6[%c0_44, %c0_45, %c0_46, %c0_47] : memref<1x16x16x256xf32, #tpu.memory_space<vmem>>, vector<1x16x16x256xf32>
    %107 = vector.shape_cast %106 : vector<1x16x16x256xf32> to vector<16x16x256xf32>
    %108 = vector.shape_cast %105 : vector<16x16x256xf32> to vector<1x16x16x256xf32>
    tpu.vector_store %arg6[%c0_44, %c0_45, %c0_46, %c0_47], %108 {strides = array<i32>} : memref<1x16x16x256xf32, #tpu.memory_space<vmem>>, vector<1x16x16x256xf32>,
    return
  }
  func.func @transform_0(%arg0: i32) -> (i32, i32, i32, i32) {
    %c0_i32 = arith.constant 0 : i32
    %c0_i32_0 = arith.constant 0 : i32
    %c0_i32_1 = arith.constant 0 : i32
    %c0_i32_2 = arith.constant 0 : i32
    return %arg0, %c0_i32, %c0_i32_0, %c0_i32_1 : i32, i32, i32, i32
  }
  func.func @transform_1(%arg0: i32) -> (i32, i32) {
    %c0_i32 = arith.constant 0 : i32
    %c0_i32_0 = arith.constant 0 : i32
    %c0_i32_1 = arith.constant 0 : i32
    return %c0_i32, %c0_i32_0 : i32, i32
  }
  func.func @transform_2(%arg0: i32) -> (i32, i32) {
    %c0_i32 = arith.constant 0 : i32
    %c0_i32_0 = arith.constant 0 : i32
    %c0_i32_1 = arith.constant 0 : i32
    return %c0_i32, %c0_i32_0 : i32, i32
  }
  func.func @transform_3(%arg0: i32) -> (i32, i32) {
    %c0_i32 = arith.constant 0 : i32
    %c0_i32_0 = arith.constant 0 : i32
    %c0_i32_1 = arith.constant 0 : i32
    return %c0_i32, %c0_i32_0 : i32, i32
  }
  func.func @transform_4(%arg0: i32) -> (i32, i32) {
    %c0_i32 = arith.constant 0 : i32
    %c0_i32_0 = arith.constant 0 : i32
    %c0_i32_1 = arith.constant 0 : i32
    return %c0_i32, %c0_i32_0 : i32, i32
  }
  func.func @transform_5(%arg0: i32) -> (i32, i32, i32, i32) {
    %c0_i32 = arith.constant 0 : i32
    %c0_i32_0 = arith.constant 0 : i32
    %c0_i32_1 = arith.constant 0 : i32
    %c0_i32_2 = arith.constant 0 : i32
    return %arg0, %c0_i32, %c0_i32_0, %c0_i32_1 : i32, i32, i32, i32
  }
}

</mosaic_0001>

<llo_original>
// kernel: tpu_custom_call.1
$region0: #{tpu_custom_call.1}
  #allocation0 [shape = 'u32[]', space=smem, size = 0x4, offset = 0x4, fixed_abs, tag = 'smem constant byte address 0x4 - core index']
  #allocation1 [shape = 'u32[144,128]{1,0:T(1,128)}', space=vmem, size = 0x12000, scoped, tag = 'internal scratch']
  #allocation2 [shape = 'f32[28,32,128]{2,1,0:T(8,128)}', space=vmem, size = 0x70000, scoped, tag = 'scratch operand']
  %s0 = inlined_call_operand.hbm [shape: bf16[2,16,16,256], index: 0, kind: input, shape index: {}]
  %s1 = inlined_call_operand.hbm [shape: bf16[256,128], index: 1, kind: input, shape index: {}]
  %s2 = inlined_call_operand.vmem [shape: f32[1,128], index: 2, kind: input, shape index: {}]
  %s3 = inlined_call_operand.hbm [shape: bf16[512,256], index: 3, kind: input, shape index: {}]
  %s4 = inlined_call_operand.vmem [shape: f32[1,256], index: 4, kind: input, shape index: {}]
  %s5 = inlined_call_operand.hbm [shape: f32[2,16,16,256], index: 5, kind: output, shape index: {}]
  %s6 = sld [smem:[#allocation0]]
  $region65: #{tpu_custom_call.1} parent=0
    _
  %s8 = ssub.s32 1, %s6
  %s9 = scalar_select 0, %s8, %s6
  $region1: #{tpu_custom_call.1} parent=0
    #allocation3 [shape = 'u8[262144]{0}', space=vmem, size = 0x40000, scoped, tag = 'input window, operand 0']
    #allocation4 [shape = 's32[2]{0}', space=sflag, size = 0x8, scoped, tag = 'scoped memory for tpu_custom_call.1']
    #allocation5 [shape = 's32[2]{0}', space=sflag, size = 0x8, scoped, tag = 'scoped memory for tpu_custom_call.1']
    #allocation6 [shape = 'u8[65536]{0}', space=vmem, size = 0x10000, scoped, tag = 'input window, operand 1, single buffered']
    #allocation7 [shape = 's32[1]{0}', space=sflag, size = 0x4, scoped, tag = 'scoped memory for tpu_custom_call.1']
    #allocation8 [shape = 'u8[262144]{0}', space=vmem, size = 0x40000, scoped, tag = 'input window, operand 3, single buffered']
    #allocation9 [shape = 'u8[524288]{0}', space=vmem, size = 0x80000, scoped, tag = 'output window, operand 0']
    %10 = vsyncpa [#allocation4], 0
    %s11 = scalar_lea.sflag [#allocation4], 1
    %12 = vsyncpa %s11, 0
    %13 = vsyncpa [#allocation7], 0
    %14 = vsyncpa [#allocation5], 0
    %s15 = scalar_lea.sflag [#allocation5], 1
    %16 = vsyncpa %s15, 0
    loop: start=0, step=1, limit=4
    $region2: #{tpu_custom_call.1} parent=1 // loop_pre_header
      _
    $region3: #{tpu_custom_call.1} parent=1 // loop_header
      %s18 = sphi 0, %s22
      %p19 = scmp.ge.s32.totalorder %s18, 4
      %s28 = sphi 0, %s30
      %s31 = sphi 0, %s28
      %s32 = sphi 0, %s31
      %s48 = sphi 0, %s32
      %s52 = sphi 0, %s52
      %s54 = sphi 0, %s52
      %s55 = sphi 0, %s54
      %s69 = sphi 0, %s55
      %s73 = sphi 0, %s73
      %s75 = sphi 0, %s73
      %s76 = sphi 0, %s75
      %s90 = sphi 0, %s76
      %s94 = sphi 0, %s94
      %s96 = sphi 0, %s94
      %s97 = sphi 0, %s96
      %s111 = sphi 0, %s97
      %s115 = sphi 0, %s115
      %s117 = sphi 0, %s115
      %s118 = sphi 0, %s117
      %s132 = sphi 0, %s118
      %s138 = sphi 0, %s140
      %s141 = sphi 0, %s138
      %s142 = sphi 0, %s141
      %s158 = sphi 0, %s142
    $region4: #{tpu_custom_call.1} parent=1 // loop_header_branch
      %21 = sbr.rel (%p19) target = $region8
    $region5: #{tpu_custom_call.1} parent=1 // loop_body
      %s23 = ssub.s32 %s18, 1
      %s24 = ssub.s32 %s18, 2
      %s25 = sadd.s32 %s18, 1
      %s26 = ssub.s32 %s18, %s25
      %p27 = scmp.eq.s32.totalorder %s26, 0
      %s29 = sadd.s32 %s28, 1
      %s30 = scalar_select %p27, %s28, %s29
      %p33 = pneg %p27
      %p34 = scmp.eq.s32.totalorder %s18, 1
      %p35 = por %p33, %p34
      %p36 = scmp.ne.s32.totalorder %s28, %s31
      %p37 = scmp.eq.s32.totalorder %s18, 0
      %p38 = por %p36, %p37
      %p39 = scmp.ne.s32.totalorder %s28, %s31
      %p40 = scmp.eq.s32.totalorder %s23, 1
      %p41 = por %p39, %p40
      %p42 = scmp.ne.s32.totalorder %s31, %s32
      %p43 = scmp.eq.s32.totalorder %s23, 0
      %p44 = por %p42, %p43
      %p45 = scmp.ne.s32.totalorder %s31, %s32
      %p46 = scmp.eq.s32.totalorder %s24, 1
      %p47 = por %p45, %p46
      %p49 = scmp.ne.s32.totalorder %s32, %s48
      %p50 = scmp.eq.s32.totalorder %s24, 0
      %p51 = por %p49, %p50
      %s53 = sadd.s32 %s52, 1
      %p56 = scmp.eq.s32.totalorder %s18, 1
      %p57 = scmp.ne.s32.totalorder %s52, %s54
      %p58 = scmp.eq.s32.totalorder %s18, 0
      %p59 = por %p57, %p58
      %p60 = scmp.ne.s32.totalorder %s52, %s54
      %p61 = scmp.eq.s32.totalorder %s23, 1
      %p62 = por %p60, %p61
      %p63 = scmp.ne.s32.totalorder %s54, %s55
      %p64 = scmp.eq.s32.totalorder %s23, 0
      %p65 = por %p63, %p64
      %p66 = scmp.ne.s32.totalorder %s54, %s55
      %p67 = scmp.eq.s32.totalorder %s24, 1
      %p68 = por %p66, %p67
      %p70 = scmp.ne.s32.totalorder %s55, %s69
      %p71 = scmp.eq.s32.totalorder %s24, 0
      %p72 = por %p70, %p71
      %s74 = sadd.s32 %s73, 1
      %p77 = scmp.eq.s32.totalorder %s18, 1
      %p78 = scmp.ne.s32.totalorder %s73, %s75
      %p79 = scmp.eq.s32.totalorder %s18, 0
      %p80 = por %p78, %p79
      %p81 = scmp.ne.s32.totalorder %s73, %s75
      %p82 = scmp.eq.s32.totalorder %s23, 1
      %p83 = por %p81, %p82
      %p84 = scmp.ne.s32.totalorder %s75, %s76
      %p85 = scmp.eq.s32.totalorder %s23, 0
      %p86 = por %p84, %p85
      %p87 = scmp.ne.s32.totalorder %s75, %s76
      %p88 = scmp.eq.s32.totalorder %s24, 1
      %p89 = por %p87, %p88
      %p91 = scmp.ne.s32.totalorder %s76, %s90
      %p92 = scmp.eq.s32.totalorder %s24, 0
      %p93 = por %p91, %p92
      %s95 = sadd.s32 %s94, 1
      %p98 = scmp.eq.s32.totalorder %s18, 1
      %p99 = scmp.ne.s32.totalorder %s94, %s96
      %p100 = scmp.eq.s32.totalorder %s18, 0
      %p101 = por %p99, %p100
      %p102 = scmp.ne.s32.totalorder %s94, %s96
      %p103 = scmp.eq.s32.totalorder %s23, 1
      %p104 = por %p102, %p103
      %p105 = scmp.ne.s32.totalorder %s96, %s97
      %p106 = scmp.eq.s32.totalorder %s23, 0
      %p107 = por %p105, %p106
      %p108 = scmp.ne.s32.totalorder %s96, %s97
      %p109 = scmp.eq.s32.totalorder %s24, 1
      %p110 = por %p108, %p109
      %p112 = scmp.ne.s32.totalorder %s97, %s111
      %p113 = scmp.eq.s32.totalorder %s24, 0
      %p114 = por %p112, %p113
      %s116 = sadd.s32 %s115, 1
      %p119 = scmp.eq.s32.totalorder %s18, 1
      %p120 = scmp.ne.s32.totalorder %s115, %s117
      %p121 = scmp.eq.s32.totalorder %s18, 0
      %p122 = por %p120, %p121
      %p123 = scmp.ne.s32.totalorder %s115, %s117
      %p124 = scmp.eq.s32.totalorder %s23, 1
      %p125 = por %p123, %p124
      %p126 = scmp.ne.s32.totalorder %s117, %s118
      %p127 = scmp.eq.s32.totalorder %s23, 0
      %p128 = por %p126, %p127
      %p129 = scmp.ne.s32.totalorder %s117, %s118
      %p130 = scmp.eq.s32.totalorder %s24, 1
      %p131 = por %p129, %p130
      %p133 = scmp.ne.s32.totalorder %s118, %s132
      %p134 = scmp.eq.s32.totalorder %s24, 0
      %p135 = por %p133, %p134
      %s136 = ssub.s32 %s18, %s25
      %p137 = scmp.eq.s32.totalorder %s136, 0
      %s139 = sadd.s32 %s138, 1
      %s140 = scalar_select %p137, %s138, %s139
      %p143 = pneg %p137
      %p144 = scmp.eq.s32.totalorder %s18, 1
      %p145 = por %p143, %p144
      %p146 = scmp.ne.s32.totalorder %s138, %s141
      %p147 = scmp.eq.s32.totalorder %s18, 0
      %p148 = por %p146, %p147
      %p149 = scmp.ne.s32.totalorder %s138, %s141
      %p150 = scmp.eq.s32.totalorder %s23, 1
      %p151 = por %p149, %p150
      %p152 = scmp.ne.s32.totalorder %s141, %s142
      %p153 = scmp.eq.s32.totalorder %s23, 0
      %p154 = por %p152, %p153
      %p155 = scmp.ne.s32.totalorder %s141, %s142
      %p156 = scmp.eq.s32.totalorder %s24, 1
      %p157 = por %p155, %p156
      %p159 = scmp.ne.s32.totalorder %s142, %s158
      %p160 = scmp.eq.s32.totalorder %s24, 0
      %p161 = por %p159, %p160
      %p162 = scmp.le.s32.totalorder 1, %s18
      %p163 = scmp.lt.s32.totalorder %s18, 3
      %p164 = pnand %p162, %p163
      %p165 = pneg %p164
      // Predicated region
      $region9: #{tpu_custom_call.1} parent=5 // pred_check
        _
      $region10: #{tpu_custom_call.1} parent=5 // pred_check_branch
        %167 = sbr.rel (%p164) target = $region12
      $region11: #{tpu_custom_call.1} parent=5 // pred_region
        %s168 = ssub.s32 %s18, 1
        // Predicated region
        $region13: #{tpu_custom_call.1} parent=11 // pred_check
          %p169 = pneg %p65
        $region14: #{tpu_custom_call.1} parent=11 // pred_check_branch
          %171 = sbr.rel (%p169) target = $region16
        $region15: #{tpu_custom_call.1} parent=11 // pred_region
          %s173 = ssub.s32 2048, 2048
          %174 = vsyncadd [#allocation7], %s173
          %s175 = sshll.u32 [#allocation6], 4
          %s176 = int_to_ptr.vmem [resolvable:$true] %s175
          %181 = dma.hbm_to_vmem [thread:$0]  %s1, 2048, %s176, [#allocation7], 64, 64, 4
        $region16: #{tpu_custom_call.1} parent=11 // pred_fallthru
          _
        // Predicated region
        $region17: #{tpu_custom_call.1} parent=11 // pred_check
          %p182 = pneg %p86
        $region18: #{tpu_custom_call.1} parent=11 // pred_check_branch
          %184 = sbr.rel (%p182) target = $region20
        $region19: #{tpu_custom_call.1} parent=11 // pred_region
          _
        $region20: #{tpu_custom_call.1} parent=11 // pred_fallthru
          _
        // Predicated region
        $region21: #{tpu_custom_call.1} parent=11 // pred_check
          %p185 = pneg %p107
        $region22: #{tpu_custom_call.1} parent=11 // pred_check_branch
          %187 = sbr.rel (%p185) target = $region24
        $region23: #{tpu_custom_call.1} parent=11 // pred_region
          %s189 = ssub.s32 8192, 8192
          %190 = vsyncadd [#allocation7], %s189
          %s191 = sshll.u32 [#allocation8], 4
          %s192 = int_to_ptr.vmem [resolvable:$true] %s191
          %197 = dma.hbm_to_vmem [thread:$0]  %s3, 8192, %s192, [#allocation7], 128, 128, 8
        $region24: #{tpu_custom_call.1} parent=11 // pred_fallthru
          _
        // Predicated region
        $region25: #{tpu_custom_call.1} parent=11 // pred_check
          %p198 = pneg %p128
        $region26: #{tpu_custom_call.1} parent=11 // pred_check_branch
          %200 = sbr.rel (%p198) target = $region28
        $region27: #{tpu_custom_call.1} parent=11 // pred_region
          _
        $region28: #{tpu_custom_call.1} parent=11 // pred_fallthru
          _
      $region12: #{tpu_custom_call.1} parent=5 // pred_fallthru
        _
      %p201 = scmp.lt.s32.totalorder %s18, 2
      // Predicated region
      $region29: #{tpu_custom_call.1} parent=5 // pred_check
        %p202 = pneg %p201
      $region30: #{tpu_custom_call.1} parent=5 // pred_check_branch
        %204 = sbr.rel (%p202) target = $region32
      $region31: #{tpu_custom_call.1} parent=5 // pred_region
        // Predicated region
        $region33: #{tpu_custom_call.1} parent=31 // pred_check
          %p205 = pneg %p38
        $region34: #{tpu_custom_call.1} parent=31 // pred_check_branch
          %207 = sbr.rel (%p205) target = $region36
        $region35: #{tpu_custom_call.1} parent=31 // pred_region
          %s208 = sand.u32 %s28, 1
          %s209 = scalar_lea.sflag [#allocation4], %s208
          %s210 = sand.u32 %s28, 1
          %s211 = smul.addr %s210, 256
          %s212 = scalar_lea.vmem [#allocation3], %s211
          %s214 = ssub.s32 4096, 4096
          %215 = vsyncadd %s209, %s214
          %s216 = smul.addr %s18, 64
          %s217 = smul.addr %s216, 64
          %s218 = scalar_lea.hbm %s0, %s217
          %s219 = sshll.u32 %s212, 4
          %s220 = int_to_ptr.vmem [resolvable:$true] %s219
          %225 = dma.hbm_to_vmem [thread:$0]  %s218, 4096, %s220, %s209, 128, 128, 8
        $region36: #{tpu_custom_call.1} parent=31 // pred_fallthru
          _
      $region32: #{tpu_custom_call.1} parent=5 // pred_fallthru
        _
      %p226 = scmp.le.s32.totalorder 1, %s18
      %p227 = scmp.lt.s32.totalorder %s18, 3
      %p228 = pnand %p226, %p227
      %p229 = pneg %p228
      // Predicated region
      $region37: #{tpu_custom_call.1} parent=5 // pred_check
        _
      $region38: #{tpu_custom_call.1} parent=5 // pred_check_branch
        %231 = sbr.rel (%p228) target = $region40
      $region39: #{tpu_custom_call.1} parent=5 // pred_region
        %s232 = ssub.s32 %s18, 1
        %s233 = sand.u32 %s31, 1
        %s234 = scalar_lea.sflag [#allocation4], %s233
        %s235 = sand.u32 %s31, 1
        %s236 = smul.addr %s235, 256
        %s237 = scalar_lea.vmem [#allocation3], %s236
        // Predicated region
        $region41: #{tpu_custom_call.1} parent=39 // pred_check
          %p238 = pneg %p44
        $region42: #{tpu_custom_call.1} parent=39 // pred_check_branch
          %240 = sbr.rel (%p238) target = $region44
        $region43: #{tpu_custom_call.1} parent=39 // pred_region
          %241 = dma.done %s234, 4096
        $region44: #{tpu_custom_call.1} parent=39 // pred_fallthru
          _
        // Predicated region
        $region45: #{tpu_custom_call.1} parent=39 // pred_check
          %p242 = pneg %p65
        $region46: #{tpu_custom_call.1} parent=39 // pred_check_branch
          %244 = sbr.rel (%p242) target = $region48
        $region47: #{tpu_custom_call.1} parent=39 // pred_region
          %245 = dma.done [#allocation7], 2048
        $region48: #{tpu_custom_call.1} parent=39 // pred_fallthru
          _
        // Predicated region
        $region49: #{tpu_custom_call.1} parent=39 // pred_check
          %p246 = pneg %p107
        $region50: #{tpu_custom_call.1} parent=39 // pred_check_branch
          %248 = sbr.rel (%p246) target = $region52
        $region51: #{tpu_custom_call.1} parent=39 // pred_region
          %249 = dma.done [#allocation7], 8192
        $region52: #{tpu_custom_call.1} parent=39 // pred_fallthru
          _
        %s250 = sand.u32 %s31, 1
        %s251 = scalar_lea.sflag [#allocation4], %s250
        %s252 = sand.u32 %s31, 1
        %s253 = smul.addr %s252, 256
        %s254 = scalar_lea.vmem [#allocation3], %s253
        %p255 = pneg %p44
        %p256 = pneg %p41
        %p257 = pneg %p65
        %p258 = pneg %p62
        %p259 = pneg %p86
        %p260 = pneg %p83
        %p261 = pneg %p107
        %p262 = pneg %p104
        %p263 = pneg %p128
        %p264 = pneg %p125
        %p265 = pneg %p154
        %p266 = pneg %p151
        %s267 = sand.u32 %s141, 1
        %s268 = scalar_lea.sflag [#allocation5], %s267
        %s269 = sand.u32 %s141, 1
        %s270 = smul.addr %s269, 512
        %s271 = scalar_lea.vmem [#allocation9], %s270
        %v273 = vld [vmem:[%s237] sm:$0xff]
        %v274 = vld [vmem:[%s237 + $0x8] sm:$0xff]
        %v275 = vld [vmem:[%s237 + $0x10] sm:$0xff]
        %v276 = vld [vmem:[%s237 + $0x18] sm:$0xff]
        %v277 = vld [vmem:[%s237 + $0x20] sm:$0xff]
        %v278 = vld [vmem:[%s237 + $0x28] sm:$0xff]
        %v279 = vld [vmem:[%s237 + $0x30] sm:$0xff]
        %v280 = vld [vmem:[%s237 + $0x38] sm:$0xff]
        %v281 = vld [vmem:[%s237 + $0x40] sm:$0xff]
        %v282 = vld [vmem:[%s237 + $0x48] sm:$0xff]
        %v283 = vld [vmem:[%s237 + $0x50] sm:$0xff]
        %v284 = vld [vmem:[%s237 + $0x58] sm:$0xff]
        %v285 = vld [vmem:[%s237 + $0x60] sm:$0xff]
        %v286 = vld [vmem:[%s237 + $0x68] sm:$0xff]
        %v287 = vld [vmem:[%s237 + $0x70] sm:$0xff]
        %v288 = vld [vmem:[%s237 + $0x78] sm:$0xff]
        %v289 = vld [vmem:[%s237 + $0x80] sm:$0xff]
        %v290 = vld [vmem:[%s237 + $0x88] sm:$0xff]
        %v291 = vld [vmem:[%s237 + $0x90] sm:$0xff]
        %v292 = vld [vmem:[%s237 + $0x98] sm:$0xff]
        %v293 = vld [vmem:[%s237 + $0xa0] sm:$0xff]
        %v294 = vld [vmem:[%s237 + $0xa8] sm:$0xff]
        %v295 = vld [vmem:[%s237 + $0xb0] sm:$0xff]
        %v296 = vld [vmem:[%s237 + $0xb8] sm:$0xff]
        %v297 = vld [vmem:[%s237 + $0xc0] sm:$0xff]
        %v298 = vld [vmem:[%s237 + $0xc8] sm:$0xff]
        %v299 = vld [vmem:[%s237 + $0xd0] sm:$0xff]
        %v300 = vld [vmem:[%s237 + $0xd8] sm:$0xff]
        %v301 = vld [vmem:[%s237 + $0xe0] sm:$0xff]
        %v302 = vld [vmem:[%s237 + $0xe8] sm:$0xff]
        %v303 = vld [vmem:[%s237 + $0xf0] sm:$0xff]
        %v304 = vld [vmem:[%s237 + $0xf8] sm:$0xff]
        %v305 = vld [vmem:[#allocation6] sm:$0xf]
        %v306 = vld [vmem:[#allocation6 + $0x4] sm:$0xf]
        %v307 = vld [vmem:[#allocation6 + $0x8] sm:$0xf]
        %v308 = vld [vmem:[#allocation6 + $0xc] sm:$0xf]
        %v309 = vld [vmem:[#allocation6 + $0x10] sm:$0xf]
        %v310 = vld [vmem:[#allocation6 + $0x14] sm:$0xf]
        %v311 = vld [vmem:[#allocation6 + $0x18] sm:$0xf]
        %v312 = vld [vmem:[#allocation6 + $0x1c] sm:$0xf]
        %v313 = vld [vmem:[#allocation6 + $0x20] sm:$0xf]
        %v314 = vld [vmem:[#allocation6 + $0x24] sm:$0xf]
        %v315 = vld [vmem:[#allocation6 + $0x28] sm:$0xf]
        %v316 = vld [vmem:[#allocation6 + $0x2c] sm:$0xf]
        %v317 = vld [vmem:[#allocation6 + $0x30] sm:$0xf]
        %v318 = vld [vmem:[#allocation6 + $0x34] sm:$0xf]
        %v319 = vld [vmem:[#allocation6 + $0x38] sm:$0xf]
        %v320 = vld [vmem:[#allocation6 + $0x3c] sm:$0xf]
        %v321 = vld [vmem:[#allocation6 + $0x40] sm:$0xf]
        %v322 = vld [vmem:[#allocation6 + $0x44] sm:$0xf]
        %v323 = vld [vmem:[#allocation6 + $0x48] sm:$0xf]
        %v324 = vld [vmem:[#allocation6 + $0x4c] sm:$0xf]
        %v325 = vld [vmem:[#allocation6 + $0x50] sm:$0xf]
        %v326 = vld [vmem:[#allocation6 + $0x54] sm:$0xf]
        %v327 = vld [vmem:[#allocation6 + $0x58] sm:$0xf]
        %v328 = vld [vmem:[#allocation6 + $0x5c] sm:$0xf]
        %v329 = vld [vmem:[#allocation6 + $0x60] sm:$0xf]
        %v330 = vld [vmem:[#allocation6 + $0x64] sm:$0xf]
        %v331 = vld [vmem:[#allocation6 + $0x68] sm:$0xf]
        %v332 = vld [vmem:[#allocation6 + $0x6c] sm:$0xf]
        %v333 = vld [vmem:[#allocation6 + $0x70] sm:$0xf]
        %v334 = vld [vmem:[#allocation6 + $0x74] sm:$0xf]
        %v335 = vld [vmem:[#allocation6 + $0x78] sm:$0xf]
        %v336 = vld [vmem:[#allocation6 + $0x7c] sm:$0xf]
        %v337 = vld [vmem:[%s2] sm:$0x1]
        %v339 = vlaneseq
        %v340 = vshrl.u32 %v339, 7
        %v341 = vsub.s32 0, %v340
        %v342 = vrot.slane %v337, %v341
        %v376 = vunpack.c.l.b16 %v273
        %v377 = vunpack.c.h.b16 %v273
        %v378 = vunpack.c.l.b16 %v274
        %v379 = vunpack.c.h.b16 %v274
        %v380 = vunpack.c.l.b16 %v275
        %v381 = vunpack.c.h.b16 %v275
        %v382 = vunpack.c.l.b16 %v276
        %v383 = vunpack.c.h.b16 %v276
        %v384 = vunpack.c.l.b16 %v277
        %v385 = vunpack.c.h.b16 %v277
        %v386 = vunpack.c.l.b16 %v278
        %v387 = vunpack.c.h.b16 %v278
        %v388 = vunpack.c.l.b16 %v279
        %v389 = vunpack.c.h.b16 %v279
        %v390 = vunpack.c.l.b16 %v280
        %v391 = vunpack.c.h.b16 %v280
        %v392 = vunpack.c.l.b16 %v281
        %v393 = vunpack.c.h.b16 %v281
        %v394 = vunpack.c.l.b16 %v282
        %v395 = vunpack.c.h.b16 %v282
        %v396 = vunpack.c.l.b16 %v283
        %v397 = vunpack.c.h.b16 %v283
        %v398 = vunpack.c.l.b16 %v284
        %v399 = vunpack.c.h.b16 %v284
        %v400 = vunpack.c.l.b16 %v285
        %v401 = vunpack.c.h.b16 %v285
        %v402 = vunpack.c.l.b16 %v286
        %v403 = vunpack.c.h.b16 %v286
        %v404 = vunpack.c.l.b16 %v287
        %v405 = vunpack.c.h.b16 %v287
        %v406 = vunpack.c.l.b16 %v288
        %v407 = vunpack.c.h.b16 %v288
        %v408 = vunpack.c.l.b16 %v289
        %v409 = vunpack.c.h.b16 %v289
        %v410 = vunpack.c.l.b16 %v290
        %v411 = vunpack.c.h.b16 %v290
        %v412 = vunpack.c.l.b16 %v291
        %v413 = vunpack.c.h.b16 %v291
        %v414 = vunpack.c.l.b16 %v292
        %v415 = vunpack.c.h.b16 %v292
        %v416 = vunpack.c.l.b16 %v293
        %v417 = vunpack.c.h.b16 %v293
        %v418 = vunpack.c.l.b16 %v294
        %v419 = vunpack.c.h.b16 %v294
        %v420 = vunpack.c.l.b16 %v295
        %v421 = vunpack.c.h.b16 %v295
        %v422 = vunpack.c.l.b16 %v296
        %v423 = vunpack.c.h.b16 %v296
        %v424 = vunpack.c.l.b16 %v297
        %v425 = vunpack.c.h.b16 %v297
        %v426 = vunpack.c.l.b16 %v298
        %v427 = vunpack.c.h.b16 %v298
        %v428 = vunpack.c.l.b16 %v299
        %v429 = vunpack.c.h.b16 %v299
        %v430 = vunpack.c.l.b16 %v300
        %v431 = vunpack.c.h.b16 %v300
        %v432 = vunpack.c.l.b16 %v301
        %v433 = vunpack.c.h.b16 %v301
        %v434 = vunpack.c.l.b16 %v302
        %v435 = vunpack.c.h.b16 %v302
        %v436 = vunpack.c.l.b16 %v303
        %v437 = vunpack.c.h.b16 %v303
        %v438 = vunpack.c.l.b16 %v304
        %v439 = vunpack.c.h.b16 %v304
        %v440 = vpack.c.b16 %v378, %v376
        %v441 = vpack.c.b16 %v379, %v377
        %v442 = vpack.c.b16 %v382, %v380
        %v443 = vpack.c.b16 %v383, %v381
        %v444 = vpack.c.b16 %v386, %v384
        %v445 = vpack.c.b16 %v387, %v385
        %v446 = vpack.c.b16 %v390, %v388
        %v447 = vpack.c.b16 %v391, %v389
        %v448 = vpack.c.b16 %v394, %v392
        %v449 = vpack.c.b16 %v395, %v393
        %v450 = vpack.c.b16 %v398, %v396
        %v451 = vpack.c.b16 %v399, %v397
        %v452 = vpack.c.b16 %v402, %v400
        %v453 = vpack.c.b16 %v403, %v401
        %v454 = vpack.c.b16 %v406, %v404
        %v455 = vpack.c.b16 %v407, %v405
        %v456 = vpack.c.b16 %v410, %v408
        %v457 = vpack.c.b16 %v411, %v409
        %v458 = vpack.c.b16 %v414, %v412
        %v459 = vpack.c.b16 %v415, %v413
        %v460 = vpack.c.b16 %v418, %v416
        %v461 = vpack.c.b16 %v419, %v417
        %v462 = vpack.c.b16 %v422, %v420
        %v463 = vpack.c.b16 %v423, %v421
        %v464 = vpack.c.b16 %v426, %v424
        %v465 = vpack.c.b16 %v427, %v425
        %v466 = vpack.c.b16 %v430, %v428
        %v467 = vpack.c.b16 %v431, %v429
        %v468 = vpack.c.b16 %v434, %v432
        %v469 = vpack.c.b16 %v435, %v433
        %v470 = vpack.c.b16 %v438, %v436
        %v471 = vpack.c.b16 %v439, %v437
        %v536 = vunpack.c.l.b16 %v305
        %v537 = vunpack.c.l.b16 %v306
        %v538 = vunpack.c.l.b16 %v307
        %v539 = vunpack.c.l.b16 %v308
        %v540 = vunpack.c.l.b16 %v309
        %v541 = vunpack.c.l.b16 %v310
        %v542 = vunpack.c.l.b16 %v311
        %v543 = vunpack.c.l.b16 %v312
        %v544 = vunpack.c.l.b16 %v313
        %v545 = vunpack.c.l.b16 %v314
        %v546 = vunpack.c.l.b16 %v315
        %v547 = vunpack.c.l.b16 %v316
        %v548 = vunpack.c.l.b16 %v317
        %v549 = vunpack.c.l.b16 %v318
        %v550 = vunpack.c.l.b16 %v319
        %v551 = vunpack.c.l.b16 %v320
        %v552 = vunpack.c.l.b16 %v321
        %v553 = vunpack.c.l.b16 %v322
        %v554 = vunpack.c.l.b16 %v323
        %v555 = vunpack.c.l.b16 %v324
        %v556 = vunpack.c.l.b16 %v325
        %v557 = vunpack.c.l.b16 %v326
        %v558 = vunpack.c.l.b16 %v327
        %v559 = vunpack.c.l.b16 %v328
        %v560 = vunpack.c.l.b16 %v329
        %v561 = vunpack.c.l.b16 %v330
        %v562 = vunpack.c.l.b16 %v331
        %v563 = vunpack.c.l.b16 %v332
        %v564 = vunpack.c.l.b16 %v333
        %v565 = vunpack.c.l.b16 %v334
        %v566 = vunpack.c.l.b16 %v335
        %v567 = vunpack.c.l.b16 %v336
        %v568 = vpack.c.b16 %v537, %v536
        %v569 = vpack.c.b16 %v539, %v538
        %v570 = vpack.c.b16 %v541, %v540
        %v571 = vpack.c.b16 %v543, %v542
        %v572 = vpack.c.b16 %v545, %v544
        %v573 = vpack.c.b16 %v547, %v546
        %v574 = vpack.c.b16 %v549, %v548
        %v575 = vpack.c.b16 %v551, %v550
        %v576 = vpack.c.b16 %v553, %v552
        %v577 = vpack.c.b16 %v555, %v554
        %v578 = vpack.c.b16 %v557, %v556
        %v579 = vpack.c.b16 %v559, %v558
        %v580 = vpack.c.b16 %v561, %v560
        %v581 = vpack.c.b16 %v563, %v562
        %v582 = vpack.c.b16 %v565, %v564
        %v583 = vpack.c.b16 %v567, %v566
        %600 = vmatprep.subr.bf16.mxu0 0
        %601 = vmatpush1.bf16.msra.mxu0 %v568
        %602 = vmatprep.subr.bf16.mxu0 0
        %603 = vmatpush1.bf16.msra.mxu0 %v569
        %604 = vmatprep.subr.bf16.mxu0 0
        %605 = vmatpush1.bf16.msra.mxu0 %v570
        %606 = vmatprep.subr.bf16.mxu0 0
        %607 = vmatpush1.bf16.msra.mxu0 %v571
        %608 = vmatprep.subr.bf16.mxu0 0
        %609 = vmatpush1.bf16.msra.mxu0 %v572
        %610 = vmatprep.subr.bf16.mxu0 0
        %611 = vmatpush1.bf16.msra.mxu0 %v573
        %612 = vmatprep.subr.bf16.mxu0 0
        %613 = vmatpush1.bf16.msra.mxu0 %v574
        %614 = vmatprep.subr.bf16.mxu0 0
        %615 = vmatpush1.bf16.msra.mxu0 %v575
        %616 = vmatprep.subr.bf16.mxu0 0
        %617 = vmatpush1.bf16.msra.mxu0 %v576
        %618 = vmatprep.subr.bf16.mxu0 0
        %619 = vmatpush1.bf16.msra.mxu0 %v577
        %620 = vmatprep.subr.bf16.mxu0 0
        %621 = vmatpush1.bf16.msra.mxu0 %v578
        %622 = vmatprep.subr.bf16.mxu0 0
        %623 = vmatpush1.bf16.msra.mxu0 %v579
        %624 = vmatprep.subr.bf16.mxu0 0
        %625 = vmatpush1.bf16.msra.mxu0 %v580
        %626 = vmatprep.subr.bf16.mxu0 0
        %627 = vmatpush1.bf16.msra.mxu0 %v581
        %628 = vmatprep.subr.bf16.mxu0 0
        %629 = vmatpush1.bf16.msra.mxu0 %v582
        %630 = vmatprep.subr.bf16.mxu0 0
        %631 = vmatpush1.bf16.msra.mxu0 %v583
        %632 = vmatprep.mubr.bf16.mxu0 %v441
        %633 = vmatmul.mubr.bf16.gmra.mrb[0].mxu0 %v440
        %v634 = vpop.f32.mrb[0].mxu0
        %v635 = vadd.f32 %v342, %v634
        %v636 = vpop.f32.mrb[0].mxu0
        %v637 = vpop.f32.mrb[0].mxu0
        %v638 = vadd.f32 %v342, %v637
        %v639 = vpop.f32.mrb[0].mxu0
        %640 = vmatprep.mubr.bf16.mxu0 %v443
        %641 = vmatmul.mubr.bf16.gmra.mrb[0].mxu0 %v442
        %v642 = vpop.f32.mrb[0].mxu0
        %v643 = vadd.f32 %v342, %v642
        %v644 = vpop.f32.mrb[0].mxu0
        %v645 = vpop.f32.mrb[0].mxu0
        %v646 = vadd.f32 %v342, %v645
        %v647 = vpop.f32.mrb[0].mxu0
        %648 = vmatprep.mubr.bf16.mxu0 %v445
        %649 = vmatmul.mubr.bf16.gmra.mrb[0].mxu0 %v444
        %v650 = vpop.f32.mrb[0].mxu0
        %v651 = vadd.f32 %v342, %v650
        %v652 = vpop.f32.mrb[0].mxu0
        %v653 = vpop.f32.mrb[0].mxu0
        %v654 = vadd.f32 %v342, %v653
        %v655 = vpop.f32.mrb[0].mxu0
        %656 = vmatprep.mubr.bf16.mxu0 %v447
        %657 = vmatmul.mubr.bf16.gmra.mrb[0].mxu0 %v446
        %v658 = vpop.f32.mrb[0].mxu0
        %v659 = vadd.f32 %v342, %v658
        %v660 = vpop.f32.mrb[0].mxu0
        %v661 = vpop.f32.mrb[0].mxu0
        %v662 = vadd.f32 %v342, %v661
        %v663 = vpop.f32.mrb[0].mxu0
        %664 = vmatprep.mubr.bf16.mxu0 %v449
        %665 = vmatmul.mubr.bf16.gmra.mrb[0].mxu0 %v448
        %v666 = vpop.f32.mrb[0].mxu0
        %v667 = vadd.f32 %v342, %v666
        %v668 = vpop.f32.mrb[0].mxu0
        %v669 = vpop.f32.mrb[0].mxu0
        %v670 = vadd.f32 %v342, %v669
        %v671 = vpop.f32.mrb[0].mxu0
        %672 = vmatprep.mubr.bf16.mxu0 %v451
        %673 = vmatmul.mubr.bf16.gmra.mrb[0].mxu0 %v450
        %v674 = vpop.f32.mrb[0].mxu0
        %v675 = vadd.f32 %v342, %v674
        %v676 = vpop.f32.mrb[0].mxu0
        %v677 = vpop.f32.mrb[0].mxu0
        %v678 = vadd.f32 %v342, %v677
        %v679 = vpop.f32.mrb[0].mxu0
        %680 = vmatprep.mubr.bf16.mxu0 %v453
        %681 = vmatmul.mubr.bf16.gmra.mrb[0].mxu0 %v452
        %v682 = vpop.f32.mrb[0].mxu0
        %v683 = vadd.f32 %v342, %v682
        %v684 = vpop.f32.mrb[0].mxu0
        %v685 = vpop.f32.mrb[0].mxu0
        %v686 = vadd.f32 %v342, %v685
        %v687 = vpop.f32.mrb[0].mxu0
        %688 = vmatprep.mubr.bf16.mxu0 %v455
        %689 = vmatmul.mubr.bf16.gmra.mrb[0].mxu0 %v454
        %v690 = vpop.f32.mrb[0].mxu0
        %v691 = vadd.f32 %v342, %v690
        %v692 = vpop.f32.mrb[0].mxu0
        %v693 = vpop.f32.mrb[0].mxu0
        %v694 = vadd.f32 %v342, %v693
        %v695 = vpop.f32.mrb[0].mxu0
        %696 = vmatprep.mubr.bf16.mxu0 %v457
        %697 = vmatmul.mubr.bf16.gmra.mrb[0].mxu0 %v456
        %v698 = vpop.f32.mrb[0].mxu0
        %v699 = vadd.f32 %v342, %v698
        %v700 = vpop.f32.mrb[0].mxu0
        %v701 = vpop.f32.mrb[0].mxu0
        %v702 = vadd.f32 %v342, %v701
        %v703 = vpop.f32.mrb[0].mxu0
        %704 = vmatprep.mubr.bf16.mxu0 %v459
        %705 = vmatmul.mubr.bf16.gmra.mrb[0].mxu0 %v458
        %v706 = vpop.f32.mrb[0].mxu0
        %v707 = vadd.f32 %v342, %v706
        %v708 = vpop.f32.mrb[0].mxu0
        %v709 = vpop.f32.mrb[0].mxu0
        %v710 = vadd.f32 %v342, %v709
        %v711 = vpop.f32.mrb[0].mxu0
        %712 = vmatprep.mubr.bf16.mxu0 %v461
        %713 = vmatmul.mubr.bf16.gmra.mrb[0].mxu0 %v460
        %v714 = vpop.f32.mrb[0].mxu0
        %v715 = vadd.f32 %v342, %v714
        %v716 = vpop.f32.mrb[0].mxu0
        %v717 = vpop.f32.mrb[0].mxu0
        %v718 = vadd.f32 %v342, %v717
        %v719 = vpop.f32.mrb[0].mxu0
        %720 = vmatprep.mubr.bf16.mxu0 %v463
        %721 = vmatmul.mubr.bf16.gmra.mrb[0].mxu0 %v462
        %v722 = vpop.f32.mrb[0].mxu0
        %v723 = vadd.f32 %v342, %v722
        %v724 = vpop.f32.mrb[0].mxu0
        %v725 = vpop.f32.mrb[0].mxu0
        %v726 = vadd.f32 %v342, %v725
        %v727 = vpop.f32.mrb[0].mxu0
        %728 = vmatprep.mubr.bf16.mxu0 %v465
        %729 = vmatmul.mubr.bf16.gmra.mrb[0].mxu0 %v464
        %v730 = vpop.f32.mrb[0].mxu0
        %v731 = vadd.f32 %v342, %v730
        %v732 = vpop.f32.mrb[0].mxu0
        %v733 = vpop.f32.mrb[0].mxu0
        %v734 = vadd.f32 %v342, %v733
        %v735 = vpop.f32.mrb[0].mxu0
        %736 = vmatprep.mubr.bf16.mxu0 %v467
        %737 = vmatmul.mubr.bf16.gmra.mrb[0].mxu0 %v466
        %v738 = vpop.f32.mrb[0].mxu0
        %v739 = vadd.f32 %v342, %v738
        %v740 = vpop.f32.mrb[0].mxu0
        %v741 = vpop.f32.mrb[0].mxu0
        %v742 = vadd.f32 %v342, %v741
        %v743 = vpop.f32.mrb[0].mxu0
        %744 = vmatprep.mubr.bf16.mxu0 %v469
        %745 = vmatmul.mubr.bf16.gmra.mrb[0].mxu0 %v468
        %v746 = vpop.f32.mrb[0].mxu0
        %v747 = vadd.f32 %v342, %v746
        %v748 = vpop.f32.mrb[0].mxu0
        %v749 = vpop.f32.mrb[0].mxu0
        %v750 = vadd.f32 %v342, %v749
        %v751 = vpop.f32.mrb[0].mxu0
        %752 = vmatprep.mubr.bf16.mxu0 %v471
        %753 = vmatmul.mubr.bf16.gmra.mrb[0].mxu0 %v470
        %v754 = vpop.f32.mrb[0].mxu0
        %v755 = vadd.f32 %v342, %v754
        %v756 = vpop.f32.mrb[0].mxu0
        %v757 = vpop.f32.mrb[0].mxu0
        %v758 = vadd.f32 %v342, %v757
        %v759 = vpop.f32.mrb[0].mxu0
        %760 = vdwg.mxu0
        %v761 = vsub.f32 0.0, %v635
        %v762 = vsub.f32 0.0, %v638
        %v763 = vsub.f32 0.0, %v643
        %v764 = vsub.f32 0.0, %v646
        %v765 = vsub.f32 0.0, %v651
        %v766 = vsub.f32 0.0, %v654
        %v767 = vsub.f32 0.0, %v659
        %v768 = vsub.f32 0.0, %v662
        %v769 = vsub.f32 0.0, %v667
        %v770 = vsub.f32 0.0, %v670
        %v771 = vsub.f32 0.0, %v675
        %v772 = vsub.f32 0.0, %v678
        %v773 = vsub.f32 0.0, %v683
        %v774 = vsub.f32 0.0, %v686
        %v775 = vsub.f32 0.0, %v691
        %v776 = vsub.f32 0.0, %v694
        %v777 = vsub.f32 0.0, %v699
        %v778 = vsub.f32 0.0, %v702
        %v779 = vsub.f32 0.0, %v707
        %v780 = vsub.f32 0.0, %v710
        %v781 = vsub.f32 0.0, %v715
        %v782 = vsub.f32 0.0, %v718
        %v783 = vsub.f32 0.0, %v723
        %v784 = vsub.f32 0.0, %v726
        %v785 = vsub.f32 0.0, %v731
        %v786 = vsub.f32 0.0, %v734
        %v787 = vsub.f32 0.0, %v739
        %v788 = vsub.f32 0.0, %v742
        %v789 = vsub.f32 0.0, %v747
        %v790 = vsub.f32 0.0, %v750
        %v791 = vsub.f32 0.0, %v755
        %v792 = vsub.f32 0.0, %v758
        %v793 = vmul.f32 %v761, 1.442695
        %v794 = vpow.pop %v793
        %v795 = vmul.f32 %v762, 1.442695
        %v796 = vpow.pop %v795
        %v797 = vmul.f32 %v763, 1.442695
        %v798 = vpow.pop %v797
        %v799 = vmul.f32 %v764, 1.442695
        %v800 = vpow.pop %v799
        %v801 = vmul.f32 %v765, 1.442695
        %v802 = vpow.pop %v801
        %v803 = vmul.f32 %v766, 1.442695
        %v804 = vpow.pop %v803
        %v805 = vmul.f32 %v767, 1.442695
        %v806 = vpow.pop %v805
        %v807 = vmul.f32 %v768, 1.442695
        %v808 = vpow.pop %v807
        %v809 = vmul.f32 %v769, 1.442695
        %v810 = vpow.pop %v809
        %v811 = vmul.f32 %v770, 1.442695
        %v812 = vpow.pop %v811
        %v813 = vmul.f32 %v771, 1.442695
        %v814 = vpow.pop %v813
        %v815 = vmul.f32 %v772, 1.442695
        %v816 = vpow.pop %v815
        %v817 = vmul.f32 %v773, 1.442695
        %v818 = vpow.pop %v817
        %v819 = vmul.f32 %v774, 1.442695
        %v820 = vpow.pop %v819
        %v821 = vmul.f32 %v775, 1.442695
        %v822 = vpow.pop %v821
        %v823 = vmul.f32 %v776, 1.442695
        %v824 = vpow.pop %v823
        %v825 = vmul.f32 %v777, 1.442695
        %v826 = vpow.pop %v825
        %v827 = vmul.f32 %v778, 1.442695
        %v828 = vpow.pop %v827
        %v829 = vmul.f32 %v779, 1.442695
        %v830 = vpow.pop %v829
        %v831 = vmul.f32 %v780, 1.442695
        %v832 = vpow.pop %v831
        %v833 = vmul.f32 %v781, 1.442695
        %v834 = vpow.pop %v833
        %v835 = vmul.f32 %v782, 1.442695
        %v836 = vpow.pop %v835
        %v837 = vmul.f32 %v783, 1.442695
        %v838 = vpow.pop %v837
        %v839 = vmul.f32 %v784, 1.442695
        %v840 = vpow.pop %v839
        %v841 = vmul.f32 %v785, 1.442695
        %v842 = vpow.pop %v841
        %v843 = vmul.f32 %v786, 1.442695
        %v844 = vpow.pop %v843
        %v845 = vmul.f32 %v787, 1.442695
        %v846 = vpow.pop %v845
        %v847 = vmul.f32 %v788, 1.442695
        %v848 = vpow.pop %v847
        %v849 = vmul.f32 %v789, 1.442695
        %v850 = vpow.pop %v849
        %v851 = vmul.f32 %v790, 1.442695
        %v852 = vpow.pop %v851
        %v853 = vmul.f32 %v791, 1.442695
        %v854 = vpow.pop %v853
        %v855 = vmul.f32 %v792, 1.442695
        %v856 = vpow.pop %v855
        %v857 = vadd.f32 %v794, 1.0
        %v858 = vadd.f32 %v796, 1.0
        %v859 = vadd.f32 %v798, 1.0
        %v860 = vadd.f32 %v800, 1.0
        %v861 = vadd.f32 %v802, 1.0
        %v862 = vadd.f32 %v804, 1.0
        %v863 = vadd.f32 %v806, 1.0
        %v864 = vadd.f32 %v808, 1.0
        %v865 = vadd.f32 %v810, 1.0
        %v866 = vadd.f32 %v812, 1.0
        %v867 = vadd.f32 %v814, 1.0
        %v868 = vadd.f32 %v816, 1.0
        %v869 = vadd.f32 %v818, 1.0
        %v870 = vadd.f32 %v820, 1.0
        %v871 = vadd.f32 %v822, 1.0
        %v872 = vadd.f32 %v824, 1.0
        %v873 = vadd.f32 %v826, 1.0
        %v874 = vadd.f32 %v828, 1.0
        %v875 = vadd.f32 %v830, 1.0
        %v876 = vadd.f32 %v832, 1.0
        %v877 = vadd.f32 %v834, 1.0
        %v878 = vadd.f32 %v836, 1.0
        %v879 = vadd.f32 %v838, 1.0
        %v880 = vadd.f32 %v840, 1.0
        %v881 = vadd.f32 %v842, 1.0
        %v882 = vadd.f32 %v844, 1.0
        %v883 = vadd.f32 %v846, 1.0
        %v884 = vadd.f32 %v848, 1.0
        %v885 = vadd.f32 %v850, 1.0
        %v886 = vadd.f32 %v852, 1.0
        %v887 = vadd.f32 %v854, 1.0
        %v888 = vadd.f32 %v856, 1.0
        %v889 = vrcp.pop %v857
        %v890 = vrcp.pop %v858
        %v891 = vrcp.pop %v859
        %v892 = vrcp.pop %v860
        %v893 = vrcp.pop %v861
        %v894 = vrcp.pop %v862
        %v895 = vrcp.pop %v863
        %v896 = vrcp.pop %v864
        %v897 = vrcp.pop %v865
        %v898 = vrcp.pop %v866
        %v899 = vrcp.pop %v867
        %v900 = vrcp.pop %v868
        %v901 = vrcp.pop %v869
        %v902 = vrcp.pop %v870
        %v903 = vrcp.pop %v871
        %v904 = vrcp.pop %v872
        %v905 = vrcp.pop %v873
        %v906 = vrcp.pop %v874
        %v907 = vrcp.pop %v875
        %v908 = vrcp.pop %v876
        %v909 = vrcp.pop %v877
        %v910 = vrcp.pop %v878
        %v911 = vrcp.pop %v879
        %v912 = vrcp.pop %v880
        %v913 = vrcp.pop %v881
        %v914 = vrcp.pop %v882
        %v915 = vrcp.pop %v883
        %v916 = vrcp.pop %v884
        %v917 = vrcp.pop %v885
        %v918 = vrcp.pop %v886
        %v919 = vrcp.pop %v887
        %v920 = vrcp.pop %v888
        %v921 = vmul.f32 %v635, %v889
        %v922 = vmul.f32 %v638, %v890
        %v923 = vmul.f32 %v643, %v891
        %v924 = vmul.f32 %v646, %v892
        %v925 = vmul.f32 %v651, %v893
        %v926 = vmul.f32 %v654, %v894
        %v927 = vmul.f32 %v659, %v895
        %v928 = vmul.f32 %v662, %v896
        %v929 = vmul.f32 %v667, %v897
        %v930 = vmul.f32 %v670, %v898
        %v931 = vmul.f32 %v675, %v899
        %v932 = vmul.f32 %v678, %v900
        %v933 = vmul.f32 %v683, %v901
        %v934 = vmul.f32 %v686, %v902
        %v935 = vmul.f32 %v691, %v903
        %v936 = vmul.f32 %v694, %v904
        %v937 = vmul.f32 %v699, %v905
        %v938 = vmul.f32 %v702, %v906
        %v939 = vmul.f32 %v707, %v907
        %v940 = vmul.f32 %v710, %v908
        %v941 = vmul.f32 %v715, %v909
        %v942 = vmul.f32 %v718, %v910
        %v943 = vmul.f32 %v723, %v911
        %v944 = vmul.f32 %v726, %v912
        %v945 = vmul.f32 %v731, %v913
        %v946 = vmul.f32 %v734, %v914
        %v947 = vmul.f32 %v739, %v915
        %v948 = vmul.f32 %v742, %v916
        %v949 = vmul.f32 %v747, %v917
        %v950 = vmul.f32 %v750, %v918
        %v951 = vmul.f32 %v755, %v919
        %v952 = vmul.f32 %v758, %v920
        %v953 = vpack.c.bf16 %v922, %v921
        %v954 = vpack.c.bf16 %v924, %v923
        %v955 = vpack.c.bf16 %v926, %v925
        %v956 = vpack.c.bf16 %v928, %v927
        %v957 = vpack.c.bf16 %v930, %v929
        %v958 = vpack.c.bf16 %v932, %v931
        %v959 = vpack.c.bf16 %v934, %v933
        %v960 = vpack.c.bf16 %v936, %v935
        %v961 = vpack.c.bf16 %v938, %v937
        %v962 = vpack.c.bf16 %v940, %v939
        %v963 = vpack.c.bf16 %v942, %v941
        %v964 = vpack.c.bf16 %v944, %v943
        %v965 = vpack.c.bf16 %v946, %v945
        %v966 = vpack.c.bf16 %v948, %v947
        %v967 = vpack.c.bf16 %v950, %v949
        %v968 = vpack.c.bf16 %v952, %v951
        %v969 = vld [vmem:[#allocation8] sm:$0xff]
        %v970 = vld [vmem:[#allocation8 + $0x8] sm:$0xff]
        %v971 = vld [vmem:[#allocation8 + $0x10] sm:$0xff]
        %v972 = vld [vmem:[#allocation8 + $0x18] sm:$0xff]
        %v973 = vld [vmem:[#allocation8 + $0x20] sm:$0xff]
        %v974 = vld [vmem:[#allocation8 + $0x28] sm:$0xff]
        %v975 = vld [vmem:[#allocation8 + $0x30] sm:$0xff]
        %v976 = vld [vmem:[#allocation8 + $0x38] sm:$0xff]
        %v977 = vld [vmem:[#allocation8 + $0x40] sm:$0xff]
        %v978 = vld [vmem:[#allocation8 + $0x48] sm:$0xff]
        %v979 = vld [vmem:[#allocation8 + $0x50] sm:$0xff]
        %v980 = vld [vmem:[#allocation8 + $0x58] sm:$0xff]
        %v981 = vld [vmem:[#allocation8 + $0x60] sm:$0xff]
        %v982 = vld [vmem:[#allocation8 + $0x68] sm:$0xff]
        %v983 = vld [vmem:[#allocation8 + $0x70] sm:$0xff]
        %v984 = vld [vmem:[#allocation8 + $0x78] sm:$0xff]
        %985 = vst [vmem:[#allocation2] sm:$0xff] -inf
        %986 = vst [vmem:[#allocation2 + $0x8] sm:$0xff] -inf
        %987 = vst [vmem:[#allocation2 + $0x10] sm:$0xff] -inf
        %988 = vst [vmem:[#allocation2 + $0x18] sm:$0xff] -inf
        %989 = vst [vmem:[#allocation2 + $0x20] sm:$0xff] -inf
        %990 = vst [vmem:[#allocation2 + $0x28] sm:$0xff] -inf
        %991 = vst [vmem:[#allocation2 + $0x30] sm:$0xff] -inf
        %992 = vst [vmem:[#allocation2 + $0x38] sm:$0xff] -inf
        %993 = vst [vmem:[#allocation2 + $0x40] sm:$0xff] -inf
        %994 = vst [vmem:[#allocation2 + $0x48] sm:$0xff] -inf
        %995 = vst [vmem:[#allocation2 + $0x50] sm:$0xff] -inf
        %996 = vst [vmem:[#allocation2 + $0x58] sm:$0xff] -inf
        %997 = vst [vmem:[#allocation2 + $0x60] sm:$0xff] -inf
        %998 = vst [vmem:[#allocation2 + $0x68] sm:$0xff] -inf
        %999 = vst [vmem:[#allocation2 + $0x70] sm:$0xff] -inf
        %1000 = vst [vmem:[#allocation2 + $0x78] sm:$0xff] -inf
        %1001 = vst [vmem:[#allocation2 + $0x80] sm:$0xff] -inf
        %1002 = vst [vmem:[#allocation2 + $0x88] sm:$0xff] -inf
        %1003 = vst [vmem:[#allocation2 + $0x90] sm:$0xff] -inf
        %1004 = vst [vmem:[#allocation2 + $0x98] sm:$0xff] -inf
        %1005 = vst [vmem:[#allocation2 + $0xa0] sm:$0xff] -inf
        %1006 = vst [vmem:[#allocation2 + $0xa8] sm:$0xff] -inf
        %1007 = vst [vmem:[#allocation2 + $0xb0] sm:$0xff] -inf
        %1008 = vst [vmem:[#allocation2 + $0xb8] sm:$0xff] -inf
        %s1009 = scalar_lea.vmem [#allocation2], 704
        %1010 = vst [vmem:[%s1009] sm:$0xff] -inf
        %1011 = vst [vmem:[%s1009 + $0x8] sm:$0xff] -inf
        %1012 = vst [vmem:[%s1009 + $0x10] sm:$0xff] -inf
        %1013 = vst [vmem:[%s1009 + $0x18] sm:$0xff] -inf
        %1014 = vst [vmem:[%s1009 + $0x20] sm:$0xff] -inf
        %1015 = vst [vmem:[%s1009 + $0x28] sm:$0xff] -inf
        %1016 = vst [vmem:[%s1009 + $0x30] sm:$0xff] -inf
        %1017 = vst [vmem:[%s1009 + $0x38] sm:$0xff] -inf
        %1018 = vst [vmem:[%s1009 + $0x40] sm:$0xff] -inf
        %1019 = vst [vmem:[%s1009 + $0x48] sm:$0xff] -inf
        %1020 = vst [vmem:[%s1009 + $0x50] sm:$0xff] -inf
        %1021 = vst [vmem:[%s1009 + $0x58] sm:$0xff] -inf
        %1022 = vst [vmem:[%s1009 + $0x60] sm:$0xff] -inf
        %1023 = vst [vmem:[%s1009 + $0x68] sm:$0xff] -inf
        %1024 = vst [vmem:[%s1009 + $0x70] sm:$0xff] -inf
        %1025 = vst [vmem:[%s1009 + $0x78] sm:$0xff] -inf
        %1026 = vst [vmem:[%s1009 + $0x80] sm:$0xff] -inf
        %1027 = vst [vmem:[%s1009 + $0x88] sm:$0xff] -inf
        %1028 = vst [vmem:[%s1009 + $0x90] sm:$0xff] -inf
        %1029 = vst [vmem:[%s1009 + $0x98] sm:$0xff] -inf
        %1030 = vst [vmem:[%s1009 + $0xa0] sm:$0xff] -inf
        %1031 = vst [vmem:[%s1009 + $0xa8] sm:$0xff] -inf
        %1032 = vst [vmem:[%s1009 + $0xb0] sm:$0xff] -inf
        %1033 = vst [vmem:[%s1009 + $0xb8] sm:$0xff] -inf
        %s1034 = scalar_lea.vmem [#allocation2], 192
        %1035 = vst [vmem:[%s1034] sm:$0xff] -inf
        %1036 = vst [vmem:[%s1034 + $0x20] sm:$0xff] -inf
        %1037 = vst [vmem:[%s1034 + $0x40] sm:$0xff] -inf
        %1038 = vst [vmem:[%s1034 + $0x60] sm:$0xff] -inf
        %1039 = vst [vmem:[%s1034 + $0x80] sm:$0xff] -inf
        %1040 = vst [vmem:[%s1034 + $0xa0] sm:$0xff] -inf
        %1041 = vst [vmem:[%s1034 + $0xc0] sm:$0xff] -inf
        %1042 = vst [vmem:[%s1034 + $0xe0] sm:$0xff] -inf
        %1043 = vst [vmem:[%s1034 + $0x100] sm:$0xff] -inf
        %1044 = vst [vmem:[%s1034 + $0x120] sm:$0xff] -inf
        %1045 = vst [vmem:[%s1034 + $0x140] sm:$0xff] -inf
        %1046 = vst [vmem:[%s1034 + $0x160] sm:$0xff] -inf
        %1047 = vst [vmem:[%s1034 + $0x180] sm:$0xff] -inf
        %1048 = vst [vmem:[%s1034 + $0x1a0] sm:$0xff] -inf
        %1049 = vst [vmem:[%s1034 + $0x1c0] sm:$0xff] -inf
        %1050 = vst [vmem:[%s1034 + $0x1e0] sm:$0xff] -inf
        %1051 = vst [vmem:[%s1034 + $0x18] sm:$0xff] -inf
        %1052 = vst [vmem:[%s1034 + $0x38] sm:$0xff] -inf
        %1053 = vst [vmem:[%s1034 + $0x58] sm:$0xff] -inf
        %1054 = vst [vmem:[%s1034 + $0x78] sm:$0xff] -inf
        %1055 = vst [vmem:[%s1034 + $0x98] sm:$0xff] -inf
        %1056 = vst [vmem:[%s1034 + $0xb8] sm:$0xff] -inf
        %1057 = vst [vmem:[%s1034 + $0xd8] sm:$0xff] -inf
        %1058 = vst [vmem:[%s1034 + $0xf8] sm:$0xff] -inf
        %1059 = vst [vmem:[%s1034 + $0x118] sm:$0xff] -inf
        %1060 = vst [vmem:[%s1034 + $0x138] sm:$0xff] -inf
        %1061 = vst [vmem:[%s1034 + $0x158] sm:$0xff] -inf
        %1062 = vst [vmem:[%s1034 + $0x178] sm:$0xff] -inf
        %1063 = vst [vmem:[%s1034 + $0x198] sm:$0xff] -inf
        %1064 = vst [vmem:[%s1034 + $0x1b8] sm:$0xff] -inf
        %1065 = vst [vmem:[%s1034 + $0x1d8] sm:$0xff] -inf
        %1066 = vst [vmem:[%s1034 + $0x1f8] sm:$0xff] -inf
        %1067 = vst [vmem:[%s1034 + $0x8] sm:$0xff] %v921
        %1068 = vst [vmem:[%s1034 + $0x10] sm:$0xff] %v922
        %1069 = vst [vmem:[%s1034 + $0x28] sm:$0xff] %v923
        %1070 = vst [vmem:[%s1034 + $0x30] sm:$0xff] %v924
        %1071 = vst [vmem:[%s1034 + $0x48] sm:$0xff] %v925
        %1072 = vst [vmem:[%s1034 + $0x50] sm:$0xff] %v926
        %1073 = vst [vmem:[%s1034 + $0x68] sm:$0xff] %v927
        %1074 = vst [vmem:[%s1034 + $0x70] sm:$0xff] %v928
        %1075 = vst [vmem:[%s1034 + $0x88] sm:$0xff] %v929
        %1076 = vst [vmem:[%s1034 + $0x90] sm:$0xff] %v930
        %1077 = vst [vmem:[%s1034 + $0xa8] sm:$0xff] %v931
        %1078 = vst [vmem:[%s1034 + $0xb0] sm:$0xff] %v932
        %1079 = vst [vmem:[%s1034 + $0xc8] sm:$0xff] %v933
        %1080 = vst [vmem:[%s1034 + $0xd0] sm:$0xff] %v934
        %1081 = vst [vmem:[%s1034 + $0xe8] sm:$0xff] %v935
        %1082 = vst [vmem:[%s1034 + $0xf0] sm:$0xff] %v936
        %1083 = vst [vmem:[%s1034 + $0x108] sm:$0xff] %v937
        %1084 = vst [vmem:[%s1034 + $0x110] sm:$0xff] %v938
        %1085 = vst [vmem:[%s1034 + $0x128] sm:$0xff] %v939
        %1086 = vst [vmem:[%s1034 + $0x130] sm:$0xff] %v940
        %1087 = vst [vmem:[%s1034 + $0x148] sm:$0xff] %v941
        %1088 = vst [vmem:[%s1034 + $0x150] sm:$0xff] %v942
        %1089 = vst [vmem:[%s1034 + $0x168] sm:$0xff] %v943
        %1090 = vst [vmem:[%s1034 + $0x170] sm:$0xff] %v944
        %1091 = vst [vmem:[%s1034 + $0x188] sm:$0xff] %v945
        %1092 = vst [vmem:[%s1034 + $0x190] sm:$0xff] %v946
        %1093 = vst [vmem:[%s1034 + $0x1a8] sm:$0xff] %v947
        %1094 = vst [vmem:[%s1034 + $0x1b0] sm:$0xff] %v948
        %1095 = vst [vmem:[%s1034 + $0x1c8] sm:$0xff] %v949
        %1096 = vst [vmem:[%s1034 + $0x1d0] sm:$0xff] %v950
        %1097 = vst [vmem:[%s1034 + $0x1e8] sm:$0xff] %v951
        %1098 = vst [vmem:[%s1034 + $0x1f0] sm:$0xff] %v952
        %v1099 = vld [vmem:[#allocation2] sm:$0xff]
        %v1100 = vld [vmem:[#allocation2 + $0x8] sm:$0xff]
        %v1101 = vld [vmem:[#allocation2 + $0x10] sm:$0xff]
        %v1102 = vld [vmem:[#allocation2 + $0x18] sm:$0x3f]
        %v1103 = vld [vmem:[#allocation2 + $0x20] sm:$0xff]
        %v1104 = vld [vmem:[#allocation2 + $0x28] sm:$0xff]
        %v1105 = vld [vmem:[#allocation2 + $0x30] sm:$0xff]
        %v1106 = vld [vmem:[#allocation2 + $0x38] sm:$0x3f]
        %v1107 = vld [vmem:[#allocation2 + $0x40] sm:$0xff]
        %v1108 = vld [vmem:[#allocation2 + $0x48] sm:$0xff]
        %v1109 = vld [vmem:[#allocation2 + $0x50] sm:$0xff]
        %v1110 = vld [vmem:[#allocation2 + $0x58] sm:$0x3f]
        %v1111 = vld [vmem:[#allocation2 + $0x60] sm:$0xff]
        %v1112 = vld [vmem:[#allocation2 + $0x68] sm:$0xff]
        %v1113 = vld [vmem:[#allocation2 + $0x70] sm:$0xff]
        %v1114 = vld [vmem:[#allocation2 + $0x78] sm:$0x3f]
        %v1115 = vld [vmem:[#allocation2 + $0x80] sm:$0xff]
        %v1116 = vld [vmem:[#allocation2 + $0x88] sm:$0xff]
        %v1117 = vld [vmem:[#allocation2 + $0x90] sm:$0xff]
        %v1118 = vld [vmem:[#allocation2 + $0x98] sm:$0x3f]
        %v1119 = vld [vmem:[#allocation2 + $0xa0] sm:$0xff]
        %v1120 = vld [vmem:[#allocation2 + $0xa8] sm:$0xff]
        %v1121 = vld [vmem:[#allocation2 + $0xb0] sm:$0xff]
        %v1122 = vld [vmem:[#allocation2 + $0xb8] sm:$0x3f]
        %v1123 = vld [vmem:[#allocation2 + $0xc0] sm:$0xff]
        %v1124 = vld [vmem:[#allocation2 + $0xc8] sm:$0xff]
        %v1125 = vld [vmem:[#allocation2 + $0xd0] sm:$0xff]
        %v1126 = vld [vmem:[#allocation2 + $0xd8] sm:$0x3f]
        %v1127 = vld [vmem:[#allocation2 + $0xe0] sm:$0xff]
        %v1128 = vld [vmem:[#allocation2 + $0xe8] sm:$0xff]
        %v1129 = vld [vmem:[#allocation2 + $0xf0] sm:$0xff]
        %v1130 = vld [vmem:[#allocation2 + $0xf8] sm:$0x3f]
        %v1131 = vld [vmem:[#allocation2 + $0x100] sm:$0xff]
        %v1132 = vld [vmem:[#allocation2 + $0x108] sm:$0xff]
        %v1133 = vld [vmem:[#allocation2 + $0x110] sm:$0xff]
        %v1134 = vld [vmem:[#allocation2 + $0x118] sm:$0x3f]
        %v1135 = vld [vmem:[#allocation2 + $0x120] sm:$0xff]
        %v1136 = vld [vmem:[#allocation2 + $0x128] sm:$0xff]
        %v1137 = vld [vmem:[#allocation2 + $0x130] sm:$0xff]
        %v1138 = vld [vmem:[#allocation2 + $0x138] sm:$0x3f]
        %v1139 = vld [vmem:[#allocation2 + $0x140] sm:$0xff]
        %v1140 = vld [vmem:[#allocation2 + $0x148] sm:$0xff]
        %v1141 = vld [vmem:[#allocation2 + $0x150] sm:$0xff]
        %v1142 = vld [vmem:[#allocation2 + $0x158] sm:$0x3f]
        %v1143 = vld [vmem:[#allocation2 + $0x160] sm:$0xff]
        %v1144 = vld [vmem:[#allocation2 + $0x168] sm:$0xff]
        %v1145 = vld [vmem:[#allocation2 + $0x170] sm:$0xff]
        %v1146 = vld [vmem:[#allocation2 + $0x178] sm:$0x3f]
        %v1147 = vld [vmem:[#allocation2 + $0x180] sm:$0xff]
        %v1148 = vld [vmem:[#allocation2 + $0x188] sm:$0xff]
        %v1149 = vld [vmem:[#allocation2 + $0x190] sm:$0xff]
        %v1150 = vld [vmem:[#allocation2 + $0x198] sm:$0x3f]
        %v1151 = vld [vmem:[#allocation2 + $0x1a0] sm:$0xff]
        %v1152 = vld [vmem:[#allocation2 + $0x1a8] sm:$0xff]
        %v1153 = vld [vmem:[#allocation2 + $0x1b0] sm:$0xff]
        %v1154 = vld [vmem:[#allocation2 + $0x1b8] sm:$0x3f]
        %v1155 = vld [vmem:[#allocation2 + $0x1c0] sm:$0xff]
        %v1156 = vld [vmem:[#allocation2 + $0x1c8] sm:$0xff]
        %v1157 = vld [vmem:[#allocation2 + $0x1d0] sm:$0xff]
        %v1158 = vld [vmem:[#allocation2 + $0x1d8] sm:$0x3f]
        %v1159 = vld [vmem:[#allocation2 + $0x1e0] sm:$0xff]
        %v1160 = vld [vmem:[#allocation2 + $0x1e8] sm:$0xff]
        %v1161 = vld [vmem:[#allocation2 + $0x1f0] sm:$0xff]
        %v1162 = vld [vmem:[#allocation2 + $0x1f8] sm:$0x3f]
        %v1163 = vld [vmem:[#allocation2 + $0x200] sm:$0xff]
        %v1164 = vld [vmem:[#allocation2 + $0x208] sm:$0xff]
        %v1165 = vld [vmem:[#allocation2 + $0x210] sm:$0xff]
        %v1166 = vld [vmem:[#allocation2 + $0x218] sm:$0x3f]
        %v1167 = vld [vmem:[#allocation2 + $0x220] sm:$0xff]
        %v1168 = vld [vmem:[#allocation2 + $0x228] sm:$0xff]
        %v1169 = vld [vmem:[#allocation2 + $0x230] sm:$0xff]
        %v1170 = vld [vmem:[#allocation2 + $0x238] sm:$0x3f]
        %v1171 = vld [vmem:[#allocation2 + $0x240] sm:$0xff]
        %v1172 = vld [vmem:[#allocation2 + $0x248] sm:$0xff]
        %v1173 = vld [vmem:[#allocation2 + $0x250] sm:$0xff]
        %v1174 = vld [vmem:[#allocation2 + $0x258] sm:$0x3f]
        %v1175 = vld [vmem:[#allocation2 + $0x260] sm:$0xff]
        %v1176 = vld [vmem:[#allocation2 + $0x268] sm:$0xff]
        %v1177 = vld [vmem:[#allocation2 + $0x270] sm:$0xff]
        %v1178 = vld [vmem:[#allocation2 + $0x278] sm:$0x3f]
        %v1179 = vld [vmem:[#allocation2 + $0x280] sm:$0xff]
        %v1180 = vld [vmem:[#allocation2 + $0x288] sm:$0xff]
        %v1181 = vld [vmem:[#allocation2 + $0x290] sm:$0xff]
        %v1182 = vld [vmem:[#allocation2 + $0x298] sm:$0x3f]
        %v1183 = vld [vmem:[#allocation2 + $0x2a0] sm:$0xff]
        %v1184 = vld [vmem:[#allocation2 + $0x2a8] sm:$0xff]
        %v1185 = vld [vmem:[#allocation2 + $0x2b0] sm:$0xff]
        %v1186 = vld [vmem:[#allocation2 + $0x2b8] sm:$0x3f]
        %v1187 = vld [vmem:[#allocation2 + $0x2c0] sm:$0xff]
        %v1188 = vld [vmem:[#allocation2 + $0x2c8] sm:$0xff]
        %v1189 = vld [vmem:[#allocation2 + $0x2d0] sm:$0xff]
        %v1190 = vld [vmem:[#allocation2 + $0x2d8] sm:$0x3f]
        %v1191 = vld [vmem:[#allocation2 + $0x2e0] sm:$0xff]
        %v1192 = vld [vmem:[#allocation2 + $0x2e8] sm:$0xff]
        %v1193 = vld [vmem:[#allocation2 + $0x2f0] sm:$0xff]
        %v1194 = vld [vmem:[#allocation2 + $0x2f8] sm:$0x3f]
        %v1195 = vld [vmem:[#allocation2 + $0x300] sm:$0xff]
        %v1196 = vld [vmem:[#allocation2 + $0x308] sm:$0xff]
        %v1197 = vld [vmem:[#allocation2 + $0x310] sm:$0xff]
        %v1198 = vld [vmem:[#allocation2 + $0x318] sm:$0x3f]
        %v1199 = vld [vmem:[#allocation2 + $0x320] sm:$0xff]
        %v1200 = vld [vmem:[#allocation2 + $0x328] sm:$0xff]
        %v1201 = vld [vmem:[#allocation2 + $0x330] sm:$0xff]
        %v1202 = vld [vmem:[#allocation2 + $0x338] sm:$0x3f]
        %v1203 = vld [vmem:[#allocation2 + $0x340] sm:$0xff]
        %v1204 = vld [vmem:[#allocation2 + $0x348] sm:$0xff]
        %v1205 = vld [vmem:[#allocation2 + $0x350] sm:$0xff]
        %v1206 = vld [vmem:[#allocation2 + $0x358] sm:$0x3f]
        %v1207 = vld [vmem:[#allocation2 + $0x360] sm:$0xff]
        %v1208 = vld [vmem:[#allocation2 + $0x368] sm:$0xff]
        %v1209 = vld [vmem:[#allocation2 + $0x370] sm:$0xff]
        %v1210 = vld [vmem:[#allocation2 + $0x378] sm:$0x3f]
        %v1211 = vld [vmem:[#allocation2 + $0x1] sm:$0xff]
        %v1212 = vld [vmem:[#allocation2 + $0x9] sm:$0xff]
        %v1213 = vld [vmem:[#allocation2 + $0x11] sm:$0xff]
        %v1214 = vld [vmem:[#allocation2 + $0x19] sm:$0x3f]
        %v1215 = vld [vmem:[#allocation2 + $0x21] sm:$0xff]
        %v1216 = vld [vmem:[#allocation2 + $0x29] sm:$0xff]
        %v1217 = vld [vmem:[#allocation2 + $0x31] sm:$0xff]
        %v1218 = vld [vmem:[#allocation2 + $0x39] sm:$0x3f]
        %v1219 = vld [vmem:[#allocation2 + $0x41] sm:$0xff]
        %v1220 = vld [vmem:[#allocation2 + $0x49] sm:$0xff]
        %v1221 = vld [vmem:[#allocation2 + $0x51] sm:$0xff]
        %v1222 = vld [vmem:[#allocation2 + $0x59] sm:$0x3f]
        %v1223 = vld [vmem:[#allocation2 + $0x61] sm:$0xff]
        %v1224 = vld [vmem:[#allocation2 + $0x69] sm:$0xff]
        %v1225 = vld [vmem:[#allocation2 + $0x71] sm:$0xff]
        %v1226 = vld [vmem:[#allocation2 + $0x79] sm:$0x3f]
        %v1227 = vld [vmem:[#allocation2 + $0x81] sm:$0xff]
        %v1228 = vld [vmem:[#allocation2 + $0x89] sm:$0xff]
        %v1229 = vld [vmem:[#allocation2 + $0x91] sm:$0xff]
        %v1230 = vld [vmem:[#allocation2 + $0x99] sm:$0x3f]
        %v1231 = vld [vmem:[#allocation2 + $0xa1] sm:$0xff]
        %v1232 = vld [vmem:[#allocation2 + $0xa9] sm:$0xff]
        %v1233 = vld [vmem:[#allocation2 + $0xb1] sm:$0xff]
        %v1234 = vld [vmem:[#allocation2 + $0xb9] sm:$0x3f]
        %v1235 = vld [vmem:[#allocation2 + $0xc1] sm:$0xff]
        %v1236 = vld [vmem:[#allocation2 + $0xc9] sm:$0xff]
        %v1237 = vld [vmem:[#allocation2 + $0xd1] sm:$0xff]
        %v1238 = vld [vmem:[#allocation2 + $0xd9] sm:$0x3f]
        %v1239 = vld [vmem:[#allocation2 + $0xe1] sm:$0xff]
        %v1240 = vld [vmem:[#allocation2 + $0xe9] sm:$0xff]
        %v1241 = vld [vmem:[#allocation2 + $0xf1] sm:$0xff]
        %v1242 = vld [vmem:[#allocation2 + $0xf9] sm:$0x3f]
        %v1243 = vld [vmem:[#allocation2 + $0x101] sm:$0xff]
        %v1244 = vld [vmem:[#allocation2 + $0x109] sm:$0xff]
        %v1245 = vld [vmem:[#allocation2 + $0x111] sm:$0xff]
        %v1246 = vld [vmem:[#allocation2 + $0x119] sm:$0x3f]
        %v1247 = vld [vmem:[#allocation2 + $0x121] sm:$0xff]
        %v1248 = vld [vmem:[#allocation2 + $0x129] sm:$0xff]
        %v1249 = vld [vmem:[#allocation2 + $0x131] sm:$0xff]
        %v1250 = vld [vmem:[#allocation2 + $0x139] sm:$0x3f]
        %v1251 = vld [vmem:[#allocation2 + $0x141] sm:$0xff]
        %v1252 = vld [vmem:[#allocation2 + $0x149] sm:$0xff]
        %v1253 = vld [vmem:[#allocation2 + $0x151] sm:$0xff]
        %v1254 = vld [vmem:[#allocation2 + $0x159] sm:$0x3f]
        %v1255 = vld [vmem:[#allocation2 + $0x161] sm:$0xff]
        %v1256 = vld [vmem:[#allocation2 + $0x169] sm:$0xff]
        %v1257 = vld [vmem:[#allocation2 + $0x171] sm:$0xff]
        %v1258 = vld [vmem:[#allocation2 + $0x179] sm:$0x3f]
        %v1259 = vld [vmem:[#allocation2 + $0x181] sm:$0xff]
        %v1260 = vld [vmem:[#allocation2 + $0x189] sm:$0xff]
        %v1261 = vld [vmem:[#allocation2 + $0x191] sm:$0xff]
        %v1262 = vld [vmem:[#allocation2 + $0x199] sm:$0x3f]
        %v1263 = vld [vmem:[#allocation2 + $0x1a1] sm:$0xff]
        %v1264 = vld [vmem:[#allocation2 + $0x1a9] sm:$0xff]
        %v1265 = vld [vmem:[#allocation2 + $0x1b1] sm:$0xff]
        %v1266 = vld [vmem:[#allocation2 + $0x1b9] sm:$0x3f]
        %v1267 = vld [vmem:[#allocation2 + $0x1c1] sm:$0xff]
        %v1268 = vld [vmem:[#allocation2 + $0x1c9] sm:$0xff]
        %v1269 = vld [vmem:[#allocation2 + $0x1d1] sm:$0xff]
        %v1270 = vld [vmem:[#allocation2 + $0x1d9] sm:$0x3f]
        %v1271 = vld [vmem:[#allocation2 + $0x1e1] sm:$0xff]
        %v1272 = vld [vmem:[#allocation2 + $0x1e9] sm:$0xff]
        %v1273 = vld [vmem:[#allocation2 + $0x1f1] sm:$0xff]
        %v1274 = vld [vmem:[#allocation2 + $0x1f9] sm:$0x3f]
        %v1275 = vld [vmem:[#allocation2 + $0x201] sm:$0xff]
        %v1276 = vld [vmem:[#allocation2 + $0x209] sm:$0xff]
        %v1277 = vld [vmem:[#allocation2 + $0x211] sm:$0xff]
        %v1278 = vld [vmem:[#allocation2 + $0x219] sm:$0x3f]
        %v1279 = vld [vmem:[#allocation2 + $0x221] sm:$0xff]
        %v1280 = vld [vmem:[#allocation2 + $0x229] sm:$0xff]
        %v1281 = vld [vmem:[#allocation2 + $0x231] sm:$0xff]
        %v1282 = vld [vmem:[#allocation2 + $0x239] sm:$0x3f]
        %v1283 = vld [vmem:[#allocation2 + $0x241] sm:$0xff]
        %v1284 = vld [vmem:[#allocation2 + $0x249] sm:$0xff]
        %v1285 = vld [vmem:[#allocation2 + $0x251] sm:$0xff]
        %v1286 = vld [vmem:[#allocation2 + $0x259] sm:$0x3f]
        %v1287 = vld [vmem:[#allocation2 + $0x261] sm:$0xff]
        %v1288 = vld [vmem:[#allocation2 + $0x269] sm:$0xff]
        %v1289 = vld [vmem:[#allocation2 + $0x271] sm:$0xff]
        %v1290 = vld [vmem:[#allocation2 + $0x279] sm:$0x3f]
        %v1291 = vld [vmem:[#allocation2 + $0x281] sm:$0xff]
        %v1292 = vld [vmem:[#allocation2 + $0x289] sm:$0xff]
        %v1293 = vld [vmem:[#allocation2 + $0x291] sm:$0xff]
        %v1294 = vld [vmem:[#allocation2 + $0x299] sm:$0x3f]
        %v1295 = vld [vmem:[#allocation2 + $0x2a1] sm:$0xff]
        %v1296 = vld [vmem:[#allocation2 + $0x2a9] sm:$0xff]
        %v1297 = vld [vmem:[#allocation2 + $0x2b1] sm:$0xff]
        %v1298 = vld [vmem:[#allocation2 + $0x2b9] sm:$0x3f]
        %v1299 = vld [vmem:[#allocation2 + $0x2c1] sm:$0xff]
        %v1300 = vld [vmem:[#allocation2 + $0x2c9] sm:$0xff]
        %v1301 = vld [vmem:[#allocation2 + $0x2d1] sm:$0xff]
        %v1302 = vld [vmem:[#allocation2 + $0x2d9] sm:$0x3f]
        %v1303 = vld [vmem:[#allocation2 + $0x2e1] sm:$0xff]
        %v1304 = vld [vmem:[#allocation2 + $0x2e9] sm:$0xff]
        %v1305 = vld [vmem:[#allocation2 + $0x2f1] sm:$0xff]
        %v1306 = vld [vmem:[#allocation2 + $0x2f9] sm:$0x3f]
        %v1307 = vld [vmem:[#allocation2 + $0x301] sm:$0xff]
        %v1308 = vld [vmem:[#allocation2 + $0x309] sm:$0xff]
        %v1309 = vld [vmem:[#allocation2 + $0x311] sm:$0xff]
        %v1310 = vld [vmem:[#allocation2 + $0x319] sm:$0x3f]
        %v1311 = vld [vmem:[#allocation2 + $0x321] sm:$0xff]
        %v1312 = vld [vmem:[#allocation2 + $0x329] sm:$0xff]
        %v1313 = vld [vmem:[#allocation2 + $0x331] sm:$0xff]
        %v1314 = vld [vmem:[#allocation2 + $0x339] sm:$0x3f]
        %v1315 = vld [vmem:[#allocation2 + $0x341] sm:$0xff]
        %v1316 = vld [vmem:[#allocation2 + $0x349] sm:$0xff]
        %v1317 = vld [vmem:[#allocation2 + $0x351] sm:$0xff]
        %v1318 = vld [vmem:[#allocation2 + $0x359] sm:$0x3f]
        %v1319 = vld [vmem:[#allocation2 + $0x361] sm:$0xff]
        %v1320 = vld [vmem:[#allocation2 + $0x369] sm:$0xff]
        %v1321 = vld [vmem:[#allocation2 + $0x371] sm:$0xff]
        %v1322 = vld [vmem:[#allocation2 + $0x379] sm:$0x3f]
        %v1323 = vmax.f32 %v1099, %v1211
        %v1324 = vmax.f32 %v1100, %v1212
        %v1325 = vmax.f32 %v1101, %v1213
        %v1326 = vmax.f32 %v1102, %v1214
        %v1327 = vmax.f32 %v1103, %v1215
        %v1328 = vmax.f32 %v1104, %v1216
        %v1329 = vmax.f32 %v1105, %v1217
        %v1330 = vmax.f32 %v1106, %v1218
        %v1331 = vmax.f32 %v1107, %v1219
        %v1332 = vmax.f32 %v1108, %v1220
        %v1333 = vmax.f32 %v1109, %v1221
        %v1334 = vmax.f32 %v1110, %v1222
        %v1335 = vmax.f32 %v1111, %v1223
        %v1336 = vmax.f32 %v1112, %v1224
        %v1337 = vmax.f32 %v1113, %v1225
        %v1338 = vmax.f32 %v1114, %v1226
        %v1339 = vmax.f32 %v1115, %v1227
        %v1340 = vmax.f32 %v1116, %v1228
        %v1341 = vmax.f32 %v1117, %v1229
        %v1342 = vmax.f32 %v1118, %v1230
        %v1343 = vmax.f32 %v1119, %v1231
        %v1344 = vmax.f32 %v1120, %v1232
        %v1345 = vmax.f32 %v1121, %v1233
        %v1346 = vmax.f32 %v1122, %v1234
        %v1347 = vmax.f32 %v1123, %v1235
        %v1348 = vmax.f32 %v1124, %v1236
        %v1349 = vmax.f32 %v1125, %v1237
        %v1350 = vmax.f32 %v1126, %v1238
        %v1351 = vmax.f32 %v1127, %v1239
        %v1352 = vmax.f32 %v1128, %v1240
        %v1353 = vmax.f32 %v1129, %v1241
        %v1354 = vmax.f32 %v1130, %v1242
        %v1355 = vmax.f32 %v1131, %v1243
        %v1356 = vmax.f32 %v1132, %v1244
        %v1357 = vmax.f32 %v1133, %v1245
        %v1358 = vmax.f32 %v1134, %v1246
        %v1359 = vmax.f32 %v1135, %v1247
        %v1360 = vmax.f32 %v1136, %v1248
        %v1361 = vmax.f32 %v1137, %v1249
        %v1362 = vmax.f32 %v1138, %v1250
        %v1363 = vmax.f32 %v1139, %v1251
        %v1364 = vmax.f32 %v1140, %v1252
        %v1365 = vmax.f32 %v1141, %v1253
        %v1366 = vmax.f32 %v1142, %v1254
        %v1367 = vmax.f32 %v1143, %v1255
        %v1368 = vmax.f32 %v1144, %v1256
        %v1369 = vmax.f32 %v1145, %v1257
        %v1370 = vmax.f32 %v1146, %v1258
        %v1371 = vmax.f32 %v1147, %v1259
        %v1372 = vmax.f32 %v1148, %v1260
        %v1373 = vmax.f32 %v1149, %v1261
        %v1374 = vmax.f32 %v1150, %v1262
        %v1375 = vmax.f32 %v1151, %v1263
        %v1376 = vmax.f32 %v1152, %v1264
        %v1377 = vmax.f32 %v1153, %v1265
        %v1378 = vmax.f32 %v1154, %v1266
        %v1379 = vmax.f32 %v1155, %v1267
        %v1380 = vmax.f32 %v1156, %v1268
        %v1381 = vmax.f32 %v1157, %v1269
        %v1382 = vmax.f32 %v1158, %v1270
        %v1383 = vmax.f32 %v1159, %v1271
        %v1384 = vmax.f32 %v1160, %v1272
        %v1385 = vmax.f32 %v1161, %v1273
        %v1386 = vmax.f32 %v1162, %v1274
        %v1387 = vmax.f32 %v1163, %v1275
        %v1388 = vmax.f32 %v1164, %v1276
        %v1389 = vmax.f32 %v1165, %v1277
        %v1390 = vmax.f32 %v1166, %v1278
        %v1391 = vmax.f32 %v1167, %v1279
        %v1392 = vmax.f32 %v1168, %v1280
        %v1393 = vmax.f32 %v1169, %v1281
        %v1394 = vmax.f32 %v1170, %v1282
        %v1395 = vmax.f32 %v1171, %v1283
        %v1396 = vmax.f32 %v1172, %v1284
        %v1397 = vmax.f32 %v1173, %v1285
        %v1398 = vmax.f32 %v1174, %v1286
        %v1399 = vmax.f32 %v1175, %v1287
        %v1400 = vmax.f32 %v1176, %v1288
        %v1401 = vmax.f32 %v1177, %v1289
        %v1402 = vmax.f32 %v1178, %v1290
        %v1403 = vmax.f32 %v1179, %v1291
        %v1404 = vmax.f32 %v1180, %v1292
        %v1405 = vmax.f32 %v1181, %v1293
        %v1406 = vmax.f32 %v1182, %v1294
        %v1407 = vmax.f32 %v1183, %v1295
        %v1408 = vmax.f32 %v1184, %v1296
        %v1409 = vmax.f32 %v1185, %v1297
        %v1410 = vmax.f32 %v1186, %v1298
        %v1411 = vmax.f32 %v1187, %v1299
        %v1412 = vmax.f32 %v1188, %v1300
        %v1413 = vmax.f32 %v1189, %v1301
        %v1414 = vmax.f32 %v1190, %v1302
        %v1415 = vmax.f32 %v1191, %v1303
        %v1416 = vmax.f32 %v1192, %v1304
        %v1417 = vmax.f32 %v1193, %v1305
        %v1418 = vmax.f32 %v1194, %v1306
        %v1419 = vmax.f32 %v1195, %v1307
        %v1420 = vmax.f32 %v1196, %v1308
        %v1421 = vmax.f32 %v1197, %v1309
        %v1422 = vmax.f32 %v1198, %v1310
        %v1423 = vmax.f32 %v1199, %v1311
        %v1424 = vmax.f32 %v1200, %v1312
        %v1425 = vmax.f32 %v1201, %v1313
        %v1426 = vmax.f32 %v1202, %v1314
        %v1427 = vmax.f32 %v1203, %v1315
        %v1428 = vmax.f32 %v1204, %v1316
        %v1429 = vmax.f32 %v1205, %v1317
        %v1430 = vmax.f32 %v1206, %v1318
        %v1431 = vmax.f32 %v1207, %v1319
        %v1432 = vmax.f32 %v1208, %v1320
        %v1433 = vmax.f32 %v1209, %v1321
        %v1434 = vmax.f32 %v1210, %v1322
        %v1435 = vld [vmem:[#allocation2 + $0x2] sm:$0xff]
        %v1436 = vld [vmem:[#allocation2 + $0xa] sm:$0xff]
        %v1437 = vld [vmem:[#allocation2 + $0x12] sm:$0xff]
        %v1438 = vld [vmem:[#allocation2 + $0x1a] sm:$0x3f]
        %v1439 = vld [vmem:[#allocation2 + $0x22] sm:$0xff]
        %v1440 = vld [vmem:[#allocation2 + $0x2a] sm:$0xff]
        %v1441 = vld [vmem:[#allocation2 + $0x32] sm:$0xff]
        %v1442 = vld [vmem:[#allocation2 + $0x3a] sm:$0x3f]
        %v1443 = vld [vmem:[#allocation2 + $0x42] sm:$0xff]
        %v1444 = vld [vmem:[#allocation2 + $0x4a] sm:$0xff]
        %v1445 = vld [vmem:[#allocation2 + $0x52] sm:$0xff]
        %v1446 = vld [vmem:[#allocation2 + $0x5a] sm:$0x3f]
        %v1447 = vld [vmem:[#allocation2 + $0x62] sm:$0xff]
        %v1448 = vld [vmem:[#allocation2 + $0x6a] sm:$0xff]
        %v1449 = vld [vmem:[#allocation2 + $0x72] sm:$0xff]
        %v1450 = vld [vmem:[#allocation2 + $0x7a] sm:$0x3f]
        %v1451 = vld [vmem:[#allocation2 + $0x82] sm:$0xff]
        %v1452 = vld [vmem:[#allocation2 + $0x8a] sm:$0xff]
        %v1453 = vld [vmem:[#allocation2 + $0x92] sm:$0xff]
        %v1454 = vld [vmem:[#allocation2 + $0x9a] sm:$0x3f]
        %v1455 = vld [vmem:[#allocation2 + $0xa2] sm:$0xff]
        %v1456 = vld [vmem:[#allocation2 + $0xaa] sm:$0xff]
        %v1457 = vld [vmem:[#allocation2 + $0xb2] sm:$0xff]
        %v1458 = vld [vmem:[#allocation2 + $0xba] sm:$0x3f]
        %v1459 = vld [vmem:[#allocation2 + $0xc2] sm:$0xff]
        %v1460 = vld [vmem:[#allocation2 + $0xca] sm:$0xff]
        %v1461 = vld [vmem:[#allocation2 + $0xd2] sm:$0xff]
        %v1462 = vld [vmem:[#allocation2 + $0xda] sm:$0x3f]
        %v1463 = vld [vmem:[#allocation2 + $0xe2] sm:$0xff]
        %v1464 = vld [vmem:[#allocation2 + $0xea] sm:$0xff]
        %v1465 = vld [vmem:[#allocation2 + $0xf2] sm:$0xff]
        %v1466 = vld [vmem:[#allocation2 + $0xfa] sm:$0x3f]
        %v1467 = vld [vmem:[#allocation2 + $0x102] sm:$0xff]
        %v1468 = vld [vmem:[#allocation2 + $0x10a] sm:$0xff]
        %v1469 = vld [vmem:[#allocation2 + $0x112] sm:$0xff]
        %v1470 = vld [vmem:[#allocation2 + $0x11a] sm:$0x3f]
        %v1471 = vld [vmem:[#allocation2 + $0x122] sm:$0xff]
        %v1472 = vld [vmem:[#allocation2 + $0x12a] sm:$0xff]
        %v1473 = vld [vmem:[#allocation2 + $0x132] sm:$0xff]
        %v1474 = vld [vmem:[#allocation2 + $0x13a] sm:$0x3f]
        %v1475 = vld [vmem:[#allocation2 + $0x142] sm:$0xff]
        %v1476 = vld [vmem:[#allocation2 + $0x14a] sm:$0xff]
        %v1477 = vld [vmem:[#allocation2 + $0x152] sm:$0xff]
        %v1478 = vld [vmem:[#allocation2 + $0x15a] sm:$0x3f]
        %v1479 = vld [vmem:[#allocation2 + $0x162] sm:$0xff]
        %v1480 = vld [vmem:[#allocation2 + $0x16a] sm:$0xff]
        %v1481 = vld [vmem:[#allocation2 + $0x172] sm:$0xff]
        %v1482 = vld [vmem:[#allocation2 + $0x17a] sm:$0x3f]
        %v1483 = vld [vmem:[#allocation2 + $0x182] sm:$0xff]
        %v1484 = vld [vmem:[#allocation2 + $0x18a] sm:$0xff]
        %v1485 = vld [vmem:[#allocation2 + $0x192] sm:$0xff]
        %v1486 = vld [vmem:[#allocation2 + $0x19a] sm:$0x3f]
        %v1487 = vld [vmem:[#allocation2 + $0x1a2] sm:$0xff]
        %v1488 = vld [vmem:[#allocation2 + $0x1aa] sm:$0xff]
        %v1489 = vld [vmem:[#allocation2 + $0x1b2] sm:$0xff]
        %v1490 = vld [vmem:[#allocation2 + $0x1ba] sm:$0x3f]
        %v1491 = vld [vmem:[#allocation2 + $0x1c2] sm:$0xff]
        %v1492 = vld [vmem:[#allocation2 + $0x1ca] sm:$0xff]
        %v1493 = vld [vmem:[#allocation2 + $0x1d2] sm:$0xff]
        %v1494 = vld [vmem:[#allocation2 + $0x1da] sm:$0x3f]
        %v1495 = vld [vmem:[#allocation2 + $0x1e2] sm:$0xff]
        %v1496 = vld [vmem:[#allocation2 + $0x1ea] sm:$0xff]
        %v1497 = vld [vmem:[#allocation2 + $0x1f2] sm:$0xff]
        %v1498 = vld [vmem:[#allocation2 + $0x1fa] sm:$0x3f]
        %v1499 = vld [vmem:[#allocation2 + $0x202] sm:$0xff]
        %v1500 = vld [vmem:[#allocation2 + $0x20a] sm:$0xff]
        %v1501 = vld [vmem:[#allocation2 + $0x212] sm:$0xff]
        %v1502 = vld [vmem:[#allocation2 + $0x21a] sm:$0x3f]
        %v1503 = vld [vmem:[#allocation2 + $0x222] sm:$0xff]
        %v1504 = vld [vmem:[#allocation2 + $0x22a] sm:$0xff]
        %v1505 = vld [vmem:[#allocation2 + $0x232] sm:$0xff]
        %v1506 = vld [vmem:[#allocation2 + $0x23a] sm:$0x3f]
        %v1507 = vld [vmem:[#allocation2 + $0x242] sm:$0xff]
        %v1508 = vld [vmem:[#allocation2 + $0x24a] sm:$0xff]
        %v1509 = vld [vmem:[#allocation2 + $0x252] sm:$0xff]
        %v1510 = vld [vmem:[#allocation2 + $0x25a] sm:$0x3f]
        %v1511 = vld [vmem:[#allocation2 + $0x262] sm:$0xff]
        %v1512 = vld [vmem:[#allocation2 + $0x26a] sm:$0xff]
        %v1513 = vld [vmem:[#allocation2 + $0x272] sm:$0xff]
        %v1514 = vld [vmem:[#allocation2 + $0x27a] sm:$0x3f]
        %v1515 = vld [vmem:[#allocation2 + $0x282] sm:$0xff]
        %v1516 = vld [vmem:[#allocation2 + $0x28a] sm:$0xff]
        %v1517 = vld [vmem:[#allocation2 + $0x292] sm:$0xff]
        %v1518 = vld [vmem:[#allocation2 + $0x29a] sm:$0x3f]
        %v1519 = vld [vmem:[#allocation2 + $0x2a2] sm:$0xff]
        %v1520 = vld [vmem:[#allocation2 + $0x2aa] sm:$0xff]
        %v1521 = vld [vmem:[#allocation2 + $0x2b2] sm:$0xff]
        %v1522 = vld [vmem:[#allocation2 + $0x2ba] sm:$0x3f]
        %v1523 = vld [vmem:[#allocation2 + $0x2c2] sm:$0xff]
        %v1524 = vld [vmem:[#allocation2 + $0x2ca] sm:$0xff]
        %v1525 = vld [vmem:[#allocation2 + $0x2d2] sm:$0xff]
        %v1526 = vld [vmem:[#allocation2 + $0x2da] sm:$0x3f]
        %v1527 = vld [vmem:[#allocation2 + $0x2e2] sm:$0xff]
        %v1528 = vld [vmem:[#allocation2 + $0x2ea] sm:$0xff]
        %v1529 = vld [vmem:[#allocation2 + $0x2f2] sm:$0xff]
        %v1530 = vld [vmem:[#allocation2 + $0x2fa] sm:$0x3f]
        %v1531 = vld [vmem:[#allocation2 + $0x302] sm:$0xff]
        %v1532 = vld [vmem:[#allocation2 + $0x30a] sm:$0xff]
        %v1533 = vld [vmem:[#allocation2 + $0x312] sm:$0xff]
        %v1534 = vld [vmem:[#allocation2 + $0x31a] sm:$0x3f]
        %v1535 = vld [vmem:[#allocation2 + $0x322] sm:$0xff]
        %v1536 = vld [vmem:[#allocation2 + $0x32a] sm:$0xff]
        %v1537 = vld [vmem:[#allocation2 + $0x332] sm:$0xff]
        %v1538 = vld [vmem:[#allocation2 + $0x33a] sm:$0x3f]
        %v1539 = vld [vmem:[#allocation2 + $0x342] sm:$0xff]
        %v1540 = vld [vmem:[#allocation2 + $0x34a] sm:$0xff]
        %v1541 = vld [vmem:[#allocation2 + $0x352] sm:$0xff]
        %v1542 = vld [vmem:[#allocation2 + $0x35a] sm:$0x3f]
        %v1543 = vld [vmem:[#allocation2 + $0x362] sm:$0xff]
        %v1544 = vld [vmem:[#allocation2 + $0x36a] sm:$0xff]
        %v1545 = vld [vmem:[#allocation2 + $0x372] sm:$0xff]
        %v1546 = vld [vmem:[#allocation2 + $0x37a] sm:$0x3f]
        %v1547 = vmax.f32 %v1323, %v1435
        %v1548 = vmax.f32 %v1324, %v1436
        %v1549 = vmax.f32 %v1325, %v1437
        %v1550 = vmax.f32 %v1326, %v1438
        %v1551 = vmax.f32 %v1327, %v1439
        %v1552 = vmax.f32 %v1328, %v1440
        %v1553 = vmax.f32 %v1329, %v1441
        %v1554 = vmax.f32 %v1330, %v1442
        %v1555 = vmax.f32 %v1331, %v1443
        %v1556 = vmax.f32 %v1332, %v1444
        %v1557 = vmax.f32 %v1333, %v1445
        %v1558 = vmax.f32 %v1334, %v1446
        %v1559 = vmax.f32 %v1335, %v1447
        %v1560 = vmax.f32 %v1336, %v1448
        %v1561 = vmax.f32 %v1337, %v1449
        %v1562 = vmax.f32 %v1338, %v1450
        %v1563 = vmax.f32 %v1339, %v1451
        %v1564 = vmax.f32 %v1340, %v1452
        %v1565 = vmax.f32 %v1341, %v1453
        %v1566 = vmax.f32 %v1342, %v1454
        %v1567 = vmax.f32 %v1343, %v1455
        %v1568 = vmax.f32 %v1344, %v1456
        %v1569 = vmax.f32 %v1345, %v1457
        %v1570 = vmax.f32 %v1346, %v1458
        %v1571 = vmax.f32 %v1347, %v1459
        %v1572 = vmax.f32 %v1348, %v1460
        %v1573 = vmax.f32 %v1349, %v1461
        %v1574 = vmax.f32 %v1350, %v1462
        %v1575 = vmax.f32 %v1351, %v1463
        %v1576 = vmax.f32 %v1352, %v1464
        %v1577 = vmax.f32 %v1353, %v1465
        %v1578 = vmax.f32 %v1354, %v1466
        %v1579 = vmax.f32 %v1355, %v1467
        %v1580 = vmax.f32 %v1356, %v1468
        %v1581 = vmax.f32 %v1357, %v1469
        %v1582 = vmax.f32 %v1358, %v1470
        %v1583 = vmax.f32 %v1359, %v1471
        %v1584 = vmax.f32 %v1360, %v1472
        %v1585 = vmax.f32 %v1361, %v1473
        %v1586 = vmax.f32 %v1362, %v1474
        %v1587 = vmax.f32 %v1363, %v1475
        %v1588 = vmax.f32 %v1364, %v1476
        %v1589 = vmax.f32 %v1365, %v1477
        %v1590 = vmax.f32 %v1366, %v1478
        %v1591 = vmax.f32 %v1367, %v1479
        %v1592 = vmax.f32 %v1368, %v1480
        %v1593 = vmax.f32 %v1369, %v1481
        %v1594 = vmax.f32 %v1370, %v1482
        %v1595 = vmax.f32 %v1371, %v1483
        %v1596 = vmax.f32 %v1372, %v1484
        %v1597 = vmax.f32 %v1373, %v1485
        %v1598 = vmax.f32 %v1374, %v1486
        %v1599 = vmax.f32 %v1375, %v1487
        %v1600 = vmax.f32 %v1376, %v1488
        %v1601 = vmax.f32 %v1377, %v1489
        %v1602 = vmax.f32 %v1378, %v1490
        %v1603 = vmax.f32 %v1379, %v1491
        %v1604 = vmax.f32 %v1380, %v1492
        %v1605 = vmax.f32 %v1381, %v1493
        %v1606 = vmax.f32 %v1382, %v1494
        %v1607 = vmax.f32 %v1383, %v1495
        %v1608 = vmax.f32 %v1384, %v1496
        %v1609 = vmax.f32 %v1385, %v1497
        %v1610 = vmax.f32 %v1386, %v1498
        %v1611 = vmax.f32 %v1387, %v1499
        %v1612 = vmax.f32 %v1388, %v1500
        %v1613 = vmax.f32 %v1389, %v1501
        %v1614 = vmax.f32 %v1390, %v1502
        %v1615 = vmax.f32 %v1391, %v1503
        %v1616 = vmax.f32 %v1392, %v1504
        %v1617 = vmax.f32 %v1393, %v1505
        %v1618 = vmax.f32 %v1394, %v1506
        %v1619 = vmax.f32 %v1395, %v1507
        %v1620 = vmax.f32 %v1396, %v1508
        %v1621 = vmax.f32 %v1397, %v1509
        %v1622 = vmax.f32 %v1398, %v1510
        %v1623 = vmax.f32 %v1399, %v1511
        %v1624 = vmax.f32 %v1400, %v1512
        %v1625 = vmax.f32 %v1401, %v1513
        %v1626 = vmax.f32 %v1402, %v1514
        %v1627 = vmax.f32 %v1403, %v1515
        %v1628 = vmax.f32 %v1404, %v1516
        %v1629 = vmax.f32 %v1405, %v1517
        %v1630 = vmax.f32 %v1406, %v1518
        %v1631 = vmax.f32 %v1407, %v1519
        %v1632 = vmax.f32 %v1408, %v1520
        %v1633 = vmax.f32 %v1409, %v1521
        %v1634 = vmax.f32 %v1410, %v1522
        %v1635 = vmax.f32 %v1411, %v1523
        %v1636 = vmax.f32 %v1412, %v1524
        %v1637 = vmax.f32 %v1413, %v1525
        %v1638 = vmax.f32 %v1414, %v1526
        %v1639 = vmax.f32 %v1415, %v1527
        %v1640 = vmax.f32 %v1416, %v1528
        %v1641 = vmax.f32 %v1417, %v1529
        %v1642 = vmax.f32 %v1418, %v1530
        %v1643 = vmax.f32 %v1419, %v1531
        %v1644 = vmax.f32 %v1420, %v1532
        %v1645 = vmax.f32 %v1421, %v1533
        %v1646 = vmax.f32 %v1422, %v1534
        %v1647 = vmax.f32 %v1423, %v1535
        %v1648 = vmax.f32 %v1424, %v1536
        %v1649 = vmax.f32 %v1425, %v1537
        %v1650 = vmax.f32 %v1426, %v1538
        %v1651 = vmax.f32 %v1427, %v1539
        %v1652 = vmax.f32 %v1428, %v1540
        %v1653 = vmax.f32 %v1429, %v1541
        %v1654 = vmax.f32 %v1430, %v1542
        %v1655 = vmax.f32 %v1431, %v1543
        %v1656 = vmax.f32 %v1432, %v1544
        %v1657 = vmax.f32 %v1433, %v1545
        %v1658 = vmax.f32 %v1434, %v1546
        %vm1771 = vcmask 1045504
        %v1772 = vrot.slane %v1547, 2
        %v1773 = vrot.slane %v1548, 2
        %v1774 = vsel %vm1771, %v1772, %v1773
        %v1775 = vrot.slane %v1549, 2
        %v1776 = vsel %vm1771, %v1773, %v1775
        %v1777 = vrot.slane %v1550, 2
        %v1778 = vsel %vm1771, %v1775, %v1777
        %v1779 = vrot.slane %v1551, 2
        %v1780 = vrot.slane %v1552, 2
        %v1781 = vsel %vm1771, %v1779, %v1780
        %v1782 = vrot.slane %v1553, 2
        %v1783 = vsel %vm1771, %v1780, %v1782
        %v1784 = vrot.slane %v1554, 2
        %v1785 = vsel %vm1771, %v1782, %v1784
        %v1786 = vrot.slane %v1555, 2
        %v1787 = vrot.slane %v1556, 2
        %v1788 = vsel %vm1771, %v1786, %v1787
        %v1789 = vrot.slane %v1557, 2
        %v1790 = vsel %vm1771, %v1787, %v1789
        %v1791 = vrot.slane %v1558, 2
        %v1792 = vsel %vm1771, %v1789, %v1791
        %v1793 = vrot.slane %v1559, 2
        %v1794 = vrot.slane %v1560, 2
        %v1795 = vsel %vm1771, %v1793, %v1794
        %v1796 = vrot.slane %v1561, 2
        %v1797 = vsel %vm1771, %v1794, %v1796
        %v1798 = vrot.slane %v1562, 2
        %v1799 = vsel %vm1771, %v1796, %v1798
        %v1800 = vrot.slane %v1563, 2
        %v1801 = vrot.slane %v1564, 2
        %v1802 = vsel %vm1771, %v1800, %v1801
        %v1803 = vrot.slane %v1565, 2
        %v1804 = vsel %vm1771, %v1801, %v1803
        %v1805 = vrot.slane %v1566, 2
        %v1806 = vsel %vm1771, %v1803, %v1805
        %v1807 = vrot.slane %v1567, 2
        %v1808 = vrot.slane %v1568, 2
        %v1809 = vsel %vm1771, %v1807, %v1808
        %v1810 = vrot.slane %v1569, 2
        %v1811 = vsel %vm1771, %v1808, %v1810
        %v1812 = vrot.slane %v1570, 2
        %v1813 = vsel %vm1771, %v1810, %v1812
        %v1814 = vrot.slane %v1571, 2
        %v1815 = vrot.slane %v1572, 2
        %v1816 = vsel %vm1771, %v1814, %v1815
        %v1817 = vrot.slane %v1573, 2
        %v1818 = vsel %vm1771, %v1815, %v1817
        %v1819 = vrot.slane %v1574, 2
        %v1820 = vsel %vm1771, %v1817, %v1819
        %v1821 = vrot.slane %v1575, 2
        %v1822 = vrot.slane %v1576, 2
        %v1823 = vsel %vm1771, %v1821, %v1822
        %v1824 = vrot.slane %v1577, 2
        %v1825 = vsel %vm1771, %v1822, %v1824
        %v1826 = vrot.slane %v1578, 2
        %v1827 = vsel %vm1771, %v1824, %v1826
        %v1828 = vrot.slane %v1579, 2
        %v1829 = vrot.slane %v1580, 2
        %v1830 = vsel %vm1771, %v1828, %v1829
        %v1831 = vrot.slane %v1581, 2
        %v1832 = vsel %vm1771, %v1829, %v1831
        %v1833 = vrot.slane %v1582, 2
        %v1834 = vsel %vm1771, %v1831, %v1833
        %v1835 = vrot.slane %v1583, 2
        %v1836 = vrot.slane %v1584, 2
        %v1837 = vsel %vm1771, %v1835, %v1836
        %v1838 = vrot.slane %v1585, 2
        %v1839 = vsel %vm1771, %v1836, %v1838
        %v1840 = vrot.slane %v1586, 2
        %v1841 = vsel %vm1771, %v1838, %v1840
        %v1842 = vrot.slane %v1587, 2
        %v1843 = vrot.slane %v1588, 2
        %v1844 = vsel %vm1771, %v1842, %v1843
        %v1845 = vrot.slane %v1589, 2
        %v1846 = vsel %vm1771, %v1843, %v1845
        %v1847 = vrot.slane %v1590, 2
        %v1848 = vsel %vm1771, %v1845, %v1847
        %v1849 = vrot.slane %v1591, 2
        %v1850 = vrot.slane %v1592, 2
        %v1851 = vsel %vm1771, %v1849, %v1850
        %v1852 = vrot.slane %v1593, 2
        %v1853 = vsel %vm1771, %v1850, %v1852
        %v1854 = vrot.slane %v1594, 2
        %v1855 = vsel %vm1771, %v1852, %v1854
        %v1856 = vrot.slane %v1595, 2
        %v1857 = vrot.slane %v1596, 2
        %v1858 = vsel %vm1771, %v1856, %v1857
        %v1859 = vrot.slane %v1597, 2
        %v1860 = vsel %vm1771, %v1857, %v1859
        %v1861 = vrot.slane %v1598, 2
        %v1862 = vsel %vm1771, %v1859, %v1861
        %v1863 = vrot.slane %v1599, 2
        %v1864 = vrot.slane %v1600, 2
        %v1865 = vsel %vm1771, %v1863, %v1864
        %v1866 = vrot.slane %v1601, 2
        %v1867 = vsel %vm1771, %v1864, %v1866
        %v1868 = vrot.slane %v1602, 2
        %v1869 = vsel %vm1771, %v1866, %v1868
        %v1870 = vrot.slane %v1603, 2
        %v1871 = vrot.slane %v1604, 2
        %v1872 = vsel %vm1771, %v1870, %v1871
        %v1873 = vrot.slane %v1605, 2
        %v1874 = vsel %vm1771, %v1871, %v1873
        %v1875 = vrot.slane %v1606, 2
        %v1876 = vsel %vm1771, %v1873, %v1875
        %v1877 = vrot.slane %v1607, 2
        %v1878 = vrot.slane %v1608, 2
        %v1879 = vsel %vm1771, %v1877, %v1878
        %v1880 = vrot.slane %v1609, 2
        %v1881 = vsel %vm1771, %v1878, %v1880
        %v1882 = vrot.slane %v1610, 2
        %v1883 = vsel %vm1771, %v1880, %v1882
        %v1884 = vrot.slane %v1611, 2
        %v1885 = vrot.slane %v1612, 2
        %v1886 = vsel %vm1771, %v1884, %v1885
        %v1887 = vrot.slane %v1613, 2
        %v1888 = vsel %vm1771, %v1885, %v1887
        %v1889 = vrot.slane %v1614, 2
        %v1890 = vsel %vm1771, %v1887, %v1889
        %v1891 = vrot.slane %v1615, 2
        %v1892 = vrot.slane %v1616, 2
        %v1893 = vsel %vm1771, %v1891, %v1892
        %v1894 = vrot.slane %v1617, 2
        %v1895 = vsel %vm1771, %v1892, %v1894
        %v1896 = vrot.slane %v1618, 2
        %v1897 = vsel %vm1771, %v1894, %v1896
        %v1898 = vrot.slane %v1619, 2
        %v1899 = vrot.slane %v1620, 2
        %v1900 = vsel %vm1771, %v1898, %v1899
        %v1901 = vrot.slane %v1621, 2
        %v1902 = vsel %vm1771, %v1899, %v1901
        %v1903 = vrot.slane %v1622, 2
        %v1904 = vsel %vm1771, %v1901, %v1903
        %v1905 = vrot.slane %v1623, 2
        %v1906 = vrot.slane %v1624, 2
        %v1907 = vsel %vm1771, %v1905, %v1906
        %v1908 = vrot.slane %v1625, 2
        %v1909 = vsel %vm1771, %v1906, %v1908
        %v1910 = vrot.slane %v1626, 2
        %v1911 = vsel %vm1771, %v1908, %v1910
        %v1912 = vrot.slane %v1627, 2
        %v1913 = vrot.slane %v1628, 2
        %v1914 = vsel %vm1771, %v1912, %v1913
        %v1915 = vrot.slane %v1629, 2
        %v1916 = vsel %vm1771, %v1913, %v1915
        %v1917 = vrot.slane %v1630, 2
        %v1918 = vsel %vm1771, %v1915, %v1917
        %v1919 = vrot.slane %v1631, 2
        %v1920 = vrot.slane %v1632, 2
        %v1921 = vsel %vm1771, %v1919, %v1920
        %v1922 = vrot.slane %v1633, 2
        %v1923 = vsel %vm1771, %v1920, %v1922
        %v1924 = vrot.slane %v1634, 2
        %v1925 = vsel %vm1771, %v1922, %v1924
        %v1926 = vrot.slane %v1635, 2
        %v1927 = vrot.slane %v1636, 2
        %v1928 = vsel %vm1771, %v1926, %v1927
        %v1929 = vrot.slane %v1637, 2
        %v1930 = vsel %vm1771, %v1927, %v1929
        %v1931 = vrot.slane %v1638, 2
        %v1932 = vsel %vm1771, %v1929, %v1931
        %v1933 = vrot.slane %v1639, 2
        %v1934 = vrot.slane %v1640, 2
        %v1935 = vsel %vm1771, %v1933, %v1934
        %v1936 = vrot.slane %v1641, 2
        %v1937 = vsel %vm1771, %v1934, %v1936
        %v1938 = vrot.slane %v1642, 2
        %v1939 = vsel %vm1771, %v1936, %v1938
        %v1940 = vrot.slane %v1643, 2
        %v1941 = vrot.slane %v1644, 2
        %v1942 = vsel %vm1771, %v1940, %v1941
        %v1943 = vrot.slane %v1645, 2
        %v1944 = vsel %vm1771, %v1941, %v1943
        %v1945 = vrot.slane %v1646, 2
        %v1946 = vsel %vm1771, %v1943, %v1945
        %v1947 = vrot.slane %v1647, 2
        %v1948 = vrot.slane %v1648, 2
        %v1949 = vsel %vm1771, %v1947, %v1948
        %v1950 = vrot.slane %v1649, 2
        %v1951 = vsel %vm1771, %v1948, %v1950
        %v1952 = vrot.slane %v1650, 2
        %v1953 = vsel %vm1771, %v1950, %v1952
        %v1954 = vrot.slane %v1651, 2
        %v1955 = vrot.slane %v1652, 2
        %v1956 = vsel %vm1771, %v1954, %v1955
        %v1957 = vrot.slane %v1653, 2
        %v1958 = vsel %vm1771, %v1955, %v1957
        %v1959 = vrot.slane %v1654, 2
        %v1960 = vsel %vm1771, %v1957, %v1959
        %v1961 = vrot.slane %v1655, 2
        %v1962 = vrot.slane %v1656, 2
        %v1963 = vsel %vm1771, %v1961, %v1962
        %v1964 = vrot.slane %v1657, 2
        %v1965 = vsel %vm1771, %v1962, %v1964
        %v1966 = vrot.slane %v1658, 2
        %v1967 = vsel %vm1771, %v1964, %v1966
        %v2080 = vmax.f32 %v1547, %v1774
        %v2081 = vmax.f32 %v1548, %v1776
        %v2082 = vmax.f32 %v1549, %v1778
        %v2083 = vmax.f32 %v1550, %v1777
        %v2084 = vmax.f32 %v1551, %v1781
        %v2085 = vmax.f32 %v1552, %v1783
        %v2086 = vmax.f32 %v1553, %v1785
        %v2087 = vmax.f32 %v1554, %v1784
        %v2088 = vmax.f32 %v1555, %v1788
        %v2089 = vmax.f32 %v1556, %v1790
        %v2090 = vmax.f32 %v1557, %v1792
        %v2091 = vmax.f32 %v1558, %v1791
        %v2092 = vmax.f32 %v1559, %v1795
        %v2093 = vmax.f32 %v1560, %v1797
        %v2094 = vmax.f32 %v1561, %v1799
        %v2095 = vmax.f32 %v1562, %v1798
        %v2096 = vmax.f32 %v1563, %v1802
        %v2097 = vmax.f32 %v1564, %v1804
        %v2098 = vmax.f32 %v1565, %v1806
        %v2099 = vmax.f32 %v1566, %v1805
        %v2100 = vmax.f32 %v1567, %v1809
        %v2101 = vmax.f32 %v1568, %v1811
        %v2102 = vmax.f32 %v1569, %v1813
        %v2103 = vmax.f32 %v1570, %v1812
        %v2104 = vmax.f32 %v1571, %v1816
        %v2105 = vmax.f32 %v1572, %v1818
        %v2106 = vmax.f32 %v1573, %v1820
        %v2107 = vmax.f32 %v1574, %v1819
        %v2108 = vmax.f32 %v1575, %v1823
        %v2109 = vmax.f32 %v1576, %v1825
        %v2110 = vmax.f32 %v1577, %v1827
        %v2111 = vmax.f32 %v1578, %v1826
        %v2112 = vmax.f32 %v1579, %v1830
        %v2113 = vmax.f32 %v1580, %v1832
        %v2114 = vmax.f32 %v1581, %v1834
        %v2115 = vmax.f32 %v1582, %v1833
        %v2116 = vmax.f32 %v1583, %v1837
        %v2117 = vmax.f32 %v1584, %v1839
        %v2118 = vmax.f32 %v1585, %v1841
        %v2119 = vmax.f32 %v1586, %v1840
        %v2120 = vmax.f32 %v1587, %v1844
        %v2121 = vmax.f32 %v1588, %v1846
        %v2122 = vmax.f32 %v1589, %v1848
        %v2123 = vmax.f32 %v1590, %v1847
        %v2124 = vmax.f32 %v1591, %v1851
        %v2125 = vmax.f32 %v1592, %v1853
        %v2126 = vmax.f32 %v1593, %v1855
        %v2127 = vmax.f32 %v1594, %v1854
        %v2128 = vmax.f32 %v1595, %v1858
        %v2129 = vmax.f32 %v1596, %v1860
        %v2130 = vmax.f32 %v1597, %v1862
        %v2131 = vmax.f32 %v1598, %v1861
        %v2132 = vmax.f32 %v1599, %v1865
        %v2133 = vmax.f32 %v1600, %v1867
        %v2134 = vmax.f32 %v1601, %v1869
        %v2135 = vmax.f32 %v1602, %v1868
        %v2136 = vmax.f32 %v1603, %v1872
        %v2137 = vmax.f32 %v1604, %v1874
        %v2138 = vmax.f32 %v1605, %v1876
        %v2139 = vmax.f32 %v1606, %v1875
        %v2140 = vmax.f32 %v1607, %v1879
        %v2141 = vmax.f32 %v1608, %v1881
        %v2142 = vmax.f32 %v1609, %v1883
        %v2143 = vmax.f32 %v1610, %v1882
        %v2144 = vmax.f32 %v1611, %v1886
        %v2145 = vmax.f32 %v1612, %v1888
        %v2146 = vmax.f32 %v1613, %v1890
        %v2147 = vmax.f32 %v1614, %v1889
        %v2148 = vmax.f32 %v1615, %v1893
        %v2149 = vmax.f32 %v1616, %v1895
        %v2150 = vmax.f32 %v1617, %v1897
        %v2151 = vmax.f32 %v1618, %v1896
        %v2152 = vmax.f32 %v1619, %v1900
        %v2153 = vmax.f32 %v1620, %v1902
        %v2154 = vmax.f32 %v1621, %v1904
        %v2155 = vmax.f32 %v1622, %v1903
        %v2156 = vmax.f32 %v1623, %v1907
        %v2157 = vmax.f32 %v1624, %v1909
        %v2158 = vmax.f32 %v1625, %v1911
        %v2159 = vmax.f32 %v1626, %v1910
        %v2160 = vmax.f32 %v1627, %v1914
        %v2161 = vmax.f32 %v1628, %v1916
        %v2162 = vmax.f32 %v1629, %v1918
        %v2163 = vmax.f32 %v1630, %v1917
        %v2164 = vmax.f32 %v1631, %v1921
        %v2165 = vmax.f32 %v1632, %v1923
        %v2166 = vmax.f32 %v1633, %v1925
        %v2167 = vmax.f32 %v1634, %v1924
        %v2168 = vmax.f32 %v1635, %v1928
        %v2169 = vmax.f32 %v1636, %v1930
        %v2170 = vmax.f32 %v1637, %v1932
        %v2171 = vmax.f32 %v1638, %v1931
        %v2172 = vmax.f32 %v1639, %v1935
        %v2173 = vmax.f32 %v1640, %v1937
        %v2174 = vmax.f32 %v1641, %v1939
        %v2175 = vmax.f32 %v1642, %v1938
        %v2176 = vmax.f32 %v1643, %v1942
        %v2177 = vmax.f32 %v1644, %v1944
        %v2178 = vmax.f32 %v1645, %v1946
        %v2179 = vmax.f32 %v1646, %v1945
        %v2180 = vmax.f32 %v1647, %v1949
        %v2181 = vmax.f32 %v1648, %v1951
        %v2182 = vmax.f32 %v1649, %v1953
        %v2183 = vmax.f32 %v1650, %v1952
        %v2184 = vmax.f32 %v1651, %v1956
        %v2185 = vmax.f32 %v1652, %v1958
        %v2186 = vmax.f32 %v1653, %v1960
        %v2187 = vmax.f32 %v1654, %v1959
        %v2188 = vmax.f32 %v1655, %v1963
        %v2189 = vmax.f32 %v1656, %v1965
        %v2190 = vmax.f32 %v1657, %v1967
        %v2191 = vmax.f32 %v1658, %v1966
        %v2192 = vmax.f32 %v2096, %v2100
        %v2193 = vmax.f32 %v2097, %v2101
        %v2194 = vmax.f32 %v2098, %v2102
        %v2195 = vmax.f32 %v2100, %v2104
        %v2196 = vmax.f32 %v2101, %v2105
        %v2197 = vmax.f32 %v2102, %v2106
        %v2198 = vmax.f32 %v2104, %v2108
        %v2199 = vmax.f32 %v2105, %v2109
        %v2200 = vmax.f32 %v2106, %v2110
        %v2201 = vmax.f32 %v2108, %v2112
        %v2202 = vmax.f32 %v2109, %v2113
        %v2203 = vmax.f32 %v2110, %v2114
        %v2204 = vmax.f32 %v2112, %v2116
        %v2205 = vmax.f32 %v2113, %v2117
        %v2206 = vmax.f32 %v2114, %v2118
        %v2207 = vmax.f32 %v2116, %v2120
        %v2208 = vmax.f32 %v2117, %v2121
        %v2209 = vmax.f32 %v2118, %v2122
        %v2210 = vmax.f32 %v2120, %v2124
        %v2211 = vmax.f32 %v2121, %v2125
        %v2212 = vmax.f32 %v2122, %v2126
        %v2213 = vmax.f32 %v2124, %v2128
        %v2214 = vmax.f32 %v2125, %v2129
        %v2215 = vmax.f32 %v2126, %v2130
        %v2216 = vmax.f32 %v2128, %v2132
        %v2217 = vmax.f32 %v2129, %v2133
        %v2218 = vmax.f32 %v2130, %v2134
        %v2219 = vmax.f32 %v2132, %v2136
        %v2220 = vmax.f32 %v2133, %v2137
        %v2221 = vmax.f32 %v2134, %v2138
        %v2222 = vmax.f32 %v2136, %v2140
        %v2223 = vmax.f32 %v2137, %v2141
        %v2224 = vmax.f32 %v2138, %v2142
        %v2225 = vmax.f32 %v2140, %v2144
        %v2226 = vmax.f32 %v2141, %v2145
        %v2227 = vmax.f32 %v2142, %v2146
        %v2228 = vmax.f32 %v2144, %v2148
        %v2229 = vmax.f32 %v2145, %v2149
        %v2230 = vmax.f32 %v2146, %v2150
        %v2231 = vmax.f32 %v2148, %v2152
        %v2232 = vmax.f32 %v2149, %v2153
        %v2233 = vmax.f32 %v2150, %v2154
        %v2234 = vmax.f32 %v2152, %v2156
        %v2235 = vmax.f32 %v2153, %v2157
        %v2236 = vmax.f32 %v2154, %v2158
        %v2237 = vmax.f32 %v2156, %v2160
        %v2238 = vmax.f32 %v2157, %v2161
        %v2239 = vmax.f32 %v2158, %v2162
        %v2240 = vmax.f32 %v2160, %v2164
        %v2241 = vmax.f32 %v2161, %v2165
        %v2242 = vmax.f32 %v2162, %v2166
        %v2243 = vmax.f32 %v2164, %v2168
        %v2244 = vmax.f32 %v2165, %v2169
        %v2245 = vmax.f32 %v2166, %v2170
        %v2246 = vmax.f32 %v2192, %v2104
        %v2247 = vmax.f32 %v2193, %v2105
        %v2248 = vmax.f32 %v2194, %v2106
        %v2249 = vmax.f32 %v2195, %v2108
        %v2250 = vmax.f32 %v2196, %v2109
        %v2251 = vmax.f32 %v2197, %v2110
        %v2252 = vmax.f32 %v2198, %v2112
        %v2253 = vmax.f32 %v2199, %v2113
        %v2254 = vmax.f32 %v2200, %v2114
        %v2255 = vmax.f32 %v2201, %v2116
        %v2256 = vmax.f32 %v2202, %v2117
        %v2257 = vmax.f32 %v2203, %v2118
        %v2258 = vmax.f32 %v2204, %v2120
        %v2259 = vmax.f32 %v2205, %v2121
        %v2260 = vmax.f32 %v2206, %v2122
        %v2261 = vmax.f32 %v2207, %v2124
        %v2262 = vmax.f32 %v2208, %v2125
        %v2263 = vmax.f32 %v2209, %v2126
        %v2264 = vmax.f32 %v2210, %v2128
        %v2265 = vmax.f32 %v2211, %v2129
        %v2266 = vmax.f32 %v2212, %v2130
        %v2267 = vmax.f32 %v2213, %v2132
        %v2268 = vmax.f32 %v2214, %v2133
        %v2269 = vmax.f32 %v2215, %v2134
        %v2270 = vmax.f32 %v2216, %v2136
        %v2271 = vmax.f32 %v2217, %v2137
        %v2272 = vmax.f32 %v2218, %v2138
        %v2273 = vmax.f32 %v2219, %v2140
        %v2274 = vmax.f32 %v2220, %v2141
        %v2275 = vmax.f32 %v2221, %v2142
        %v2276 = vmax.f32 %v2222, %v2144
        %v2277 = vmax.f32 %v2223, %v2145
        %v2278 = vmax.f32 %v2224, %v2146
        %v2279 = vmax.f32 %v2225, %v2148
        %v2280 = vmax.f32 %v2226, %v2149
        %v2281 = vmax.f32 %v2227, %v2150
        %v2282 = vmax.f32 %v2228, %v2152
        %v2283 = vmax.f32 %v2229, %v2153
        %v2284 = vmax.f32 %v2230, %v2154
        %v2285 = vmax.f32 %v2231, %v2156
        %v2286 = vmax.f32 %v2232, %v2157
        %v2287 = vmax.f32 %v2233, %v2158
        %v2288 = vmax.f32 %v2234, %v2160
        %v2289 = vmax.f32 %v2235, %v2161
        %v2290 = vmax.f32 %v2236, %v2162
        %v2291 = vmax.f32 %v2237, %v2164
        %v2292 = vmax.f32 %v2238, %v2165
        %v2293 = vmax.f32 %v2239, %v2166
        %v2294 = vmax.f32 %v2240, %v2168
        %v2295 = vmax.f32 %v2241, %v2169
        %v2296 = vmax.f32 %v2242, %v2170
        %v2297 = vmax.f32 %v2243, %v2172
        %v2298 = vmax.f32 %v2244, %v2173
        %v2299 = vmax.f32 %v2245, %v2174
        %v2300 = vmax.f32 %v2246, %v2252
        %v2301 = vmax.f32 %v2247, %v2253
        %v2302 = vmax.f32 %v2248, %v2254
        %v2303 = vmax.f32 %v2249, %v2255
        %v2304 = vmax.f32 %v2250, %v2256
        %v2305 = vmax.f32 %v2251, %v2257
        %v2306 = vmax.f32 %v2252, %v2258
        %v2307 = vmax.f32 %v2253, %v2259
        %v2308 = vmax.f32 %v2254, %v2260
        %v2309 = vmax.f32 %v2255, %v2261
        %v2310 = vmax.f32 %v2256, %v2262
        %v2311 = vmax.f32 %v2257, %v2263
        %v2312 = vmax.f32 %v2258, %v2264
        %v2313 = vmax.f32 %v2259, %v2265
        %v2314 = vmax.f32 %v2260, %v2266
        %v2315 = vmax.f32 %v2261, %v2267
        %v2316 = vmax.f32 %v2262, %v2268
        %v2317 = vmax.f32 %v2263, %v2269
        %v2318 = vmax.f32 %v2264, %v2270
        %v2319 = vmax.f32 %v2265, %v2271
        %v2320 = vmax.f32 %v2266, %v2272
        %v2321 = vmax.f32 %v2267, %v2273
        %v2322 = vmax.f32 %v2268, %v2274
        %v2323 = vmax.f32 %v2269, %v2275
        %v2324 = vmax.f32 %v2270, %v2276
        %v2325 = vmax.f32 %v2271, %v2277
        %v2326 = vmax.f32 %v2272, %v2278
        %v2327 = vmax.f32 %v2273, %v2279
        %v2328 = vmax.f32 %v2274, %v2280
        %v2329 = vmax.f32 %v2275, %v2281
        %v2330 = vmax.f32 %v2276, %v2282
        %v2331 = vmax.f32 %v2277, %v2283
        %v2332 = vmax.f32 %v2278, %v2284
        %v2333 = vmax.f32 %v2279, %v2285
        %v2334 = vmax.f32 %v2280, %v2286
        %v2335 = vmax.f32 %v2281, %v2287
        %v2336 = vmax.f32 %v2282, %v2288
        %v2337 = vmax.f32 %v2283, %v2289
        %v2338 = vmax.f32 %v2284, %v2290
        %v2339 = vmax.f32 %v2285, %v2291
        %v2340 = vmax.f32 %v2286, %v2292
        %v2341 = vmax.f32 %v2287, %v2293
        %v2342 = vmax.f32 %v2288, %v2294
        %v2343 = vmax.f32 %v2289, %v2295
        %v2344 = vmax.f32 %v2290, %v2296
        %v2345 = vmax.f32 %v2291, %v2297
        %v2346 = vmax.f32 %v2292, %v2298
        %v2347 = vmax.f32 %v2293, %v2299
        %vm2396 = vcmask 1041408
        %v2397 = vrot.slane %v2300, 6
        %v2398 = vrot.slane %v2301, 6
        %v2399 = vsel %vm2396, %v2397, %v2398
        %v2400 = vrot.slane %v2302, 6
        %v2401 = vsel %vm2396, %v2398, %v2400
        %v2402 = vrot.slane %v2303, 6
        %v2403 = vrot.slane %v2304, 6
        %v2404 = vsel %vm2396, %v2402, %v2403
        %v2405 = vrot.slane %v2305, 6
        %v2406 = vsel %vm2396, %v2403, %v2405
        %v2407 = vrot.slane %v2306, 6
        %v2408 = vrot.slane %v2307, 6
        %v2409 = vsel %vm2396, %v2407, %v2408
        %v2410 = vrot.slane %v2308, 6
        %v2411 = vsel %vm2396, %v2408, %v2410
        %v2412 = vrot.slane %v2309, 6
        %v2413 = vrot.slane %v2310, 6
        %v2414 = vsel %vm2396, %v2412, %v2413
        %v2415 = vrot.slane %v2311, 6
        %v2416 = vsel %vm2396, %v2413, %v2415
        %v2417 = vrot.slane %v2312, 6
        %v2418 = vrot.slane %v2313, 6
        %v2419 = vsel %vm2396, %v2417, %v2418
        %v2420 = vrot.slane %v2314, 6
        %v2421 = vsel %vm2396, %v2418, %v2420
        %v2422 = vrot.slane %v2315, 6
        %v2423 = vrot.slane %v2316, 6
        %v2424 = vsel %vm2396, %v2422, %v2423
        %v2425 = vrot.slane %v2317, 6
        %v2426 = vsel %vm2396, %v2423, %v2425
        %v2427 = vrot.slane %v2318, 6
        %v2428 = vrot.slane %v2319, 6
        %v2429 = vsel %vm2396, %v2427, %v2428
        %v2430 = vrot.slane %v2320, 6
        %v2431 = vsel %vm2396, %v2428, %v2430
        %v2432 = vrot.slane %v2321, 6
        %v2433 = vrot.slane %v2322, 6
        %v2434 = vsel %vm2396, %v2432, %v2433
        %v2435 = vrot.slane %v2323, 6
        %v2436 = vsel %vm2396, %v2433, %v2435
        %v2437 = vrot.slane %v2324, 6
        %v2438 = vrot.slane %v2325, 6
        %v2439 = vsel %vm2396, %v2437, %v2438
        %v2440 = vrot.slane %v2326, 6
        %v2441 = vsel %vm2396, %v2438, %v2440
        %v2442 = vrot.slane %v2327, 6
        %v2443 = vrot.slane %v2328, 6
        %v2444 = vsel %vm2396, %v2442, %v2443
        %v2445 = vrot.slane %v2329, 6
        %v2446 = vsel %vm2396, %v2443, %v2445
        %v2447 = vrot.slane %v2330, 6
        %v2448 = vrot.slane %v2331, 6
        %v2449 = vsel %vm2396, %v2447, %v2448
        %v2450 = vrot.slane %v2332, 6
        %v2451 = vsel %vm2396, %v2448, %v2450
        %v2452 = vrot.slane %v2333, 6
        %v2453 = vrot.slane %v2334, 6
        %v2454 = vsel %vm2396, %v2452, %v2453
        %v2455 = vrot.slane %v2335, 6
        %v2456 = vsel %vm2396, %v2453, %v2455
        %v2457 = vrot.slane %v2336, 6
        %v2458 = vrot.slane %v2337, 6
        %v2459 = vsel %vm2396, %v2457, %v2458
        %v2460 = vrot.slane %v2338, 6
        %v2461 = vsel %vm2396, %v2458, %v2460
        %v2462 = vrot.slane %v2339, 6
        %v2463 = vrot.slane %v2340, 6
        %v2464 = vsel %vm2396, %v2462, %v2463
        %v2465 = vrot.slane %v2341, 6
        %v2466 = vsel %vm2396, %v2463, %v2465
        %v2467 = vrot.slane %v2342, 6
        %v2468 = vrot.slane %v2343, 6
        %v2469 = vsel %vm2396, %v2467, %v2468
        %v2470 = vrot.slane %v2344, 6
        %v2471 = vsel %vm2396, %v2468, %v2470
        %v2472 = vrot.slane %v2345, 6
        %v2473 = vrot.slane %v2346, 6
        %v2474 = vsel %vm2396, %v2472, %v2473
        %v2475 = vrot.slane %v2347, 6
        %v2476 = vsel %vm2396, %v2473, %v2475
        %v2509 = vpack.c.bf16 %v2401, %v2399
        %v2510 = vpack.c.bf16 %v2406, %v2404
        %v2511 = vpack.c.bf16 %v2411, %v2409
        %v2512 = vpack.c.bf16 %v2416, %v2414
        %v2513 = vpack.c.bf16 %v2421, %v2419
        %v2514 = vpack.c.bf16 %v2426, %v2424
        %v2515 = vpack.c.bf16 %v2431, %v2429
        %v2516 = vpack.c.bf16 %v2436, %v2434
        %v2517 = vpack.c.bf16 %v2441, %v2439
        %v2518 = vpack.c.bf16 %v2446, %v2444
        %v2519 = vpack.c.bf16 %v2451, %v2449
        %v2520 = vpack.c.bf16 %v2456, %v2454
        %v2521 = vpack.c.bf16 %v2461, %v2459
        %v2522 = vpack.c.bf16 %v2466, %v2464
        %v2523 = vpack.c.bf16 %v2471, %v2469
        %v2524 = vpack.c.bf16 %v2476, %v2474
        %v2525 = vld [vmem:[#allocation8 + $0x80] sm:$0xff]
        %v2526 = vld [vmem:[#allocation8 + $0x88] sm:$0xff]
        %v2527 = vld [vmem:[#allocation8 + $0x90] sm:$0xff]
        %v2528 = vld [vmem:[#allocation8 + $0x98] sm:$0xff]
        %v2529 = vld [vmem:[#allocation8 + $0xa0] sm:$0xff]
        %v2530 = vld [vmem:[#allocation8 + $0xa8] sm:$0xff]
        %v2531 = vld [vmem:[#allocation8 + $0xb0] sm:$0xff]
        %v2532 = vld [vmem:[#allocation8 + $0xb8] sm:$0xff]
        %v2533 = vld [vmem:[#allocation8 + $0xc0] sm:$0xff]
        %v2534 = vld [vmem:[#allocation8 + $0xc8] sm:$0xff]
        %v2535 = vld [vmem:[#allocation8 + $0xd0] sm:$0xff]
        %v2536 = vld [vmem:[#allocation8 + $0xd8] sm:$0xff]
        %v2537 = vld [vmem:[#allocation8 + $0xe0] sm:$0xff]
        %v2538 = vld [vmem:[#allocation8 + $0xe8] sm:$0xff]
        %v2539 = vld [vmem:[#allocation8 + $0xf0] sm:$0xff]
        %v2540 = vld [vmem:[#allocation8 + $0xf8] sm:$0xff]
        %v2557 = vunpack.c.l.b16 %v2525
        %v2558 = vunpack.c.h.b16 %v2525
        %v2559 = vunpack.c.l.b16 %v2526
        %v2560 = vunpack.c.h.b16 %v2526
        %v2561 = vunpack.c.l.b16 %v2527
        %v2562 = vunpack.c.h.b16 %v2527
        %v2563 = vunpack.c.l.b16 %v2528
        %v2564 = vunpack.c.h.b16 %v2528
        %v2565 = vunpack.c.l.b16 %v2529
        %v2566 = vunpack.c.h.b16 %v2529
        %v2567 = vunpack.c.l.b16 %v2530
        %v2568 = vunpack.c.h.b16 %v2530
        %v2569 = vunpack.c.l.b16 %v2531
        %v2570 = vunpack.c.h.b16 %v2531
        %v2571 = vunpack.c.l.b16 %v2532
        %v2572 = vunpack.c.h.b16 %v2532
        %v2573 = vunpack.c.l.b16 %v2533
        %v2574 = vunpack.c.h.b16 %v2533
        %v2575 = vunpack.c.l.b16 %v2534
        %v2576 = vunpack.c.h.b16 %v2534
        %v2577 = vunpack.c.l.b16 %v2535
        %v2578 = vunpack.c.h.b16 %v2535
        %v2579 = vunpack.c.l.b16 %v2536
        %v2580 = vunpack.c.h.b16 %v2536
        %v2581 = vunpack.c.l.b16 %v2537
        %v2582 = vunpack.c.h.b16 %v2537
        %v2583 = vunpack.c.l.b16 %v2538
        %v2584 = vunpack.c.h.b16 %v2538
        %v2585 = vunpack.c.l.b16 %v2539
        %v2586 = vunpack.c.h.b16 %v2539
        %v2587 = vunpack.c.l.b16 %v2540
        %v2588 = vunpack.c.h.b16 %v2540
        %v2589 = vpack.c.b16 %v2559, %v2557
        %v2590 = vpack.c.b16 %v2560, %v2558
        %v2591 = vpack.c.b16 %v2563, %v2561
        %v2592 = vpack.c.b16 %v2564, %v2562
        %v2593 = vpack.c.b16 %v2567, %v2565
        %v2594 = vpack.c.b16 %v2568, %v2566
        %v2595 = vpack.c.b16 %v2571, %v2569
        %v2596 = vpack.c.b16 %v2572, %v2570
        %v2597 = vpack.c.b16 %v2575, %v2573
        %v2598 = vpack.c.b16 %v2576, %v2574
        %v2599 = vpack.c.b16 %v2579, %v2577
        %v2600 = vpack.c.b16 %v2580, %v2578
        %v2601 = vpack.c.b16 %v2583, %v2581
        %v2602 = vpack.c.b16 %v2584, %v2582
        %v2603 = vpack.c.b16 %v2587, %v2585
        %v2604 = vpack.c.b16 %v2588, %v2586
        %2621 = vmatprep.subr.bf16.mxu0 %v2590
        %2622 = vmatpush1.bf16.msra.mxu0 %v2589
        %2623 = vmatprep.subr.bf16.mxu0 %v2592
        %2624 = vmatpush1.bf16.msra.mxu0 %v2591
        %2625 = vmatprep.subr.bf16.mxu0 %v2594
        %2626 = vmatpush1.bf16.msra.mxu0 %v2593
        %2627 = vmatprep.subr.bf16.mxu0 %v2596
        %2628 = vmatpush1.bf16.msra.mxu0 %v2595
        %2629 = vmatprep.subr.bf16.mxu0 %v2598
        %2630 = vmatpush1.bf16.msra.mxu0 %v2597
        %2631 = vmatprep.subr.bf16.mxu0 %v2600
        %2632 = vmatpush1.bf16.msra.mxu0 %v2599
        %2633 = vmatprep.subr.bf16.mxu0 %v2602
        %2634 = vmatpush1.bf16.msra.mxu0 %v2601
        %2635 = vmatprep.subr.bf16.mxu0 %v2604
        %2636 = vmatpush1.bf16.msra.mxu0 %v2603
        %2637 = vmatprep.subr.bf16.mxu0 0
        %2638 = vmatpush1.bf16.msra.mxu0 0
        %2639 = vmatprep.subr.bf16.mxu0 0
        %2640 = vmatpush1.bf16.msra.mxu0 0
        %2641 = vmatprep.subr.bf16.mxu0 0
        %2642 = vmatpush1.bf16.msra.mxu0 0
        %2643 = vmatprep.subr.bf16.mxu0 0
        %2644 = vmatpush1.bf16.msra.mxu0 0
        %2645 = vmatprep.subr.bf16.mxu0 0
        %2646 = vmatpush1.bf16.msra.mxu0 0
        %2647 = vmatprep.subr.bf16.mxu0 0
        %2648 = vmatpush1.bf16.msra.mxu0 0
        %2649 = vmatprep.subr.bf16.mxu0 0
        %2650 = vmatpush1.bf16.msra.mxu0 0
        %2651 = vmatprep.subr.bf16.mxu0 0
        %2652 = vmatpush1.bf16.msra.mxu0 0
        %2653 = vmatprep.mubr.bf16.mxu0 0
        %2654 = vmatmul.mubr.bf16.gmra.mrb[0].mxu0 %v2509
        %v2655 = vpop.f32.mrb[0].mxu0
        %v2656 = vadd.f32 0.0, %v2655
        %v2657 = vpop.f32.mrb[0].mxu0
        %v2658 = vadd.f32 0.0, %v2657
        %v2659 = vpop.f32.mrb[0].mxu0
        %v2660 = vadd.f32 0.0, %v2659
        %v2661 = vpop.f32.mrb[0].mxu0
        %v2662 = vadd.f32 0.0, %v2661
        %2663 = vmatprep.mubr.bf16.mxu0 0
        %2664 = vmatmul.mubr.bf16.gmra.mrb[0].mxu0 %v2510
        %v2665 = vpop.f32.mrb[0].mxu0
        %v2666 = vadd.f32 0.0, %v2665
        %v2667 = vpop.f32.mrb[0].mxu0
        %v2668 = vadd.f32 0.0, %v2667
        %v2669 = vpop.f32.mrb[0].mxu0
        %v2670 = vadd.f32 0.0, %v2669
        %v2671 = vpop.f32.mrb[0].mxu0
        %v2672 = vadd.f32 0.0, %v2671
        %2673 = vmatprep.mubr.bf16.mxu0 0
        %2674 = vmatmul.mubr.bf16.gmra.mrb[0].mxu0 %v2511
        %v2675 = vpop.f32.mrb[0].mxu0
        %v2676 = vadd.f32 0.0, %v2675
        %v2677 = vpop.f32.mrb[0].mxu0
        %v2678 = vadd.f32 0.0, %v2677
        %v2679 = vpop.f32.mrb[0].mxu0
        %v2680 = vadd.f32 0.0, %v2679
        %v2681 = vpop.f32.mrb[0].mxu0
        %v2682 = vadd.f32 0.0, %v2681
        %2683 = vmatprep.mubr.bf16.mxu0 0
        %2684 = vmatmul.mubr.bf16.gmra.mrb[0].mxu0 %v2512
        %v2685 = vpop.f32.mrb[0].mxu0
        %v2686 = vadd.f32 0.0, %v2685
        %v2687 = vpop.f32.mrb[0].mxu0
        %v2688 = vadd.f32 0.0, %v2687
        %v2689 = vpop.f32.mrb[0].mxu0
        %v2690 = vadd.f32 0.0, %v2689
        %v2691 = vpop.f32.mrb[0].mxu0
        %v2692 = vadd.f32 0.0, %v2691
        %2693 = vmatprep.mubr.bf16.mxu0 0
        %2694 = vmatmul.mubr.bf16.gmra.mrb[0].mxu0 %v2513
        %v2695 = vpop.f32.mrb[0].mxu0
        %v2696 = vadd.f32 0.0, %v2695
        %v2697 = vpop.f32.mrb[0].mxu0
        %v2698 = vadd.f32 0.0, %v2697
        %v2699 = vpop.f32.mrb[0].mxu0
        %v2700 = vadd.f32 0.0, %v2699
        %v2701 = vpop.f32.mrb[0].mxu0
        %v2702 = vadd.f32 0.0, %v2701
        %2703 = vmatprep.mubr.bf16.mxu0 0
        %2704 = vmatmul.mubr.bf16.gmra.mrb[0].mxu0 %v2514
        %v2705 = vpop.f32.mrb[0].mxu0
        %v2706 = vadd.f32 0.0, %v2705
        %v2707 = vpop.f32.mrb[0].mxu0
        %v2708 = vadd.f32 0.0, %v2707
        %v2709 = vpop.f32.mrb[0].mxu0
        %v2710 = vadd.f32 0.0, %v2709
        %v2711 = vpop.f32.mrb[0].mxu0
        %v2712 = vadd.f32 0.0, %v2711
        %2713 = vmatprep.mubr.bf16.mxu0 0
        %2714 = vmatmul.mubr.bf16.gmra.mrb[0].mxu0 %v2515
        %v2715 = vpop.f32.mrb[0].mxu0
        %v2716 = vadd.f32 0.0, %v2715
        %v2717 = vpop.f32.mrb[0].mxu0
        %v2718 = vadd.f32 0.0, %v2717
        %v2719 = vpop.f32.mrb[0].mxu0
        %v2720 = vadd.f32 0.0, %v2719
        %v2721 = vpop.f32.mrb[0].mxu0
        %v2722 = vadd.f32 0.0, %v2721
        %2723 = vmatprep.mubr.bf16.mxu0 0
        %2724 = vmatmul.mubr.bf16.gmra.mrb[0].mxu0 %v2516
        %v2725 = vpop.f32.mrb[0].mxu0
        %v2726 = vadd.f32 0.0, %v2725
        %v2727 = vpop.f32.mrb[0].mxu0
        %v2728 = vadd.f32 0.0, %v2727
        %v2729 = vpop.f32.mrb[0].mxu0
        %v2730 = vadd.f32 0.0, %v2729
        %v2731 = vpop.f32.mrb[0].mxu0
        %v2732 = vadd.f32 0.0, %v2731
        %2733 = vmatprep.mubr.bf16.mxu0 0
        %2734 = vmatmul.mubr.bf16.gmra.mrb[0].mxu0 %v2517
        %v2735 = vpop.f32.mrb[0].mxu0
        %v2736 = vadd.f32 0.0, %v2735
        %v2737 = vpop.f32.mrb[0].mxu0
        %v2738 = vadd.f32 0.0, %v2737
        %v2739 = vpop.f32.mrb[0].mxu0
        %v2740 = vadd.f32 0.0, %v2739
        %v2741 = vpop.f32.mrb[0].mxu0
        %v2742 = vadd.f32 0.0, %v2741
        %2743 = vmatprep.mubr.bf16.mxu0 0
        %2744 = vmatmul.mubr.bf16.gmra.mrb[0].mxu0 %v2518
        %v2745 = vpop.f32.mrb[0].mxu0
        %v2746 = vadd.f32 0.0, %v2745
        %v2747 = vpop.f32.mrb[0].mxu0
        %v2748 = vadd.f32 0.0, %v2747
        %v2749 = vpop.f32.mrb[0].mxu0
        %v2750 = vadd.f32 0.0, %v2749
        %v2751 = vpop.f32.mrb[0].mxu0
        %v2752 = vadd.f32 0.0, %v2751
        %2753 = vmatprep.mubr.bf16.mxu0 0
        %2754 = vmatmul.mubr.bf16.gmra.mrb[0].mxu0 %v2519
        %v2755 = vpop.f32.mrb[0].mxu0
        %v2756 = vadd.f32 0.0, %v2755
        %v2757 = vpop.f32.mrb[0].mxu0
        %v2758 = vadd.f32 0.0, %v2757
        %v2759 = vpop.f32.mrb[0].mxu0
        %v2760 = vadd.f32 0.0, %v2759
        %v2761 = vpop.f32.mrb[0].mxu0
        %v2762 = vadd.f32 0.0, %v2761
        %2763 = vmatprep.mubr.bf16.mxu0 0
        %2764 = vmatmul.mubr.bf16.gmra.mrb[0].mxu0 %v2520
        %v2765 = vpop.f32.mrb[0].mxu0
        %v2766 = vadd.f32 0.0, %v2765
        %v2767 = vpop.f32.mrb[0].mxu0
        %v2768 = vadd.f32 0.0, %v2767
        %v2769 = vpop.f32.mrb[0].mxu0
        %v2770 = vadd.f32 0.0, %v2769
        %v2771 = vpop.f32.mrb[0].mxu0
        %v2772 = vadd.f32 0.0, %v2771
        %2773 = vmatprep.mubr.bf16.mxu0 0
        %2774 = vmatmul.mubr.bf16.gmra.mrb[0].mxu0 %v2521
        %v2775 = vpop.f32.mrb[0].mxu0
        %v2776 = vadd.f32 0.0, %v2775
        %v2777 = vpop.f32.mrb[0].mxu0
        %v2778 = vadd.f32 0.0, %v2777
        %v2779 = vpop.f32.mrb[0].mxu0
        %v2780 = vadd.f32 0.0, %v2779
        %v2781 = vpop.f32.mrb[0].mxu0
        %v2782 = vadd.f32 0.0, %v2781
        %2783 = vmatprep.mubr.bf16.mxu0 0
        %2784 = vmatmul.mubr.bf16.gmra.mrb[0].mxu0 %v2522
        %v2785 = vpop.f32.mrb[0].mxu0
        %v2786 = vadd.f32 0.0, %v2785
        %v2787 = vpop.f32.mrb[0].mxu0
        %v2788 = vadd.f32 0.0, %v2787
        %v2789 = vpop.f32.mrb[0].mxu0
        %v2790 = vadd.f32 0.0, %v2789
        %v2791 = vpop.f32.mrb[0].mxu0
        %v2792 = vadd.f32 0.0, %v2791
        %2793 = vmatprep.mubr.bf16.mxu0 0
        %2794 = vmatmul.mubr.bf16.gmra.mrb[0].mxu0 %v2523
        %v2795 = vpop.f32.mrb[0].mxu0
        %v2796 = vadd.f32 0.0, %v2795
        %v2797 = vpop.f32.mrb[0].mxu0
        %v2798 = vadd.f32 0.0, %v2797
        %v2799 = vpop.f32.mrb[0].mxu0
        %v2800 = vadd.f32 0.0, %v2799
        %v2801 = vpop.f32.mrb[0].mxu0
        %v2802 = vadd.f32 0.0, %v2801
        %2803 = vmatprep.mubr.bf16.mxu0 0
        %2804 = vmatmul.mubr.bf16.gmra.mrb[0].mxu0 %v2524
        %v2805 = vpop.f32.mrb[0].mxu0
        %v2806 = vadd.f32 0.0, %v2805
        %v2807 = vpop.f32.mrb[0].mxu0
        %v2808 = vadd.f32 0.0, %v2807
        %v2809 = vpop.f32.mrb[0].mxu0
        %v2810 = vadd.f32 0.0, %v2809
        %v2811 = vpop.f32.mrb[0].mxu0
        %v2812 = vadd.f32 0.0, %v2811
        %2813 = vdwg.mxu0
        %v2830 = vunpack.c.l.b16 %v969
        %v2831 = vunpack.c.h.b16 %v969
        %v2832 = vunpack.c.l.b16 %v970
        %v2833 = vunpack.c.h.b16 %v970
        %v2834 = vunpack.c.l.b16 %v971
        %v2835 = vunpack.c.h.b16 %v971
        %v2836 = vunpack.c.l.b16 %v972
        %v2837 = vunpack.c.h.b16 %v972
        %v2838 = vunpack.c.l.b16 %v973
        %v2839 = vunpack.c.h.b16 %v973
        %v2840 = vunpack.c.l.b16 %v974
        %v2841 = vunpack.c.h.b16 %v974
        %v2842 = vunpack.c.l.b16 %v975
        %v2843 = vunpack.c.h.b16 %v975
        %v2844 = vunpack.c.l.b16 %v976
        %v2845 = vunpack.c.h.b16 %v976
        %v2846 = vunpack.c.l.b16 %v977
        %v2847 = vunpack.c.h.b16 %v977
        %v2848 = vunpack.c.l.b16 %v978
        %v2849 = vunpack.c.h.b16 %v978
        %v2850 = vunpack.c.l.b16 %v979
        %v2851 = vunpack.c.h.b16 %v979
        %v2852 = vunpack.c.l.b16 %v980
        %v2853 = vunpack.c.h.b16 %v980
        %v2854 = vunpack.c.l.b16 %v981
        %v2855 = vunpack.c.h.b16 %v981
        %v2856 = vunpack.c.l.b16 %v982
        %v2857 = vunpack.c.h.b16 %v982
        %v2858 = vunpack.c.l.b16 %v983
        %v2859 = vunpack.c.h.b16 %v983
        %v2860 = vunpack.c.l.b16 %v984
        %v2861 = vunpack.c.h.b16 %v984
        %v2862 = vpack.c.b16 %v2832, %v2830
        %v2863 = vpack.c.b16 %v2833, %v2831
        %v2864 = vpack.c.b16 %v2836, %v2834
        %v2865 = vpack.c.b16 %v2837, %v2835
        %v2866 = vpack.c.b16 %v2840, %v2838
        %v2867 = vpack.c.b16 %v2841, %v2839
        %v2868 = vpack.c.b16 %v2844, %v2842
        %v2869 = vpack.c.b16 %v2845, %v2843
        %v2870 = vpack.c.b16 %v2848, %v2846
        %v2871 = vpack.c.b16 %v2849, %v2847
        %v2872 = vpack.c.b16 %v2852, %v2850
        %v2873 = vpack.c.b16 %v2853, %v2851
        %v2874 = vpack.c.b16 %v2856, %v2854
        %v2875 = vpack.c.b16 %v2857, %v2855
        %v2876 = vpack.c.b16 %v2860, %v2858
        %v2877 = vpack.c.b16 %v2861, %v2859
        %2894 = vmatprep.subr.bf16.mxu0 %v2863
        %2895 = vmatpush1.bf16.msra.mxu0 %v2862
        %2896 = vmatprep.subr.bf16.mxu0 %v2865
        %2897 = vmatpush1.bf16.msra.mxu0 %v2864
        %2898 = vmatprep.subr.bf16.mxu0 %v2867
        %2899 = vmatpush1.bf16.msra.mxu0 %v2866
        %2900 = vmatprep.subr.bf16.mxu0 %v2869
        %2901 = vmatpush1.bf16.msra.mxu0 %v2868
        %2902 = vmatprep.subr.bf16.mxu0 %v2871
        %2903 = vmatpush1.bf16.msra.mxu0 %v2870
        %2904 = vmatprep.subr.bf16.mxu0 %v2873
        %2905 = vmatpush1.bf16.msra.mxu0 %v2872
        %2906 = vmatprep.subr.bf16.mxu0 %v2875
        %2907 = vmatpush1.bf16.msra.mxu0 %v2874
        %2908 = vmatprep.subr.bf16.mxu0 %v2877
        %2909 = vmatpush1.bf16.msra.mxu0 %v2876
        %2910 = vmatprep.subr.bf16.mxu0 0
        %2911 = vmatpush1.bf16.msra.mxu0 0
        %2912 = vmatprep.subr.bf16.mxu0 0
        %2913 = vmatpush1.bf16.msra.mxu0 0
        %2914 = vmatprep.subr.bf16.mxu0 0
        %2915 = vmatpush1.bf16.msra.mxu0 0
        %2916 = vmatprep.subr.bf16.mxu0 0
        %2917 = vmatpush1.bf16.msra.mxu0 0
        %2918 = vmatprep.subr.bf16.mxu0 0
        %2919 = vmatpush1.bf16.msra.mxu0 0
        %2920 = vmatprep.subr.bf16.mxu0 0
        %2921 = vmatpush1.bf16.msra.mxu0 0
        %2922 = vmatprep.subr.bf16.mxu0 0
        %2923 = vmatpush1.bf16.msra.mxu0 0
        %2924 = vmatprep.subr.bf16.mxu0 0
        %2925 = vmatpush1.bf16.msra.mxu0 0
        %2926 = vmatprep.mubr.bf16.mxu0 0
        %2927 = vmatmul.mubr.bf16.gmra.mrb[0].mxu0 %v953
        %v2928 = vpop.f32.mrb[0].mxu0
        %v2929 = vadd.f32 %v2656, %v2928
        %v2930 = vpop.f32.mrb[0].mxu0
        %v2931 = vadd.f32 %v2658, %v2930
        %v2932 = vpop.f32.mrb[0].mxu0
        %v2933 = vadd.f32 %v2660, %v2932
        %v2934 = vpop.f32.mrb[0].mxu0
        %v2935 = vadd.f32 %v2662, %v2934
        %2936 = vmatprep.mubr.bf16.mxu0 0
        %2937 = vmatmul.mubr.bf16.gmra.mrb[0].mxu0 %v954
        %v2938 = vpop.f32.mrb[0].mxu0
        %v2939 = vadd.f32 %v2666, %v2938
        %v2940 = vpop.f32.mrb[0].mxu0
        %v2941 = vadd.f32 %v2668, %v2940
        %v2942 = vpop.f32.mrb[0].mxu0
        %v2943 = vadd.f32 %v2670, %v2942
        %v2944 = vpop.f32.mrb[0].mxu0
        %v2945 = vadd.f32 %v2672, %v2944
        %2946 = vmatprep.mubr.bf16.mxu0 0
        %2947 = vmatmul.mubr.bf16.gmra.mrb[0].mxu0 %v955
        %v2948 = vpop.f32.mrb[0].mxu0
        %v2949 = vadd.f32 %v2676, %v2948
        %v2950 = vpop.f32.mrb[0].mxu0
        %v2951 = vadd.f32 %v2678, %v2950
        %v2952 = vpop.f32.mrb[0].mxu0
        %v2953 = vadd.f32 %v2680, %v2952
        %v2954 = vpop.f32.mrb[0].mxu0
        %v2955 = vadd.f32 %v2682, %v2954
        %2956 = vmatprep.mubr.bf16.mxu0 0
        %2957 = vmatmul.mubr.bf16.gmra.mrb[0].mxu0 %v956
        %v2958 = vpop.f32.mrb[0].mxu0
        %v2959 = vadd.f32 %v2686, %v2958
        %v2960 = vpop.f32.mrb[0].mxu0
        %v2961 = vadd.f32 %v2688, %v2960
        %v2962 = vpop.f32.mrb[0].mxu0
        %v2963 = vadd.f32 %v2690, %v2962
        %v2964 = vpop.f32.mrb[0].mxu0
        %v2965 = vadd.f32 %v2692, %v2964
        %2966 = vmatprep.mubr.bf16.mxu0 0
        %2967 = vmatmul.mubr.bf16.gmra.mrb[0].mxu0 %v957
        %v2968 = vpop.f32.mrb[0].mxu0
        %v2969 = vadd.f32 %v2696, %v2968
        %v2970 = vpop.f32.mrb[0].mxu0
        %v2971 = vadd.f32 %v2698, %v2970
        %v2972 = vpop.f32.mrb[0].mxu0
        %v2973 = vadd.f32 %v2700, %v2972
        %v2974 = vpop.f32.mrb[0].mxu0
        %v2975 = vadd.f32 %v2702, %v2974
        %2976 = vmatprep.mubr.bf16.mxu0 0
        %2977 = vmatmul.mubr.bf16.gmra.mrb[0].mxu0 %v958
        %v2978 = vpop.f32.mrb[0].mxu0
        %v2979 = vadd.f32 %v2706, %v2978
        %v2980 = vpop.f32.mrb[0].mxu0
        %v2981 = vadd.f32 %v2708, %v2980
        %v2982 = vpop.f32.mrb[0].mxu0
        %v2983 = vadd.f32 %v2710, %v2982
        %v2984 = vpop.f32.mrb[0].mxu0
        %v2985 = vadd.f32 %v2712, %v2984
        %2986 = vmatprep.mubr.bf16.mxu0 0
        %2987 = vmatmul.mubr.bf16.gmra.mrb[0].mxu0 %v959
        %v2988 = vpop.f32.mrb[0].mxu0
        %v2989 = vadd.f32 %v2716, %v2988
        %v2990 = vpop.f32.mrb[0].mxu0
        %v2991 = vadd.f32 %v2718, %v2990
        %v2992 = vpop.f32.mrb[0].mxu0
        %v2993 = vadd.f32 %v2720, %v2992
        %v2994 = vpop.f32.mrb[0].mxu0
        %v2995 = vadd.f32 %v2722, %v2994
        %2996 = vmatprep.mubr.bf16.mxu0 0
        %2997 = vmatmul.mubr.bf16.gmra.mrb[0].mxu0 %v960
        %v2998 = vpop.f32.mrb[0].mxu0
        %v2999 = vadd.f32 %v2726, %v2998
        %v3000 = vpop.f32.mrb[0].mxu0
        %v3001 = vadd.f32 %v2728, %v3000
        %v3002 = vpop.f32.mrb[0].mxu0
        %v3003 = vadd.f32 %v2730, %v3002
        %v3004 = vpop.f32.mrb[0].mxu0
        %v3005 = vadd.f32 %v2732, %v3004
        %3006 = vmatprep.mubr.bf16.mxu0 0
        %3007 = vmatmul.mubr.bf16.gmra.mrb[0].mxu0 %v961
        %v3008 = vpop.f32.mrb[0].mxu0
        %v3009 = vadd.f32 %v2736, %v3008
        %v3010 = vpop.f32.mrb[0].mxu0
        %v3011 = vadd.f32 %v2738, %v3010
        %v3012 = vpop.f32.mrb[0].mxu0
        %v3013 = vadd.f32 %v2740, %v3012
        %v3014 = vpop.f32.mrb[0].mxu0
        %v3015 = vadd.f32 %v2742, %v3014
        %3016 = vmatprep.mubr.bf16.mxu0 0
        %3017 = vmatmul.mubr.bf16.gmra.mrb[0].mxu0 %v962
        %v3018 = vpop.f32.mrb[0].mxu0
        %v3019 = vadd.f32 %v2746, %v3018
        %v3020 = vpop.f32.mrb[0].mxu0
        %v3021 = vadd.f32 %v2748, %v3020
        %v3022 = vpop.f32.mrb[0].mxu0
        %v3023 = vadd.f32 %v2750, %v3022
        %v3024 = vpop.f32.mrb[0].mxu0
        %v3025 = vadd.f32 %v2752, %v3024
        %3026 = vmatprep.mubr.bf16.mxu0 0
        %3027 = vmatmul.mubr.bf16.gmra.mrb[0].mxu0 %v963
        %v3028 = vpop.f32.mrb[0].mxu0
        %v3029 = vadd.f32 %v2756, %v3028
        %v3030 = vpop.f32.mrb[0].mxu0
        %v3031 = vadd.f32 %v2758, %v3030
        %v3032 = vpop.f32.mrb[0].mxu0
        %v3033 = vadd.f32 %v2760, %v3032
        %v3034 = vpop.f32.mrb[0].mxu0
        %v3035 = vadd.f32 %v2762, %v3034
        %3036 = vmatprep.mubr.bf16.mxu0 0
        %3037 = vmatmul.mubr.bf16.gmra.mrb[0].mxu0 %v964
        %v3038 = vpop.f32.mrb[0].mxu0
        %v3039 = vadd.f32 %v2766, %v3038
        %v3040 = vpop.f32.mrb[0].mxu0
        %v3041 = vadd.f32 %v2768, %v3040
        %v3042 = vpop.f32.mrb[0].mxu0
        %v3043 = vadd.f32 %v2770, %v3042
        %v3044 = vpop.f32.mrb[0].mxu0
        %v3045 = vadd.f32 %v2772, %v3044
        %3046 = vmatprep.mubr.bf16.mxu0 0
        %3047 = vmatmul.mubr.bf16.gmra.mrb[0].mxu0 %v965
        %v3048 = vpop.f32.mrb[0].mxu0
        %v3049 = vadd.f32 %v2776, %v3048
        %v3050 = vpop.f32.mrb[0].mxu0
        %v3051 = vadd.f32 %v2778, %v3050
        %v3052 = vpop.f32.mrb[0].mxu0
        %v3053 = vadd.f32 %v2780, %v3052
        %v3054 = vpop.f32.mrb[0].mxu0
        %v3055 = vadd.f32 %v2782, %v3054
        %3056 = vmatprep.mubr.bf16.mxu0 0
        %3057 = vmatmul.mubr.bf16.gmra.mrb[0].mxu0 %v966
        %v3058 = vpop.f32.mrb[0].mxu0
        %v3059 = vadd.f32 %v2786, %v3058
        %v3060 = vpop.f32.mrb[0].mxu0
        %v3061 = vadd.f32 %v2788, %v3060
        %v3062 = vpop.f32.mrb[0].mxu0
        %v3063 = vadd.f32 %v2790, %v3062
        %v3064 = vpop.f32.mrb[0].mxu0
        %v3065 = vadd.f32 %v2792, %v3064
        %3066 = vmatprep.mubr.bf16.mxu0 0
        %3067 = vmatmul.mubr.bf16.gmra.mrb[0].mxu0 %v967
        %v3068 = vpop.f32.mrb[0].mxu0
        %v3069 = vadd.f32 %v2796, %v3068
        %v3070 = vpop.f32.mrb[0].mxu0
        %v3071 = vadd.f32 %v2798, %v3070
        %v3072 = vpop.f32.mrb[0].mxu0
        %v3073 = vadd.f32 %v2800, %v3072
        %v3074 = vpop.f32.mrb[0].mxu0
        %v3075 = vadd.f32 %v2802, %v3074
        %3076 = vmatprep.mubr.bf16.mxu0 0
        %3077 = vmatmul.mubr.bf16.gmra.mrb[0].mxu0 %v968
        %v3078 = vpop.f32.mrb[0].mxu0
        %v3079 = vadd.f32 %v2806, %v3078
        %v3080 = vpop.f32.mrb[0].mxu0
        %v3081 = vadd.f32 %v2808, %v3080
        %v3082 = vpop.f32.mrb[0].mxu0
        %v3083 = vadd.f32 %v2810, %v3082
        %v3084 = vpop.f32.mrb[0].mxu0
        %v3085 = vadd.f32 %v2812, %v3084
        %3086 = vdwg.mxu0
        %vm3199 = vcmask 1043456
        %v3200 = vrot.slane %v2080, 4
        %v3201 = vrot.slane %v2081, 4
        %v3202 = vsel %vm3199, %v3200, %v3201
        %v3203 = vrot.slane %v2082, 4
        %v3204 = vsel %vm3199, %v3201, %v3203
        %v3205 = vrot.slane %v2083, 4
        %v3206 = vsel %vm3199, %v3203, %v3205
        %v3207 = vrot.slane %v2084, 4
        %v3208 = vrot.slane %v2085, 4
        %v3209 = vsel %vm3199, %v3207, %v3208
        %v3210 = vrot.slane %v2086, 4
        %v3211 = vsel %vm3199, %v3208, %v3210
        %v3212 = vrot.slane %v2087, 4
        %v3213 = vsel %vm3199, %v3210, %v3212
        %v3214 = vrot.slane %v2088, 4
        %v3215 = vrot.slane %v2089, 4
        %v3216 = vsel %vm3199, %v3214, %v3215
        %v3217 = vrot.slane %v2090, 4
        %v3218 = vsel %vm3199, %v3215, %v3217
        %v3219 = vrot.slane %v2091, 4
        %v3220 = vsel %vm3199, %v3217, %v3219
        %v3221 = vrot.slane %v2092, 4
        %v3222 = vrot.slane %v2093, 4
        %v3223 = vsel %vm3199, %v3221, %v3222
        %v3224 = vrot.slane %v2094, 4
        %v3225 = vsel %vm3199, %v3222, %v3224
        %v3226 = vrot.slane %v2095, 4
        %v3227 = vsel %vm3199, %v3224, %v3226
        %v3228 = vrot.slane %v2096, 4
        %v3229 = vrot.slane %v2097, 4
        %v3230 = vsel %vm3199, %v3228, %v3229
        %v3231 = vrot.slane %v2098, 4
        %v3232 = vsel %vm3199, %v3229, %v3231
        %v3233 = vrot.slane %v2099, 4
        %v3234 = vsel %vm3199, %v3231, %v3233
        %v3235 = vrot.slane %v2100, 4
        %v3236 = vrot.slane %v2101, 4
        %v3237 = vsel %vm3199, %v3235, %v3236
        %v3238 = vrot.slane %v2102, 4
        %v3239 = vsel %vm3199, %v3236, %v3238
        %v3240 = vrot.slane %v2103, 4
        %v3241 = vsel %vm3199, %v3238, %v3240
        %v3242 = vrot.slane %v2104, 4
        %v3243 = vrot.slane %v2105, 4
        %v3244 = vsel %vm3199, %v3242, %v3243
        %v3245 = vrot.slane %v2106, 4
        %v3246 = vsel %vm3199, %v3243, %v3245
        %v3247 = vrot.slane %v2107, 4
        %v3248 = vsel %vm3199, %v3245, %v3247
        %v3249 = vrot.slane %v2108, 4
        %v3250 = vrot.slane %v2109, 4
        %v3251 = vsel %vm3199, %v3249, %v3250
        %v3252 = vrot.slane %v2110, 4
        %v3253 = vsel %vm3199, %v3250, %v3252
        %v3254 = vrot.slane %v2111, 4
        %v3255 = vsel %vm3199, %v3252, %v3254
        %v3256 = vrot.slane %v2112, 4
        %v3257 = vrot.slane %v2113, 4
        %v3258 = vsel %vm3199, %v3256, %v3257
        %v3259 = vrot.slane %v2114, 4
        %v3260 = vsel %vm3199, %v3257, %v3259
        %v3261 = vrot.slane %v2115, 4
        %v3262 = vsel %vm3199, %v3259, %v3261
        %v3263 = vrot.slane %v2116, 4
        %v3264 = vrot.slane %v2117, 4
        %v3265 = vsel %vm3199, %v3263, %v3264
        %v3266 = vrot.slane %v2118, 4
        %v3267 = vsel %vm3199, %v3264, %v3266
        %v3268 = vrot.slane %v2119, 4
        %v3269 = vsel %vm3199, %v3266, %v3268
        %v3270 = vrot.slane %v2120, 4
        %v3271 = vrot.slane %v2121, 4
        %v3272 = vsel %vm3199, %v3270, %v3271
        %v3273 = vrot.slane %v2122, 4
        %v3274 = vsel %vm3199, %v3271, %v3273
        %v3275 = vrot.slane %v2123, 4
        %v3276 = vsel %vm3199, %v3273, %v3275
        %v3277 = vrot.slane %v2124, 4
        %v3278 = vrot.slane %v2125, 4
        %v3279 = vsel %vm3199, %v3277, %v3278
        %v3280 = vrot.slane %v2126, 4
        %v3281 = vsel %vm3199, %v3278, %v3280
        %v3282 = vrot.slane %v2127, 4
        %v3283 = vsel %vm3199, %v3280, %v3282
        %v3284 = vrot.slane %v2128, 4
        %v3285 = vrot.slane %v2129, 4
        %v3286 = vsel %vm3199, %v3284, %v3285
        %v3287 = vrot.slane %v2130, 4
        %v3288 = vsel %vm3199, %v3285, %v3287
        %v3289 = vrot.slane %v2131, 4
        %v3290 = vsel %vm3199, %v3287, %v3289
        %v3291 = vrot.slane %v2132, 4
        %v3292 = vrot.slane %v2133, 4
        %v3293 = vsel %vm3199, %v3291, %v3292
        %v3294 = vrot.slane %v2134, 4
        %v3295 = vsel %vm3199, %v3292, %v3294
        %v3296 = vrot.slane %v2135, 4
        %v3297 = vsel %vm3199, %v3294, %v3296
        %v3298 = vrot.slane %v2136, 4
        %v3299 = vrot.slane %v2137, 4
        %v3300 = vsel %vm3199, %v3298, %v3299
        %v3301 = vrot.slane %v2138, 4
        %v3302 = vsel %vm3199, %v3299, %v3301
        %v3303 = vrot.slane %v2139, 4
        %v3304 = vsel %vm3199, %v3301, %v3303
        %v3305 = vrot.slane %v2140, 4
        %v3306 = vrot.slane %v2141, 4
        %v3307 = vsel %vm3199, %v3305, %v3306
        %v3308 = vrot.slane %v2142, 4
        %v3309 = vsel %vm3199, %v3306, %v3308
        %v3310 = vrot.slane %v2143, 4
        %v3311 = vsel %vm3199, %v3308, %v3310
        %v3312 = vrot.slane %v2144, 4
        %v3313 = vrot.slane %v2145, 4
        %v3314 = vsel %vm3199, %v3312, %v3313
        %v3315 = vrot.slane %v2146, 4
        %v3316 = vsel %vm3199, %v3313, %v3315
        %v3317 = vrot.slane %v2147, 4
        %v3318 = vsel %vm3199, %v3315, %v3317
        %v3319 = vrot.slane %v2148, 4
        %v3320 = vrot.slane %v2149, 4
        %v3321 = vsel %vm3199, %v3319, %v3320
        %v3322 = vrot.slane %v2150, 4
        %v3323 = vsel %vm3199, %v3320, %v3322
        %v3324 = vrot.slane %v2151, 4
        %v3325 = vsel %vm3199, %v3322, %v3324
        %v3326 = vrot.slane %v2152, 4
        %v3327 = vrot.slane %v2153, 4
        %v3328 = vsel %vm3199, %v3326, %v3327
        %v3329 = vrot.slane %v2154, 4
        %v3330 = vsel %vm3199, %v3327, %v3329
        %v3331 = vrot.slane %v2155, 4
        %v3332 = vsel %vm3199, %v3329, %v3331
        %v3333 = vrot.slane %v2156, 4
        %v3334 = vrot.slane %v2157, 4
        %v3335 = vsel %vm3199, %v3333, %v3334
        %v3336 = vrot.slane %v2158, 4
        %v3337 = vsel %vm3199, %v3334, %v3336
        %v3338 = vrot.slane %v2159, 4
        %v3339 = vsel %vm3199, %v3336, %v3338
        %v3340 = vrot.slane %v2160, 4
        %v3341 = vrot.slane %v2161, 4
        %v3342 = vsel %vm3199, %v3340, %v3341
        %v3343 = vrot.slane %v2162, 4
        %v3344 = vsel %vm3199, %v3341, %v3343
        %v3345 = vrot.slane %v2163, 4
        %v3346 = vsel %vm3199, %v3343, %v3345
        %v3347 = vrot.slane %v2164, 4
        %v3348 = vrot.slane %v2165, 4
        %v3349 = vsel %vm3199, %v3347, %v3348
        %v3350 = vrot.slane %v2166, 4
        %v3351 = vsel %vm3199, %v3348, %v3350
        %v3352 = vrot.slane %v2167, 4
        %v3353 = vsel %vm3199, %v3350, %v3352
        %v3354 = vrot.slane %v2168, 4
        %v3355 = vrot.slane %v2169, 4
        %v3356 = vsel %vm3199, %v3354, %v3355
        %v3357 = vrot.slane %v2170, 4
        %v3358 = vsel %vm3199, %v3355, %v3357
        %v3359 = vrot.slane %v2171, 4
        %v3360 = vsel %vm3199, %v3357, %v3359
        %v3361 = vrot.slane %v2172, 4
        %v3362 = vrot.slane %v2173, 4
        %v3363 = vsel %vm3199, %v3361, %v3362
        %v3364 = vrot.slane %v2174, 4
        %v3365 = vsel %vm3199, %v3362, %v3364
        %v3366 = vrot.slane %v2175, 4
        %v3367 = vsel %vm3199, %v3364, %v3366
        %v3368 = vrot.slane %v2176, 4
        %v3369 = vrot.slane %v2177, 4
        %v3370 = vsel %vm3199, %v3368, %v3369
        %v3371 = vrot.slane %v2178, 4
        %v3372 = vsel %vm3199, %v3369, %v3371
        %v3373 = vrot.slane %v2179, 4
        %v3374 = vsel %vm3199, %v3371, %v3373
        %v3375 = vrot.slane %v2180, 4
        %v3376 = vrot.slane %v2181, 4
        %v3377 = vsel %vm3199, %v3375, %v3376
        %v3378 = vrot.slane %v2182, 4
        %v3379 = vsel %vm3199, %v3376, %v3378
        %v3380 = vrot.slane %v2183, 4
        %v3381 = vsel %vm3199, %v3378, %v3380
        %v3382 = vrot.slane %v2184, 4
        %v3383 = vrot.slane %v2185, 4
        %v3384 = vsel %vm3199, %v3382, %v3383
        %v3385 = vrot.slane %v2186, 4
        %v3386 = vsel %vm3199, %v3383, %v3385
        %v3387 = vrot.slane %v2187, 4
        %v3388 = vsel %vm3199, %v3385, %v3387
        %v3389 = vrot.slane %v2188, 4
        %v3390 = vrot.slane %v2189, 4
        %v3391 = vsel %vm3199, %v3389, %v3390
        %v3392 = vrot.slane %v2190, 4
        %v3393 = vsel %vm3199, %v3390, %v3392
        %v3394 = vrot.slane %v2191, 4
        %v3395 = vsel %vm3199, %v3392, %v3394
        %v3480 = vmax.f32 %v2080, %v3202
        %v3481 = vmax.f32 %v2081, %v3204
        %v3482 = vmax.f32 %v2082, %v3206
        %v3483 = vmax.f32 %v2084, %v3209
        %v3484 = vmax.f32 %v2085, %v3211
        %v3485 = vmax.f32 %v2086, %v3213
        %v3486 = vmax.f32 %v2088, %v3216
        %v3487 = vmax.f32 %v2089, %v3218
        %v3488 = vmax.f32 %v2090, %v3220
        %v3489 = vmax.f32 %v2092, %v3223
        %v3490 = vmax.f32 %v2093, %v3225
        %v3491 = vmax.f32 %v2094, %v3227
        %v3492 = vmax.f32 %v2096, %v3230
        %v3493 = vmax.f32 %v2097, %v3232
        %v3494 = vmax.f32 %v2098, %v3234
        %v3495 = vmax.f32 %v2100, %v3237
        %v3496 = vmax.f32 %v2101, %v3239
        %v3497 = vmax.f32 %v2102, %v3241
        %v3498 = vmax.f32 %v2104, %v3244
        %v3499 = vmax.f32 %v2105, %v3246
        %v3500 = vmax.f32 %v2106, %v3248
        %v3501 = vmax.f32 %v2108, %v3251
        %v3502 = vmax.f32 %v2109, %v3253
        %v3503 = vmax.f32 %v2110, %v3255
        %v3504 = vmax.f32 %v2112, %v3258
        %v3505 = vmax.f32 %v2113, %v3260
        %v3506 = vmax.f32 %v2114, %v3262
        %v3507 = vmax.f32 %v2116, %v3265
        %v3508 = vmax.f32 %v2117, %v3267
        %v3509 = vmax.f32 %v2118, %v3269
        %v3510 = vmax.f32 %v2120, %v3272
        %v3511 = vmax.f32 %v2121, %v3274
        %v3512 = vmax.f32 %v2122, %v3276
        %v3513 = vmax.f32 %v2124, %v3279
        %v3514 = vmax.f32 %v2125, %v3281
        %v3515 = vmax.f32 %v2126, %v3283
        %v3516 = vmax.f32 %v2128, %v3286
        %v3517 = vmax.f32 %v2129, %v3288
        %v3518 = vmax.f32 %v2130, %v3290
        %v3519 = vmax.f32 %v2132, %v3293
        %v3520 = vmax.f32 %v2133, %v3295
        %v3521 = vmax.f32 %v2134, %v3297
        %v3522 = vmax.f32 %v2136, %v3300
        %v3523 = vmax.f32 %v2137, %v3302
        %v3524 = vmax.f32 %v2138, %v3304
        %v3525 = vmax.f32 %v2140, %v3307
        %v3526 = vmax.f32 %v2141, %v3309
        %v3527 = vmax.f32 %v2142, %v3311
        %v3528 = vmax.f32 %v2144, %v3314
        %v3529 = vmax.f32 %v2145, %v3316
        %v3530 = vmax.f32 %v2146, %v3318
        %v3531 = vmax.f32 %v2148, %v3321
        %v3532 = vmax.f32 %v2149, %v3323
        %v3533 = vmax.f32 %v2150, %v3325
        %v3534 = vmax.f32 %v2152, %v3328
        %v3535 = vmax.f32 %v2153, %v3330
        %v3536 = vmax.f32 %v2154, %v3332
        %v3537 = vmax.f32 %v2156, %v3335
        %v3538 = vmax.f32 %v2157, %v3337
        %v3539 = vmax.f32 %v2158, %v3339
        %v3540 = vmax.f32 %v2160, %v3342
        %v3541 = vmax.f32 %v2161, %v3344
        %v3542 = vmax.f32 %v2162, %v3346
        %v3543 = vmax.f32 %v2164, %v3349
        %v3544 = vmax.f32 %v2165, %v3351
        %v3545 = vmax.f32 %v2166, %v3353
        %v3546 = vmax.f32 %v2168, %v3356
        %v3547 = vmax.f32 %v2169, %v3358
        %v3548 = vmax.f32 %v2170, %v3360
        %v3549 = vmax.f32 %v2172, %v3363
        %v3550 = vmax.f32 %v2173, %v3365
        %v3551 = vmax.f32 %v2174, %v3367
        %v3552 = vmax.f32 %v2176, %v3370
        %v3553 = vmax.f32 %v2177, %v3372
        %v3554 = vmax.f32 %v2178, %v3374
        %v3555 = vmax.f32 %v2180, %v3377
        %v3556 = vmax.f32 %v2181, %v3379
        %v3557 = vmax.f32 %v2182, %v3381
        %v3558 = vmax.f32 %v2184, %v3384
        %v3559 = vmax.f32 %v2185, %v3386
        %v3560 = vmax.f32 %v2186, %v3388
        %v3561 = vmax.f32 %v2188, %v3391
        %v3562 = vmax.f32 %v2189, %v3393
        %v3563 = vmax.f32 %v2190, %v3395
        %v3564 = vmax.f32 %v3486, %v3489
        %v3565 = vmax.f32 %v3487, %v3490
        %v3566 = vmax.f32 %v3488, %v3491
        %v3567 = vmax.f32 %v3489, %v3492
        %v3568 = vmax.f32 %v3490, %v3493
        %v3569 = vmax.f32 %v3491, %v3494
        %v3570 = vmax.f32 %v3492, %v3495
        %v3571 = vmax.f32 %v3493, %v3496
        %v3572 = vmax.f32 %v3494, %v3497
        %v3573 = vmax.f32 %v3495, %v3498
        %v3574 = vmax.f32 %v3496, %v3499
        %v3575 = vmax.f32 %v3497, %v3500
        %v3576 = vmax.f32 %v3498, %v3501
        %v3577 = vmax.f32 %v3499, %v3502
        %v3578 = vmax.f32 %v3500, %v3503
        %v3579 = vmax.f32 %v3501, %v3504
        %v3580 = vmax.f32 %v3502, %v3505
        %v3581 = vmax.f32 %v3503, %v3506
        %v3582 = vmax.f32 %v3504, %v3507
        %v3583 = vmax.f32 %v3505, %v3508
        %v3584 = vmax.f32 %v3506, %v3509
        %v3585 = vmax.f32 %v3507, %v3510
        %v3586 = vmax.f32 %v3508, %v3511
        %v3587 = vmax.f32 %v3509, %v3512
        %v3588 = vmax.f32 %v3510, %v3513
        %v3589 = vmax.f32 %v3511, %v3514
        %v3590 = vmax.f32 %v3512, %v3515
        %v3591 = vmax.f32 %v3513, %v3516
        %v3592 = vmax.f32 %v3514, %v3517
        %v3593 = vmax.f32 %v3515, %v3518
        %v3594 = vmax.f32 %v3516, %v3519
        %v3595 = vmax.f32 %v3517, %v3520
        %v3596 = vmax.f32 %v3518, %v3521
        %v3597 = vmax.f32 %v3519, %v3522
        %v3598 = vmax.f32 %v3520, %v3523
        %v3599 = vmax.f32 %v3521, %v3524
        %v3600 = vmax.f32 %v3522, %v3525
        %v3601 = vmax.f32 %v3523, %v3526
        %v3602 = vmax.f32 %v3524, %v3527
        %v3603 = vmax.f32 %v3525, %v3528
        %v3604 = vmax.f32 %v3526, %v3529
        %v3605 = vmax.f32 %v3527, %v3530
        %v3606 = vmax.f32 %v3528, %v3531
        %v3607 = vmax.f32 %v3529, %v3532
        %v3608 = vmax.f32 %v3530, %v3533
        %v3609 = vmax.f32 %v3531, %v3534
        %v3610 = vmax.f32 %v3532, %v3535
        %v3611 = vmax.f32 %v3533, %v3536
        %v3612 = vmax.f32 %v3534, %v3537
        %v3613 = vmax.f32 %v3535, %v3538
        %v3614 = vmax.f32 %v3536, %v3539
        %v3615 = vmax.f32 %v3537, %v3540
        %v3616 = vmax.f32 %v3538, %v3541
        %v3617 = vmax.f32 %v3539, %v3542
        %v3618 = vmax.f32 %v3540, %v3543
        %v3619 = vmax.f32 %v3541, %v3544
        %v3620 = vmax.f32 %v3542, %v3545
        %v3621 = vmax.f32 %v3543, %v3546
        %v3622 = vmax.f32 %v3544, %v3547
        %v3623 = vmax.f32 %v3545, %v3548
        %v3624 = vmax.f32 %v3546, %v3549
        %v3625 = vmax.f32 %v3547, %v3550
        %v3626 = vmax.f32 %v3548, %v3551
        %v3627 = vmax.f32 %v3549, %v3552
        %v3628 = vmax.f32 %v3550, %v3553
        %v3629 = vmax.f32 %v3551, %v3554
        %v3630 = vmax.f32 %v3564, %v3492
        %v3631 = vmax.f32 %v3565, %v3493
        %v3632 = vmax.f32 %v3566, %v3494
        %v3633 = vmax.f32 %v3567, %v3495
        %v3634 = vmax.f32 %v3568, %v3496
        %v3635 = vmax.f32 %v3569, %v3497
        %v3636 = vmax.f32 %v3570, %v3498
        %v3637 = vmax.f32 %v3571, %v3499
        %v3638 = vmax.f32 %v3572, %v3500
        %v3639 = vmax.f32 %v3573, %v3501
        %v3640 = vmax.f32 %v3574, %v3502
        %v3641 = vmax.f32 %v3575, %v3503
        %v3642 = vmax.f32 %v3576, %v3504
        %v3643 = vmax.f32 %v3577, %v3505
        %v3644 = vmax.f32 %v3578, %v3506
        %v3645 = vmax.f32 %v3579, %v3507
        %v3646 = vmax.f32 %v3580, %v3508
        %v3647 = vmax.f32 %v3581, %v3509
        %v3648 = vmax.f32 %v3582, %v3510
        %v3649 = vmax.f32 %v3583, %v3511
        %v3650 = vmax.f32 %v3584, %v3512
        %v3651 = vmax.f32 %v3585, %v3513
        %v3652 = vmax.f32 %v3586, %v3514
        %v3653 = vmax.f32 %v3587, %v3515
        %v3654 = vmax.f32 %v3588, %v3516
        %v3655 = vmax.f32 %v3589, %v3517
        %v3656 = vmax.f32 %v3590, %v3518
        %v3657 = vmax.f32 %v3591, %v3519
        %v3658 = vmax.f32 %v3592, %v3520
        %v3659 = vmax.f32 %v3593, %v3521
        %v3660 = vmax.f32 %v3594, %v3522
        %v3661 = vmax.f32 %v3595, %v3523
        %v3662 = vmax.f32 %v3596, %v3524
        %v3663 = vmax.f32 %v3597, %v3525
        %v3664 = vmax.f32 %v3598, %v3526
        %v3665 = vmax.f32 %v3599, %v3527
        %v3666 = vmax.f32 %v3600, %v3528
        %v3667 = vmax.f32 %v3601, %v3529
        %v3668 = vmax.f32 %v3602, %v3530
        %v3669 = vmax.f32 %v3603, %v3531
        %v3670 = vmax.f32 %v3604, %v3532
        %v3671 = vmax.f32 %v3605, %v3533
        %v3672 = vmax.f32 %v3606, %v3534
        %v3673 = vmax.f32 %v3607, %v3535
        %v3674 = vmax.f32 %v3608, %v3536
        %v3675 = vmax.f32 %v3609, %v3537
        %v3676 = vmax.f32 %v3610, %v3538
        %v3677 = vmax.f32 %v3611, %v3539
        %v3678 = vmax.f32 %v3612, %v3540
        %v3679 = vmax.f32 %v3613, %v3541
        %v3680 = vmax.f32 %v3614, %v3542
        %v3681 = vmax.f32 %v3615, %v3543
        %v3682 = vmax.f32 %v3616, %v3544
        %v3683 = vmax.f32 %v3617, %v3545
        %v3684 = vmax.f32 %v3618, %v3546
        %v3685 = vmax.f32 %v3619, %v3547
        %v3686 = vmax.f32 %v3620, %v3548
        %v3687 = vmax.f32 %v3621, %v3549
        %v3688 = vmax.f32 %v3622, %v3550
        %v3689 = vmax.f32 %v3623, %v3551
        %v3690 = vmax.f32 %v3624, %v3552
        %v3691 = vmax.f32 %v3625, %v3553
        %v3692 = vmax.f32 %v3626, %v3554
        %v3693 = vmax.f32 %v3627, %v3555
        %v3694 = vmax.f32 %v3628, %v3556
        %v3695 = vmax.f32 %v3629, %v3557
        %v3696 = vmax.f32 %v3630, %v3636
        %v3697 = vmax.f32 %v3631, %v3637
        %v3698 = vmax.f32 %v3632, %v3638
        %v3699 = vmax.f32 %v3633, %v3639
        %v3700 = vmax.f32 %v3634, %v3640
        %v3701 = vmax.f32 %v3635, %v3641
        %v3702 = vmax.f32 %v3636, %v3642
        %v3703 = vmax.f32 %v3637, %v3643
        %v3704 = vmax.f32 %v3638, %v3644
        %v3705 = vmax.f32 %v3639, %v3645
        %v3706 = vmax.f32 %v3640, %v3646
        %v3707 = vmax.f32 %v3641, %v3647
        %v3708 = vmax.f32 %v3642, %v3648
        %v3709 = vmax.f32 %v3643, %v3649
        %v3710 = vmax.f32 %v3644, %v3650
        %v3711 = vmax.f32 %v3645, %v3651
        %v3712 = vmax.f32 %v3646, %v3652
        %v3713 = vmax.f32 %v3647, %v3653
        %v3714 = vmax.f32 %v3648, %v3654
        %v3715 = vmax.f32 %v3649, %v3655
        %v3716 = vmax.f32 %v3650, %v3656
        %v3717 = vmax.f32 %v3651, %v3657
        %v3718 = vmax.f32 %v3652, %v3658
        %v3719 = vmax.f32 %v3653, %v3659
        %v3720 = vmax.f32 %v3654, %v3660
        %v3721 = vmax.f32 %v3655, %v3661
        %v3722 = vmax.f32 %v3656, %v3662
        %v3723 = vmax.f32 %v3657, %v3663
        %v3724 = vmax.f32 %v3658, %v3664
        %v3725 = vmax.f32 %v3659, %v3665
        %v3726 = vmax.f32 %v3660, %v3666
        %v3727 = vmax.f32 %v3661, %v3667
        %v3728 = vmax.f32 %v3662, %v3668
        %v3729 = vmax.f32 %v3663, %v3669
        %v3730 = vmax.f32 %v3664, %v3670
        %v3731 = vmax.f32 %v3665, %v3671
        %v3732 = vmax.f32 %v3666, %v3672
        %v3733 = vmax.f32 %v3667, %v3673
        %v3734 = vmax.f32 %v3668, %v3674
        %v3735 = vmax.f32 %v3669, %v3675
        %v3736 = vmax.f32 %v3670, %v3676
        %v3737 = vmax.f32 %v3671, %v3677
        %v3738 = vmax.f32 %v3672, %v3678
        %v3739 = vmax.f32 %v3673, %v3679
        %v3740 = vmax.f32 %v3674, %v3680
        %v3741 = vmax.f32 %v3675, %v3681
        %v3742 = vmax.f32 %v3676, %v3682
        %v3743 = vmax.f32 %v3677, %v3683
        %v3744 = vmax.f32 %v3678, %v3684
        %v3745 = vmax.f32 %v3679, %v3685
        %v3746 = vmax.f32 %v3680, %v3686
        %v3747 = vmax.f32 %v3681, %v3687
        %v3748 = vmax.f32 %v3682, %v3688
        %v3749 = vmax.f32 %v3683, %v3689
        %v3750 = vmax.f32 %v3684, %v3690
        %v3751 = vmax.f32 %v3685, %v3691
        %v3752 = vmax.f32 %v3686, %v3692
        %v3753 = vmax.f32 %v3687, %v3693
        %v3754 = vmax.f32 %v3688, %v3694
        %v3755 = vmax.f32 %v3689, %v3695
        %v3756 = vmax.f32 %v3696, %v3708
        %v3757 = vmax.f32 %v3697, %v3709
        %v3758 = vmax.f32 %v3698, %v3710
        %v3759 = vmax.f32 %v3699, %v3711
        %v3760 = vmax.f32 %v3700, %v3712
        %v3761 = vmax.f32 %v3701, %v3713
        %v3762 = vmax.f32 %v3702, %v3714
        %v3763 = vmax.f32 %v3703, %v3715
        %v3764 = vmax.f32 %v3704, %v3716
        %v3765 = vmax.f32 %v3705, %v3717
        %v3766 = vmax.f32 %v3706, %v3718
        %v3767 = vmax.f32 %v3707, %v3719
        %v3768 = vmax.f32 %v3708, %v3720
        %v3769 = vmax.f32 %v3709, %v3721
        %v3770 = vmax.f32 %v3710, %v3722
        %v3771 = vmax.f32 %v3711, %v3723
        %v3772 = vmax.f32 %v3712, %v3724
        %v3773 = vmax.f32 %v3713, %v3725
        %v3774 = vmax.f32 %v3714, %v3726
        %v3775 = vmax.f32 %v3715, %v3727
        %v3776 = vmax.f32 %v3716, %v3728
        %v3777 = vmax.f32 %v3717, %v3729
        %v3778 = vmax.f32 %v3718, %v3730
        %v3779 = vmax.f32 %v3719, %v3731
        %v3780 = vmax.f32 %v3720, %v3732
        %v3781 = vmax.f32 %v3721, %v3733
        %v3782 = vmax.f32 %v3722, %v3734
        %v3783 = vmax.f32 %v3723, %v3735
        %v3784 = vmax.f32 %v3724, %v3736
        %v3785 = vmax.f32 %v3725, %v3737
        %v3786 = vmax.f32 %v3726, %v3738
        %v3787 = vmax.f32 %v3727, %v3739
        %v3788 = vmax.f32 %v3728, %v3740
        %v3789 = vmax.f32 %v3729, %v3741
        %v3790 = vmax.f32 %v3730, %v3742
        %v3791 = vmax.f32 %v3731, %v3743
        %v3792 = vmax.f32 %v3732, %v3744
        %v3793 = vmax.f32 %v3733, %v3745
        %v3794 = vmax.f32 %v3734, %v3746
        %v3795 = vmax.f32 %v3735, %v3747
        %v3796 = vmax.f32 %v3736, %v3748
        %v3797 = vmax.f32 %v3737, %v3749
        %v3798 = vmax.f32 %v3738, %v3750
        %v3799 = vmax.f32 %v3739, %v3751
        %v3800 = vmax.f32 %v3740, %v3752
        %v3801 = vmax.f32 %v3741, %v3753
        %v3802 = vmax.f32 %v3742, %v3754
        %v3803 = vmax.f32 %v3743, %v3755
        %v3852 = vrot.slane %v3756, 4
        %v3853 = vrot.slane %v3757, 4
        %v3854 = vsel %vm3199, %v3852, %v3853
        %v3855 = vrot.slane %v3758, 4
        %v3856 = vsel %vm3199, %v3853, %v3855
        %v3857 = vrot.slane %v3759, 4
        %v3858 = vrot.slane %v3760, 4
        %v3859 = vsel %vm3199, %v3857, %v3858
        %v3860 = vrot.slane %v3761, 4
        %v3861 = vsel %vm3199, %v3858, %v3860
        %v3862 = vrot.slane %v3762, 4
        %v3863 = vrot.slane %v3763, 4
        %v3864 = vsel %vm3199, %v3862, %v3863
        %v3865 = vrot.slane %v3764, 4
        %v3866 = vsel %vm3199, %v3863, %v3865
        %v3867 = vrot.slane %v3765, 4
        %v3868 = vrot.slane %v3766, 4
        %v3869 = vsel %vm3199, %v3867, %v3868
        %v3870 = vrot.slane %v3767, 4
        %v3871 = vsel %vm3199, %v3868, %v3870
        %v3872 = vrot.slane %v3768, 4
        %v3873 = vrot.slane %v3769, 4
        %v3874 = vsel %vm3199, %v3872, %v3873
        %v3875 = vrot.slane %v3770, 4
        %v3876 = vsel %vm3199, %v3873, %v3875
        %v3877 = vrot.slane %v3771, 4
        %v3878 = vrot.slane %v3772, 4
        %v3879 = vsel %vm3199, %v3877, %v3878
        %v3880 = vrot.slane %v3773, 4
        %v3881 = vsel %vm3199, %v3878, %v3880
        %v3882 = vrot.slane %v3774, 4
        %v3883 = vrot.slane %v3775, 4
        %v3884 = vsel %vm3199, %v3882, %v3883
        %v3885 = vrot.slane %v3776, 4
        %v3886 = vsel %vm3199, %v3883, %v3885
        %v3887 = vrot.slane %v3777, 4
        %v3888 = vrot.slane %v3778, 4
        %v3889 = vsel %vm3199, %v3887, %v3888
        %v3890 = vrot.slane %v3779, 4
        %v3891 = vsel %vm3199, %v3888, %v3890
        %v3892 = vrot.slane %v3780, 4
        %v3893 = vrot.slane %v3781, 4
        %v3894 = vsel %vm3199, %v3892, %v3893
        %v3895 = vrot.slane %v3782, 4
        %v3896 = vsel %vm3199, %v3893, %v3895
        %v3897 = vrot.slane %v3783, 4
        %v3898 = vrot.slane %v3784, 4
        %v3899 = vsel %vm3199, %v3897, %v3898
        %v3900 = vrot.slane %v3785, 4
        %v3901 = vsel %vm3199, %v3898, %v3900
        %v3902 = vrot.slane %v3786, 4
        %v3903 = vrot.slane %v3787, 4
        %v3904 = vsel %vm3199, %v3902, %v3903
        %v3905 = vrot.slane %v3788, 4
        %v3906 = vsel %vm3199, %v3903, %v3905
        %v3907 = vrot.slane %v3789, 4
        %v3908 = vrot.slane %v3790, 4
        %v3909 = vsel %vm3199, %v3907, %v3908
        %v3910 = vrot.slane %v3791, 4
        %v3911 = vsel %vm3199, %v3908, %v3910
        %v3912 = vrot.slane %v3792, 4
        %v3913 = vrot.slane %v3793, 4
        %v3914 = vsel %vm3199, %v3912, %v3913
        %v3915 = vrot.slane %v3794, 4
        %v3916 = vsel %vm3199, %v3913, %v3915
        %v3917 = vrot.slane %v3795, 4
        %v3918 = vrot.slane %v3796, 4
        %v3919 = vsel %vm3199, %v3917, %v3918
        %v3920 = vrot.slane %v3797, 4
        %v3921 = vsel %vm3199, %v3918, %v3920
        %v3922 = vrot.slane %v3798, 4
        %v3923 = vrot.slane %v3799, 4
        %v3924 = vsel %vm3199, %v3922, %v3923
        %v3925 = vrot.slane %v3800, 4
        %v3926 = vsel %vm3199, %v3923, %v3925
        %v3927 = vrot.slane %v3801, 4
        %v3928 = vrot.slane %v3802, 4
        %v3929 = vsel %vm3199, %v3927, %v3928
        %v3930 = vrot.slane %v3803, 4
        %v3931 = vsel %vm3199, %v3928, %v3930
        %v3964 = vpack.c.bf16 %v3856, %v3854
        %v3965 = vpack.c.bf16 %v3861, %v3859
        %v3966 = vpack.c.bf16 %v3866, %v3864
        %v3967 = vpack.c.bf16 %v3871, %v3869
        %v3968 = vpack.c.bf16 %v3876, %v3874
        %v3969 = vpack.c.bf16 %v3881, %v3879
        %v3970 = vpack.c.bf16 %v3886, %v3884
        %v3971 = vpack.c.bf16 %v3891, %v3889
        %v3972 = vpack.c.bf16 %v3896, %v3894
        %v3973 = vpack.c.bf16 %v3901, %v3899
        %v3974 = vpack.c.bf16 %v3906, %v3904
        %v3975 = vpack.c.bf16 %v3911, %v3909
        %v3976 = vpack.c.bf16 %v3916, %v3914
        %v3977 = vpack.c.bf16 %v3921, %v3919
        %v3978 = vpack.c.bf16 %v3926, %v3924
        %v3979 = vpack.c.bf16 %v3931, %v3929
        %v3980 = vld [vmem:[#allocation8 + $0x100] sm:$0xff]
        %v3981 = vld [vmem:[#allocation8 + $0x108] sm:$0xff]
        %v3982 = vld [vmem:[#allocation8 + $0x110] sm:$0xff]
        %v3983 = vld [vmem:[#allocation8 + $0x118] sm:$0xff]
        %v3984 = vld [vmem:[#allocation8 + $0x120] sm:$0xff]
        %v3985 = vld [vmem:[#allocation8 + $0x128] sm:$0xff]
        %v3986 = vld [vmem:[#allocation8 + $0x130] sm:$0xff]
        %v3987 = vld [vmem:[#allocation8 + $0x138] sm:$0xff]
        %v3988 = vld [vmem:[#allocation8 + $0x140] sm:$0xff]
        %v3989 = vld [vmem:[#allocation8 + $0x148] sm:$0xff]
        %v3990 = vld [vmem:[#allocation8 + $0x150] sm:$0xff]
        %v3991 = vld [vmem:[#allocation8 + $0x158] sm:$0xff]
        %v3992 = vld [vmem:[#allocation8 + $0x160] sm:$0xff]
        %v3993 = vld [vmem:[#allocation8 + $0x168] sm:$0xff]
        %v3994 = vld [vmem:[#allocation8 + $0x170] sm:$0xff]
        %v3995 = vld [vmem:[#allocation8 + $0x178] sm:$0xff]
        %v4012 = vunpack.c.l.b16 %v3980
        %v4013 = vunpack.c.h.b16 %v3980
        %v4014 = vunpack.c.l.b16 %v3981
        %v4015 = vunpack.c.h.b16 %v3981
        %v4016 = vunpack.c.l.b16 %v3982
        %v4017 = vunpack.c.h.b16 %v3982
        %v4018 = vunpack.c.l.b16 %v3983
        %v4019 = vunpack.c.h.b16 %v3983
        %v4020 = vunpack.c.l.b16 %v3984
        %v4021 = vunpack.c.h.b16 %v3984
        %v4022 = vunpack.c.l.b16 %v3985
        %v4023 = vunpack.c.h.b16 %v3985
        %v4024 = vunpack.c.l.b16 %v3986
        %v4025 = vunpack.c.h.b16 %v3986
        %v4026 = vunpack.c.l.b16 %v3987
        %v4027 = vunpack.c.h.b16 %v3987
        %v4028 = vunpack.c.l.b16 %v3988
        %v4029 = vunpack.c.h.b16 %v3988
        %v4030 = vunpack.c.l.b16 %v3989
        %v4031 = vunpack.c.h.b16 %v3989
        %v4032 = vunpack.c.l.b16 %v3990
        %v4033 = vunpack.c.h.b16 %v3990
        %v4034 = vunpack.c.l.b16 %v3991
        %v4035 = vunpack.c.h.b16 %v3991
        %v4036 = vunpack.c.l.b16 %v3992
        %v4037 = vunpack.c.h.b16 %v3992
        %v4038 = vunpack.c.l.b16 %v3993
        %v4039 = vunpack.c.h.b16 %v3993
        %v4040 = vunpack.c.l.b16 %v3994
        %v4041 = vunpack.c.h.b16 %v3994
        %v4042 = vunpack.c.l.b16 %v3995
        %v4043 = vunpack.c.h.b16 %v3995
        %v4044 = vpack.c.b16 %v4014, %v4012
        %v4045 = vpack.c.b16 %v4015, %v4013
        %v4046 = vpack.c.b16 %v4018, %v4016
        %v4047 = vpack.c.b16 %v4019, %v4017
        %v4048 = vpack.c.b16 %v4022, %v4020
        %v4049 = vpack.c.b16 %v4023, %v4021
        %v4050 = vpack.c.b16 %v4026, %v4024
        %v4051 = vpack.c.b16 %v4027, %v4025
        %v4052 = vpack.c.b16 %v4030, %v4028
        %v4053 = vpack.c.b16 %v4031, %v4029
        %v4054 = vpack.c.b16 %v4034, %v4032
        %v4055 = vpack.c.b16 %v4035, %v4033
        %v4056 = vpack.c.b16 %v4038, %v4036
        %v4057 = vpack.c.b16 %v4039, %v4037
        %v4058 = vpack.c.b16 %v4042, %v4040
        %v4059 = vpack.c.b16 %v4043, %v4041
        %4076 = vmatprep.subr.bf16.mxu0 %v4045
        %4077 = vmatpush1.bf16.msra.mxu0 %v4044
        %4078 = vmatprep.subr.bf16.mxu0 %v4047
        %4079 = vmatpush1.bf16.msra.mxu0 %v4046
        %4080 = vmatprep.subr.bf16.mxu0 %v4049
        %4081 = vmatpush1.bf16.msra.mxu0 %v4048
        %4082 = vmatprep.subr.bf16.mxu0 %v4051
        %4083 = vmatpush1.bf16.msra.mxu0 %v4050
        %4084 = vmatprep.subr.bf16.mxu0 %v4053
        %4085 = vmatpush1.bf16.msra.mxu0 %v4052
        %4086 = vmatprep.subr.bf16.mxu0 %v4055
        %4087 = vmatpush1.bf16.msra.mxu0 %v4054
        %4088 = vmatprep.subr.bf16.mxu0 %v4057
        %4089 = vmatpush1.bf16.msra.mxu0 %v4056
        %4090 = vmatprep.subr.bf16.mxu0 %v4059
        %4091 = vmatpush1.bf16.msra.mxu0 %v4058
        %4092 = vmatprep.subr.bf16.mxu0 0
        %4093 = vmatpush1.bf16.msra.mxu0 0
        %4094 = vmatprep.subr.bf16.mxu0 0
        %4095 = vmatpush1.bf16.msra.mxu0 0
        %4096 = vmatprep.subr.bf16.mxu0 0
        %4097 = vmatpush1.bf16.msra.mxu0 0
        %4098 = vmatprep.subr.bf16.mxu0 0
        %4099 = vmatpush1.bf16.msra.mxu0 0
        %4100 = vmatprep.subr.bf16.mxu0 0
        %4101 = vmatpush1.bf16.msra.mxu0 0
        %4102 = vmatprep.subr.bf16.mxu0 0
        %4103 = vmatpush1.bf16.msra.mxu0 0
        %4104 = vmatprep.subr.bf16.mxu0 0
        %4105 = vmatpush1.bf16.msra.mxu0 0
        %4106 = vmatprep.subr.bf16.mxu0 0
        %4107 = vmatpush1.bf16.msra.mxu0 0
        %4108 = vmatprep.mubr.bf16.mxu0 0
        %4109 = vmatmul.mubr.bf16.gmra.mrb[0].mxu0 %v3964
        %v4110 = vpop.f32.mrb[0].mxu0
        %v4111 = vadd.f32 0.0, %v4110
        %v4112 = vpop.f32.mrb[0].mxu0
        %v4113 = vadd.f32 0.0, %v4112
        %v4114 = vpop.f32.mrb[0].mxu0
        %v4115 = vadd.f32 0.0, %v4114
        %v4116 = vpop.f32.mrb[0].mxu0
        %v4117 = vadd.f32 0.0, %v4116
        %4118 = vmatprep.mubr.bf16.mxu0 0
        %4119 = vmatmul.mubr.bf16.gmra.mrb[0].mxu0 %v3965
        %v4120 = vpop.f32.mrb[0].mxu0
        %v4121 = vadd.f32 0.0, %v4120
        %v4122 = vpop.f32.mrb[0].mxu0
        %v4123 = vadd.f32 0.0, %v4122
        %v4124 = vpop.f32.mrb[0].mxu0
        %v4125 = vadd.f32 0.0, %v4124
        %v4126 = vpop.f32.mrb[0].mxu0
        %v4127 = vadd.f32 0.0, %v4126
        %4128 = vmatprep.mubr.bf16.mxu0 0
        %4129 = vmatmul.mubr.bf16.gmra.mrb[0].mxu0 %v3966
        %v4130 = vpop.f32.mrb[0].mxu0
        %v4131 = vadd.f32 0.0, %v4130
        %v4132 = vpop.f32.mrb[0].mxu0
        %v4133 = vadd.f32 0.0, %v4132
        %v4134 = vpop.f32.mrb[0].mxu0
        %v4135 = vadd.f32 0.0, %v4134
        %v4136 = vpop.f32.mrb[0].mxu0
        %v4137 = vadd.f32 0.0, %v4136
        %4138 = vmatprep.mubr.bf16.mxu0 0
        %4139 = vmatmul.mubr.bf16.gmra.mrb[0].mxu0 %v3967
        %v4140 = vpop.f32.mrb[0].mxu0
        %v4141 = vadd.f32 0.0, %v4140
        %v4142 = vpop.f32.mrb[0].mxu0
        %v4143 = vadd.f32 0.0, %v4142
        %v4144 = vpop.f32.mrb[0].mxu0
        %v4145 = vadd.f32 0.0, %v4144
        %v4146 = vpop.f32.mrb[0].mxu0
        %v4147 = vadd.f32 0.0, %v4146
        %4148 = vmatprep.mubr.bf16.mxu0 0
        %4149 = vmatmul.mubr.bf16.gmra.mrb[0].mxu0 %v3968
        %v4150 = vpop.f32.mrb[0].mxu0
        %v4151 = vadd.f32 0.0, %v4150
        %v4152 = vpop.f32.mrb[0].mxu0
        %v4153 = vadd.f32 0.0, %v4152
        %v4154 = vpop.f32.mrb[0].mxu0
        %v4155 = vadd.f32 0.0, %v4154
        %v4156 = vpop.f32.mrb[0].mxu0
        %v4157 = vadd.f32 0.0, %v4156
        %4158 = vmatprep.mubr.bf16.mxu0 0
        %4159 = vmatmul.mubr.bf16.gmra.mrb[0].mxu0 %v3969
        %v4160 = vpop.f32.mrb[0].mxu0
        %v4161 = vadd.f32 0.0, %v4160
        %v4162 = vpop.f32.mrb[0].mxu0
        %v4163 = vadd.f32 0.0, %v4162
        %v4164 = vpop.f32.mrb[0].mxu0
        %v4165 = vadd.f32 0.0, %v4164
        %v4166 = vpop.f32.mrb[0].mxu0
        %v4167 = vadd.f32 0.0, %v4166
        %4168 = vmatprep.mubr.bf16.mxu0 0
        %4169 = vmatmul.mubr.bf16.gmra.mrb[0].mxu0 %v3970
        %v4170 = vpop.f32.mrb[0].mxu0
        %v4171 = vadd.f32 0.0, %v4170
        %v4172 = vpop.f32.mrb[0].mxu0
        %v4173 = vadd.f32 0.0, %v4172
        %v4174 = vpop.f32.mrb[0].mxu0
        %v4175 = vadd.f32 0.0, %v4174
        %v4176 = vpop.f32.mrb[0].mxu0
        %v4177 = vadd.f32 0.0, %v4176
        %4178 = vmatprep.mubr.bf16.mxu0 0
        %4179 = vmatmul.mubr.bf16.gmra.mrb[0].mxu0 %v3971
        %v4180 = vpop.f32.mrb[0].mxu0
        %v4181 = vadd.f32 0.0, %v4180
        %v4182 = vpop.f32.mrb[0].mxu0
        %v4183 = vadd.f32 0.0, %v4182
        %v4184 = vpop.f32.mrb[0].mxu0
        %v4185 = vadd.f32 0.0, %v4184
        %v4186 = vpop.f32.mrb[0].mxu0
        %v4187 = vadd.f32 0.0, %v4186
        %4188 = vmatprep.mubr.bf16.mxu0 0
        %4189 = vmatmul.mubr.bf16.gmra.mrb[0].mxu0 %v3972
        %v4190 = vpop.f32.mrb[0].mxu0
        %v4191 = vadd.f32 0.0, %v4190
        %v4192 = vpop.f32.mrb[0].mxu0
        %v4193 = vadd.f32 0.0, %v4192
        %v4194 = vpop.f32.mrb[0].mxu0
        %v4195 = vadd.f32 0.0, %v4194
        %v4196 = vpop.f32.mrb[0].mxu0
        %v4197 = vadd.f32 0.0, %v4196
        %4198 = vmatprep.mubr.bf16.mxu0 0
        %4199 = vmatmul.mubr.bf16.gmra.mrb[0].mxu0 %v3973
        %v4200 = vpop.f32.mrb[0].mxu0
        %v4201 = vadd.f32 0.0, %v4200
        %v4202 = vpop.f32.mrb[0].mxu0
        %v4203 = vadd.f32 0.0, %v4202
        %v4204 = vpop.f32.mrb[0].mxu0
        %v4205 = vadd.f32 0.0, %v4204
        %v4206 = vpop.f32.mrb[0].mxu0
        %v4207 = vadd.f32 0.0, %v4206
        %4208 = vmatprep.mubr.bf16.mxu0 0
        %4209 = vmatmul.mubr.bf16.gmra.mrb[0].mxu0 %v3974
        %v4210 = vpop.f32.mrb[0].mxu0
        %v4211 = vadd.f32 0.0, %v4210
        %v4212 = vpop.f32.mrb[0].mxu0
        %v4213 = vadd.f32 0.0, %v4212
        %v4214 = vpop.f32.mrb[0].mxu0
        %v4215 = vadd.f32 0.0, %v4214
        %v4216 = vpop.f32.mrb[0].mxu0
        %v4217 = vadd.f32 0.0, %v4216
        %4218 = vmatprep.mubr.bf16.mxu0 0
        %4219 = vmatmul.mubr.bf16.gmra.mrb[0].mxu0 %v3975
        %v4220 = vpop.f32.mrb[0].mxu0
        %v4221 = vadd.f32 0.0, %v4220
        %v4222 = vpop.f32.mrb[0].mxu0
        %v4223 = vadd.f32 0.0, %v4222
        %v4224 = vpop.f32.mrb[0].mxu0
        %v4225 = vadd.f32 0.0, %v4224
        %v4226 = vpop.f32.mrb[0].mxu0
        %v4227 = vadd.f32 0.0, %v4226
        %4228 = vmatprep.mubr.bf16.mxu0 0
        %4229 = vmatmul.mubr.bf16.gmra.mrb[0].mxu0 %v3976
        %v4230 = vpop.f32.mrb[0].mxu0
        %v4231 = vadd.f32 0.0, %v4230
        %v4232 = vpop.f32.mrb[0].mxu0
        %v4233 = vadd.f32 0.0, %v4232
        %v4234 = vpop.f32.mrb[0].mxu0
        %v4235 = vadd.f32 0.0, %v4234
        %v4236 = vpop.f32.mrb[0].mxu0
        %v4237 = vadd.f32 0.0, %v4236
        %4238 = vmatprep.mubr.bf16.mxu0 0
        %4239 = vmatmul.mubr.bf16.gmra.mrb[0].mxu0 %v3977
        %v4240 = vpop.f32.mrb[0].mxu0
        %v4241 = vadd.f32 0.0, %v4240
        %v4242 = vpop.f32.mrb[0].mxu0
        %v4243 = vadd.f32 0.0, %v4242
        %v4244 = vpop.f32.mrb[0].mxu0
        %v4245 = vadd.f32 0.0, %v4244
        %v4246 = vpop.f32.mrb[0].mxu0
        %v4247 = vadd.f32 0.0, %v4246
        %4248 = vmatprep.mubr.bf16.mxu0 0
        %4249 = vmatmul.mubr.bf16.gmra.mrb[0].mxu0 %v3978
        %v4250 = vpop.f32.mrb[0].mxu0
        %v4251 = vadd.f32 0.0, %v4250
        %v4252 = vpop.f32.mrb[0].mxu0
        %v4253 = vadd.f32 0.0, %v4252
        %v4254 = vpop.f32.mrb[0].mxu0
        %v4255 = vadd.f32 0.0, %v4254
        %v4256 = vpop.f32.mrb[0].mxu0
        %v4257 = vadd.f32 0.0, %v4256
        %4258 = vmatprep.mubr.bf16.mxu0 0
        %4259 = vmatmul.mubr.bf16.gmra.mrb[0].mxu0 %v3979
        %v4260 = vpop.f32.mrb[0].mxu0
        %v4261 = vadd.f32 0.0, %v4260
        %v4262 = vpop.f32.mrb[0].mxu0
        %v4263 = vadd.f32 0.0, %v4262
        %v4264 = vpop.f32.mrb[0].mxu0
        %v4265 = vadd.f32 0.0, %v4264
        %v4266 = vpop.f32.mrb[0].mxu0
        %v4267 = vadd.f32 0.0, %v4266
        %4268 = vdwg.mxu0
        %v4269 = vadd.f32 %v2929, %v4111
        %v4270 = vadd.f32 %v2931, %v4113
        %v4271 = vadd.f32 %v2933, %v4115
        %v4272 = vadd.f32 %v2935, %v4117
        %v4273 = vadd.f32 %v2939, %v4121
        %v4274 = vadd.f32 %v2941, %v4123
        %v4275 = vadd.f32 %v2943, %v4125
        %v4276 = vadd.f32 %v2945, %v4127
        %v4277 = vadd.f32 %v2949, %v4131
        %v4278 = vadd.f32 %v2951, %v4133
        %v4279 = vadd.f32 %v2953, %v4135
        %v4280 = vadd.f32 %v2955, %v4137
        %v4281 = vadd.f32 %v2959, %v4141
        %v4282 = vadd.f32 %v2961, %v4143
        %v4283 = vadd.f32 %v2963, %v4145
        %v4284 = vadd.f32 %v2965, %v4147
        %v4285 = vadd.f32 %v2969, %v4151
        %v4286 = vadd.f32 %v2971, %v4153
        %v4287 = vadd.f32 %v2973, %v4155
        %v4288 = vadd.f32 %v2975, %v4157
        %v4289 = vadd.f32 %v2979, %v4161
        %v4290 = vadd.f32 %v2981, %v4163
        %v4291 = vadd.f32 %v2983, %v4165
        %v4292 = vadd.f32 %v2985, %v4167
        %v4293 = vadd.f32 %v2989, %v4171
        %v4294 = vadd.f32 %v2991, %v4173
        %v4295 = vadd.f32 %v2993, %v4175
        %v4296 = vadd.f32 %v2995, %v4177
        %v4297 = vadd.f32 %v2999, %v4181
        %v4298 = vadd.f32 %v3001, %v4183
        %v4299 = vadd.f32 %v3003, %v4185
        %v4300 = vadd.f32 %v3005, %v4187
        %v4301 = vadd.f32 %v3009, %v4191
        %v4302 = vadd.f32 %v3011, %v4193
        %v4303 = vadd.f32 %v3013, %v4195
        %v4304 = vadd.f32 %v3015, %v4197
        %v4305 = vadd.f32 %v3019, %v4201
        %v4306 = vadd.f32 %v3021, %v4203
        %v4307 = vadd.f32 %v3023, %v4205
        %v4308 = vadd.f32 %v3025, %v4207
        %v4309 = vadd.f32 %v3029, %v4211
        %v4310 = vadd.f32 %v3031, %v4213
        %v4311 = vadd.f32 %v3033, %v4215
        %v4312 = vadd.f32 %v3035, %v4217
        %v4313 = vadd.f32 %v3039, %v4221
        %v4314 = vadd.f32 %v3041, %v4223
        %v4315 = vadd.f32 %v3043, %v4225
        %v4316 = vadd.f32 %v3045, %v4227
        %v4317 = vadd.f32 %v3049, %v4231
        %v4318 = vadd.f32 %v3051, %v4233
        %v4319 = vadd.f32 %v3053, %v4235
        %v4320 = vadd.f32 %v3055, %v4237
        %v4321 = vadd.f32 %v3059, %v4241
        %v4322 = vadd.f32 %v3061, %v4243
        %v4323 = vadd.f32 %v3063, %v4245
        %v4324 = vadd.f32 %v3065, %v4247
        %v4325 = vadd.f32 %v3069, %v4251
        %v4326 = vadd.f32 %v3071, %v4253
        %v4327 = vadd.f32 %v3073, %v4255
        %v4328 = vadd.f32 %v3075, %v4257
        %v4329 = vadd.f32 %v3079, %v4261
        %v4330 = vadd.f32 %v3081, %v4263
        %v4331 = vadd.f32 %v3083, %v4265
        %v4332 = vadd.f32 %v3085, %v4267
        %v4417 = vrot.slane %v3480, 4
        %v4418 = vrot.slane %v3481, 4
        %v4419 = vsel %vm3199, %v4417, %v4418
        %v4420 = vrot.slane %v3482, 4
        %v4421 = vsel %vm3199, %v4418, %v4420
        %v4422 = vrot.slane %v3483, 4
        %v4423 = vrot.slane %v3484, 4
        %v4424 = vsel %vm3199, %v4422, %v4423
        %v4425 = vrot.slane %v3485, 4
        %v4426 = vsel %vm3199, %v4423, %v4425
        %v4427 = vrot.slane %v3486, 4
        %v4428 = vrot.slane %v3487, 4
        %v4429 = vsel %vm3199, %v4427, %v4428
        %v4430 = vrot.slane %v3488, 4
        %v4431 = vsel %vm3199, %v4428, %v4430
        %v4432 = vrot.slane %v3489, 4
        %v4433 = vrot.slane %v3490, 4
        %v4434 = vsel %vm3199, %v4432, %v4433
        %v4435 = vrot.slane %v3491, 4
        %v4436 = vsel %vm3199, %v4433, %v4435
        %v4437 = vrot.slane %v3492, 4
        %v4438 = vrot.slane %v3493, 4
        %v4439 = vsel %vm3199, %v4437, %v4438
        %v4440 = vrot.slane %v3494, 4
        %v4441 = vsel %vm3199, %v4438, %v4440
        %v4442 = vrot.slane %v3495, 4
        %v4443 = vrot.slane %v3496, 4
        %v4444 = vsel %vm3199, %v4442, %v4443
        %v4445 = vrot.slane %v3497, 4
        %v4446 = vsel %vm3199, %v4443, %v4445
        %v4447 = vrot.slane %v3498, 4
        %v4448 = vrot.slane %v3499, 4
        %v4449 = vsel %vm3199, %v4447, %v4448
        %v4450 = vrot.slane %v3500, 4
        %v4451 = vsel %vm3199, %v4448, %v4450
        %v4452 = vrot.slane %v3501, 4
        %v4453 = vrot.slane %v3502, 4
        %v4454 = vsel %vm3199, %v4452, %v4453
        %v4455 = vrot.slane %v3503, 4
        %v4456 = vsel %vm3199, %v4453, %v4455
        %v4457 = vrot.slane %v3504, 4
        %v4458 = vrot.slane %v3505, 4
        %v4459 = vsel %vm3199, %v4457, %v4458
        %v4460 = vrot.slane %v3506, 4
        %v4461 = vsel %vm3199, %v4458, %v4460
        %v4462 = vrot.slane %v3507, 4
        %v4463 = vrot.slane %v3508, 4
        %v4464 = vsel %vm3199, %v4462, %v4463
        %v4465 = vrot.slane %v3509, 4
        %v4466 = vsel %vm3199, %v4463, %v4465
        %v4467 = vrot.slane %v3510, 4
        %v4468 = vrot.slane %v3511, 4
        %v4469 = vsel %vm3199, %v4467, %v4468
        %v4470 = vrot.slane %v3512, 4
        %v4471 = vsel %vm3199, %v4468, %v4470
        %v4472 = vrot.slane %v3513, 4
        %v4473 = vrot.slane %v3514, 4
        %v4474 = vsel %vm3199, %v4472, %v4473
        %v4475 = vrot.slane %v3515, 4
        %v4476 = vsel %vm3199, %v4473, %v4475
        %v4477 = vrot.slane %v3516, 4
        %v4478 = vrot.slane %v3517, 4
        %v4479 = vsel %vm3199, %v4477, %v4478
        %v4480 = vrot.slane %v3518, 4
        %v4481 = vsel %vm3199, %v4478, %v4480
        %v4482 = vrot.slane %v3519, 4
        %v4483 = vrot.slane %v3520, 4
        %v4484 = vsel %vm3199, %v4482, %v4483
        %v4485 = vrot.slane %v3521, 4
        %v4486 = vsel %vm3199, %v4483, %v4485
        %v4487 = vrot.slane %v3522, 4
        %v4488 = vrot.slane %v3523, 4
        %v4489 = vsel %vm3199, %v4487, %v4488
        %v4490 = vrot.slane %v3524, 4
        %v4491 = vsel %vm3199, %v4488, %v4490
        %v4492 = vrot.slane %v3525, 4
        %v4493 = vrot.slane %v3526, 4
        %v4494 = vsel %vm3199, %v4492, %v4493
        %v4495 = vrot.slane %v3527, 4
        %v4496 = vsel %vm3199, %v4493, %v4495
        %v4497 = vrot.slane %v3528, 4
        %v4498 = vrot.slane %v3529, 4
        %v4499 = vsel %vm3199, %v4497, %v4498
        %v4500 = vrot.slane %v3530, 4
        %v4501 = vsel %vm3199, %v4498, %v4500
        %v4502 = vrot.slane %v3531, 4
        %v4503 = vrot.slane %v3532, 4
        %v4504 = vsel %vm3199, %v4502, %v4503
        %v4505 = vrot.slane %v3533, 4
        %v4506 = vsel %vm3199, %v4503, %v4505
        %v4507 = vrot.slane %v3534, 4
        %v4508 = vrot.slane %v3535, 4
        %v4509 = vsel %vm3199, %v4507, %v4508
        %v4510 = vrot.slane %v3536, 4
        %v4511 = vsel %vm3199, %v4508, %v4510
        %v4512 = vrot.slane %v3537, 4
        %v4513 = vrot.slane %v3538, 4
        %v4514 = vsel %vm3199, %v4512, %v4513
        %v4515 = vrot.slane %v3539, 4
        %v4516 = vsel %vm3199, %v4513, %v4515
        %v4517 = vrot.slane %v3540, 4
        %v4518 = vrot.slane %v3541, 4
        %v4519 = vsel %vm3199, %v4517, %v4518
        %v4520 = vrot.slane %v3542, 4
        %v4521 = vsel %vm3199, %v4518, %v4520
        %v4522 = vrot.slane %v3543, 4
        %v4523 = vrot.slane %v3544, 4
        %v4524 = vsel %vm3199, %v4522, %v4523
        %v4525 = vrot.slane %v3545, 4
        %v4526 = vsel %vm3199, %v4523, %v4525
        %v4527 = vrot.slane %v3546, 4
        %v4528 = vrot.slane %v3547, 4
        %v4529 = vsel %vm3199, %v4527, %v4528
        %v4530 = vrot.slane %v3548, 4
        %v4531 = vsel %vm3199, %v4528, %v4530
        %v4532 = vrot.slane %v3549, 4
        %v4533 = vrot.slane %v3550, 4
        %v4534 = vsel %vm3199, %v4532, %v4533
        %v4535 = vrot.slane %v3551, 4
        %v4536 = vsel %vm3199, %v4533, %v4535
        %v4537 = vrot.slane %v3552, 4
        %v4538 = vrot.slane %v3553, 4
        %v4539 = vsel %vm3199, %v4537, %v4538
        %v4540 = vrot.slane %v3554, 4
        %v4541 = vsel %vm3199, %v4538, %v4540
        %v4542 = vrot.slane %v3555, 4
        %v4543 = vrot.slane %v3556, 4
        %v4544 = vsel %vm3199, %v4542, %v4543
        %v4545 = vrot.slane %v3557, 4
        %v4546 = vsel %vm3199, %v4543, %v4545
        %v4547 = vrot.slane %v3558, 4
        %v4548 = vrot.slane %v3559, 4
        %v4549 = vsel %vm3199, %v4547, %v4548
        %v4550 = vrot.slane %v3560, 4
        %v4551 = vsel %vm3199, %v4548, %v4550
        %v4552 = vrot.slane %v3561, 4
        %v4553 = vrot.slane %v3562, 4
        %v4554 = vsel %vm3199, %v4552, %v4553
        %v4555 = vrot.slane %v3563, 4
        %v4556 = vsel %vm3199, %v4553, %v4555
        %v4641 = vmax.f32 %v3480, %v4419
        %v4642 = vmax.f32 %v3481, %v4421
        %v4643 = vmax.f32 %v3482, %v4420
        %v4644 = vmax.f32 %v3483, %v4424
        %v4645 = vmax.f32 %v3484, %v4426
        %v4646 = vmax.f32 %v3485, %v4425
        %v4647 = vmax.f32 %v3486, %v4429
        %v4648 = vmax.f32 %v3487, %v4431
        %v4649 = vmax.f32 %v3488, %v4430
        %v4650 = vmax.f32 %v3489, %v4434
        %v4651 = vmax.f32 %v3490, %v4436
        %v4652 = vmax.f32 %v3491, %v4435
        %v4653 = vmax.f32 %v3492, %v4439
        %v4654 = vmax.f32 %v3493, %v4441
        %v4655 = vmax.f32 %v3494, %v4440
        %v4656 = vmax.f32 %v3495, %v4444
        %v4657 = vmax.f32 %v3496, %v4446
        %v4658 = vmax.f32 %v3497, %v4445
        %v4659 = vmax.f32 %v3498, %v4449
        %v4660 = vmax.f32 %v3499, %v4451
        %v4661 = vmax.f32 %v3500, %v4450
        %v4662 = vmax.f32 %v3501, %v4454
        %v4663 = vmax.f32 %v3502, %v4456
        %v4664 = vmax.f32 %v3503, %v4455
        %v4665 = vmax.f32 %v3504, %v4459
        %v4666 = vmax.f32 %v3505, %v4461
        %v4667 = vmax.f32 %v3506, %v4460
        %v4668 = vmax.f32 %v3507, %v4464
        %v4669 = vmax.f32 %v3508, %v4466
        %v4670 = vmax.f32 %v3509, %v4465
        %v4671 = vmax.f32 %v3510, %v4469
        %v4672 = vmax.f32 %v3511, %v4471
        %v4673 = vmax.f32 %v3512, %v4470
        %v4674 = vmax.f32 %v3513, %v4474
        %v4675 = vmax.f32 %v3514, %v4476
        %v4676 = vmax.f32 %v3515, %v4475
        %v4677 = vmax.f32 %v3516, %v4479
        %v4678 = vmax.f32 %v3517, %v4481
        %v4679 = vmax.f32 %v3518, %v4480
        %v4680 = vmax.f32 %v3519, %v4484
        %v4681 = vmax.f32 %v3520, %v4486
        %v4682 = vmax.f32 %v3521, %v4485
        %v4683 = vmax.f32 %v3522, %v4489
        %v4684 = vmax.f32 %v3523, %v4491
        %v4685 = vmax.f32 %v3524, %v4490
        %v4686 = vmax.f32 %v3525, %v4494
        %v4687 = vmax.f32 %v3526, %v4496
        %v4688 = vmax.f32 %v3527, %v4495
        %v4689 = vmax.f32 %v3528, %v4499
        %v4690 = vmax.f32 %v3529, %v4501
        %v4691 = vmax.f32 %v3530, %v4500
        %v4692 = vmax.f32 %v3531, %v4504
        %v4693 = vmax.f32 %v3532, %v4506
        %v4694 = vmax.f32 %v3533, %v4505
        %v4695 = vmax.f32 %v3534, %v4509
        %v4696 = vmax.f32 %v3535, %v4511
        %v4697 = vmax.f32 %v3536, %v4510
        %v4698 = vmax.f32 %v3537, %v4514
        %v4699 = vmax.f32 %v3538, %v4516
        %v4700 = vmax.f32 %v3539, %v4515
        %v4701 = vmax.f32 %v3540, %v4519
        %v4702 = vmax.f32 %v3541, %v4521
        %v4703 = vmax.f32 %v3542, %v4520
        %v4704 = vmax.f32 %v3543, %v4524
        %v4705 = vmax.f32 %v3544, %v4526
        %v4706 = vmax.f32 %v3545, %v4525
        %v4707 = vmax.f32 %v3546, %v4529
        %v4708 = vmax.f32 %v3547, %v4531
        %v4709 = vmax.f32 %v3548, %v4530
        %v4710 = vmax.f32 %v3549, %v4534
        %v4711 = vmax.f32 %v3550, %v4536
        %v4712 = vmax.f32 %v3551, %v4535
        %v4713 = vmax.f32 %v3552, %v4539
        %v4714 = vmax.f32 %v3553, %v4541
        %v4715 = vmax.f32 %v3554, %v4540
        %v4716 = vmax.f32 %v3555, %v4544
        %v4717 = vmax.f32 %v3556, %v4546
        %v4718 = vmax.f32 %v3557, %v4545
        %v4719 = vmax.f32 %v3558, %v4549
        %v4720 = vmax.f32 %v3559, %v4551
        %v4721 = vmax.f32 %v3560, %v4550
        %v4722 = vmax.f32 %v3561, %v4554
        %v4723 = vmax.f32 %v3562, %v4556
        %v4724 = vmax.f32 %v3563, %v4555
        %v4725 = vmax.f32 %v4641, %v4644
        %v4726 = vmax.f32 %v4642, %v4645
        %v4727 = vmax.f32 %v4643, %v4646
        %v4728 = vmax.f32 %v4644, %v4647
        %v4729 = vmax.f32 %v4645, %v4648
        %v4730 = vmax.f32 %v4646, %v4649
        %v4731 = vmax.f32 %v4647, %v4650
        %v4732 = vmax.f32 %v4648, %v4651
        %v4733 = vmax.f32 %v4649, %v4652
        %v4734 = vmax.f32 %v4650, %v4653
        %v4735 = vmax.f32 %v4651, %v4654
        %v4736 = vmax.f32 %v4652, %v4655
        %v4737 = vmax.f32 %v4653, %v4656
        %v4738 = vmax.f32 %v4654, %v4657
        %v4739 = vmax.f32 %v4655, %v4658
        %v4740 = vmax.f32 %v4656, %v4659
        %v4741 = vmax.f32 %v4657, %v4660
        %v4742 = vmax.f32 %v4658, %v4661
        %v4743 = vmax.f32 %v4659, %v4662
        %v4744 = vmax.f32 %v4660, %v4663
        %v4745 = vmax.f32 %v4661, %v4664
        %v4746 = vmax.f32 %v4662, %v4665
        %v4747 = vmax.f32 %v4663, %v4666
        %v4748 = vmax.f32 %v4664, %v4667
        %v4749 = vmax.f32 %v4665, %v4668
        %v4750 = vmax.f32 %v4666, %v4669
        %v4751 = vmax.f32 %v4667, %v4670
        %v4752 = vmax.f32 %v4668, %v4671
        %v4753 = vmax.f32 %v4669, %v4672
        %v4754 = vmax.f32 %v4670, %v4673
        %v4755 = vmax.f32 %v4671, %v4674
        %v4756 = vmax.f32 %v4672, %v4675
        %v4757 = vmax.f32 %v4673, %v4676
        %v4758 = vmax.f32 %v4674, %v4677
        %v4759 = vmax.f32 %v4675, %v4678
        %v4760 = vmax.f32 %v4676, %v4679
        %v4761 = vmax.f32 %v4677, %v4680
        %v4762 = vmax.f32 %v4678, %v4681
        %v4763 = vmax.f32 %v4679, %v4682
        %v4764 = vmax.f32 %v4680, %v4683
        %v4765 = vmax.f32 %v4681, %v4684
        %v4766 = vmax.f32 %v4682, %v4685
        %v4767 = vmax.f32 %v4683, %v4686
        %v4768 = vmax.f32 %v4684, %v4687
        %v4769 = vmax.f32 %v4685, %v4688
        %v4770 = vmax.f32 %v4686, %v4689
        %v4771 = vmax.f32 %v4687, %v4690
        %v4772 = vmax.f32 %v4688, %v4691
        %v4773 = vmax.f32 %v4689, %v4692
        %v4774 = vmax.f32 %v4690, %v4693
        %v4775 = vmax.f32 %v4691, %v4694
        %v4776 = vmax.f32 %v4692, %v4695
        %v4777 = vmax.f32 %v4693, %v4696
        %v4778 = vmax.f32 %v4694, %v4697
        %v4779 = vmax.f32 %v4695, %v4698
        %v4780 = vmax.f32 %v4696, %v4699
        %v4781 = vmax.f32 %v4697, %v4700
        %v4782 = vmax.f32 %v4698, %v4701
        %v4783 = vmax.f32 %v4699, %v4702
        %v4784 = vmax.f32 %v4700, %v4703
        %v4785 = vmax.f32 %v4701, %v4704
        %v4786 = vmax.f32 %v4702, %v4705
        %v4787 = vmax.f32 %v4703, %v4706
        %v4788 = vmax.f32 %v4704, %v4707
        %v4789 = vmax.f32 %v4705, %v4708
        %v4790 = vmax.f32 %v4706, %v4709
        %v4791 = vmax.f32 %v4707, %v4710
        %v4792 = vmax.f32 %v4708, %v4711
        %v4793 = vmax.f32 %v4709, %v4712
        %v4794 = vmax.f32 %v4710, %v4713
        %v4795 = vmax.f32 %v4711, %v4714
        %v4796 = vmax.f32 %v4712, %v4715
        %v4797 = vmax.f32 %v4713, %v4716
        %v4798 = vmax.f32 %v4714, %v4717
        %v4799 = vmax.f32 %v4715, %v4718
        %v4800 = vmax.f32 %v4716, %v4719
        %v4801 = vmax.f32 %v4717, %v4720
        %v4802 = vmax.f32 %v4718, %v4721
        %v4803 = vmax.f32 %v4725, %v4647
        %v4804 = vmax.f32 %v4726, %v4648
        %v4805 = vmax.f32 %v4727, %v4649
        %v4806 = vmax.f32 %v4728, %v4650
        %v4807 = vmax.f32 %v4729, %v4651
        %v4808 = vmax.f32 %v4730, %v4652
        %v4809 = vmax.f32 %v4731, %v4653
        %v4810 = vmax.f32 %v4732, %v4654
        %v4811 = vmax.f32 %v4733, %v4655
        %v4812 = vmax.f32 %v4734, %v4656
        %v4813 = vmax.f32 %v4735, %v4657
        %v4814 = vmax.f32 %v4736, %v4658
        %v4815 = vmax.f32 %v4737, %v4659
        %v4816 = vmax.f32 %v4738, %v4660
        %v4817 = vmax.f32 %v4739, %v4661
        %v4818 = vmax.f32 %v4740, %v4662
        %v4819 = vmax.f32 %v4741, %v4663
        %v4820 = vmax.f32 %v4742, %v4664
        %v4821 = vmax.f32 %v4743, %v4665
        %v4822 = vmax.f32 %v4744, %v4666
        %v4823 = vmax.f32 %v4745, %v4667
        %v4824 = vmax.f32 %v4746, %v4668
        %v4825 = vmax.f32 %v4747, %v4669
        %v4826 = vmax.f32 %v4748, %v4670
        %v4827 = vmax.f32 %v4749, %v4671
        %v4828 = vmax.f32 %v4750, %v4672
        %v4829 = vmax.f32 %v4751, %v4673
        %v4830 = vmax.f32 %v4752, %v4674
        %v4831 = vmax.f32 %v4753, %v4675
        %v4832 = vmax.f32 %v4754, %v4676
        %v4833 = vmax.f32 %v4755, %v4677
        %v4834 = vmax.f32 %v4756, %v4678
        %v4835 = vmax.f32 %v4757, %v4679
        %v4836 = vmax.f32 %v4758, %v4680
        %v4837 = vmax.f32 %v4759, %v4681
        %v4838 = vmax.f32 %v4760, %v4682
        %v4839 = vmax.f32 %v4761, %v4683
        %v4840 = vmax.f32 %v4762, %v4684
        %v4841 = vmax.f32 %v4763, %v4685
        %v4842 = vmax.f32 %v4764, %v4686
        %v4843 = vmax.f32 %v4765, %v4687
        %v4844 = vmax.f32 %v4766, %v4688
        %v4845 = vmax.f32 %v4767, %v4689
        %v4846 = vmax.f32 %v4768, %v4690
        %v4847 = vmax.f32 %v4769, %v4691
        %v4848 = vmax.f32 %v4770, %v4692
        %v4849 = vmax.f32 %v4771, %v4693
        %v4850 = vmax.f32 %v4772, %v4694
        %v4851 = vmax.f32 %v4773, %v4695
        %v4852 = vmax.f32 %v4774, %v4696
        %v4853 = vmax.f32 %v4775, %v4697
        %v4854 = vmax.f32 %v4776, %v4698
        %v4855 = vmax.f32 %v4777, %v4699
        %v4856 = vmax.f32 %v4778, %v4700
        %v4857 = vmax.f32 %v4779, %v4701
        %v4858 = vmax.f32 %v4780, %v4702
        %v4859 = vmax.f32 %v4781, %v4703
        %v4860 = vmax.f32 %v4782, %v4704
        %v4861 = vmax.f32 %v4783, %v4705
        %v4862 = vmax.f32 %v4784, %v4706
        %v4863 = vmax.f32 %v4785, %v4707
        %v4864 = vmax.f32 %v4786, %v4708
        %v4865 = vmax.f32 %v4787, %v4709
        %v4866 = vmax.f32 %v4788, %v4710
        %v4867 = vmax.f32 %v4789, %v4711
        %v4868 = vmax.f32 %v4790, %v4712
        %v4869 = vmax.f32 %v4791, %v4713
        %v4870 = vmax.f32 %v4792, %v4714
        %v4871 = vmax.f32 %v4793, %v4715
        %v4872 = vmax.f32 %v4794, %v4716
        %v4873 = vmax.f32 %v4795, %v4717
        %v4874 = vmax.f32 %v4796, %v4718
        %v4875 = vmax.f32 %v4797, %v4719
        %v4876 = vmax.f32 %v4798, %v4720
        %v4877 = vmax.f32 %v4799, %v4721
        %v4878 = vmax.f32 %v4800, %v4722
        %v4879 = vmax.f32 %v4801, %v4723
        %v4880 = vmax.f32 %v4802, %v4724
        %v4881 = vmax.f32 %v4803, %v4809
        %v4882 = vmax.f32 %v4804, %v4810
        %v4883 = vmax.f32 %v4805, %v4811
        %v4884 = vmax.f32 %v4806, %v4812
        %v4885 = vmax.f32 %v4807, %v4813
        %v4886 = vmax.f32 %v4808, %v4814
        %v4887 = vmax.f32 %v4809, %v4815
        %v4888 = vmax.f32 %v4810, %v4816
        %v4889 = vmax.f32 %v4811, %v4817
        %v4890 = vmax.f32 %v4812, %v4818
        %v4891 = vmax.f32 %v4813, %v4819
        %v4892 = vmax.f32 %v4814, %v4820
        %v4893 = vmax.f32 %v4815, %v4821
        %v4894 = vmax.f32 %v4816, %v4822
        %v4895 = vmax.f32 %v4817, %v4823
        %v4896 = vmax.f32 %v4818, %v4824
        %v4897 = vmax.f32 %v4819, %v4825
        %v4898 = vmax.f32 %v4820, %v4826
        %v4899 = vmax.f32 %v4821, %v4827
        %v4900 = vmax.f32 %v4822, %v4828
        %v4901 = vmax.f32 %v4823, %v4829
        %v4902 = vmax.f32 %v4824, %v4830
        %v4903 = vmax.f32 %v4825, %v4831
        %v4904 = vmax.f32 %v4826, %v4832
        %v4905 = vmax.f32 %v4827, %v4833
        %v4906 = vmax.f32 %v4828, %v4834
        %v4907 = vmax.f32 %v4829, %v4835
        %v4908 = vmax.f32 %v4830, %v4836
        %v4909 = vmax.f32 %v4831, %v4837
        %v4910 = vmax.f32 %v4832, %v4838
        %v4911 = vmax.f32 %v4833, %v4839
        %v4912 = vmax.f32 %v4834, %v4840
        %v4913 = vmax.f32 %v4835, %v4841
        %v4914 = vmax.f32 %v4836, %v4842
        %v4915 = vmax.f32 %v4837, %v4843
        %v4916 = vmax.f32 %v4838, %v4844
        %v4917 = vmax.f32 %v4839, %v4845
        %v4918 = vmax.f32 %v4840, %v4846
        %v4919 = vmax.f32 %v4841, %v4847
        %v4920 = vmax.f32 %v4842, %v4848
        %v4921 = vmax.f32 %v4843, %v4849
        %v4922 = vmax.f32 %v4844, %v4850
        %v4923 = vmax.f32 %v4845, %v4851
        %v4924 = vmax.f32 %v4846, %v4852
        %v4925 = vmax.f32 %v4847, %v4853
        %v4926 = vmax.f32 %v4848, %v4854
        %v4927 = vmax.f32 %v4849, %v4855
        %v4928 = vmax.f32 %v4850, %v4856
        %v4929 = vmax.f32 %v4851, %v4857
        %v4930 = vmax.f32 %v4852, %v4858
        %v4931 = vmax.f32 %v4853, %v4859
        %v4932 = vmax.f32 %v4854, %v4860
        %v4933 = vmax.f32 %v4855, %v4861
        %v4934 = vmax.f32 %v4856, %v4862
        %v4935 = vmax.f32 %v4857, %v4863
        %v4936 = vmax.f32 %v4858, %v4864
        %v4937 = vmax.f32 %v4859, %v4865
        %v4938 = vmax.f32 %v4860, %v4866
        %v4939 = vmax.f32 %v4861, %v4867
        %v4940 = vmax.f32 %v4862, %v4868
        %v4941 = vmax.f32 %v4863, %v4869
        %v4942 = vmax.f32 %v4864, %v4870
        %v4943 = vmax.f32 %v4865, %v4871
        %v4944 = vmax.f32 %v4866, %v4872
        %v4945 = vmax.f32 %v4867, %v4873
        %v4946 = vmax.f32 %v4868, %v4874
        %v4947 = vmax.f32 %v4869, %v4875
        %v4948 = vmax.f32 %v4870, %v4876
        %v4949 = vmax.f32 %v4871, %v4877
        %v4950 = vmax.f32 %v4872, %v4878
        %v4951 = vmax.f32 %v4873, %v4879
        %v4952 = vmax.f32 %v4874, %v4880
        %v4953 = vmax.f32 %v4881, %v4893
        %v4954 = vmax.f32 %v4882, %v4894
        %v4955 = vmax.f32 %v4883, %v4895
        %v4956 = vmax.f32 %v4884, %v4896
        %v4957 = vmax.f32 %v4885, %v4897
        %v4958 = vmax.f32 %v4886, %v4898
        %v4959 = vmax.f32 %v4887, %v4899
        %v4960 = vmax.f32 %v4888, %v4900
        %v4961 = vmax.f32 %v4889, %v4901
        %v4962 = vmax.f32 %v4890, %v4902
        %v4963 = vmax.f32 %v4891, %v4903
        %v4964 = vmax.f32 %v4892, %v4904
        %v4965 = vmax.f32 %v4893, %v4905
        %v4966 = vmax.f32 %v4894, %v4906
        %v4967 = vmax.f32 %v4895, %v4907
        %v4968 = vmax.f32 %v4896, %v4908
        %v4969 = vmax.f32 %v4897, %v4909
        %v4970 = vmax.f32 %v4898, %v4910
        %v4971 = vmax.f32 %v4899, %v4911
        %v4972 = vmax.f32 %v4900, %v4912
        %v4973 = vmax.f32 %v4901, %v4913
        %v4974 = vmax.f32 %v4902, %v4914
        %v4975 = vmax.f32 %v4903, %v4915
        %v4976 = vmax.f32 %v4904, %v4916
        %v4977 = vmax.f32 %v4905, %v4917
        %v4978 = vmax.f32 %v4906, %v4918
        %v4979 = vmax.f32 %v4907, %v4919
        %v4980 = vmax.f32 %v4908, %v4920
        %v4981 = vmax.f32 %v4909, %v4921
        %v4982 = vmax.f32 %v4910, %v4922
        %v4983 = vmax.f32 %v4911, %v4923
        %v4984 = vmax.f32 %v4912, %v4924
        %v4985 = vmax.f32 %v4913, %v4925
        %v4986 = vmax.f32 %v4914, %v4926
        %v4987 = vmax.f32 %v4915, %v4927
        %v4988 = vmax.f32 %v4916, %v4928
        %v4989 = vmax.f32 %v4917, %v4929
        %v4990 = vmax.f32 %v4918, %v4930
        %v4991 = vmax.f32 %v4919, %v4931
        %v4992 = vmax.f32 %v4920, %v4932
        %v4993 = vmax.f32 %v4921, %v4933
        %v4994 = vmax.f32 %v4922, %v4934
        %v4995 = vmax.f32 %v4923, %v4935
        %v4996 = vmax.f32 %v4924, %v4936
        %v4997 = vmax.f32 %v4925, %v4937
        %v4998 = vmax.f32 %v4926, %v4938
        %v4999 = vmax.f32 %v4927, %v4939
        %v5000 = vmax.f32 %v4928, %v4940
        %v5001 = vmax.f32 %v4929, %v4941
        %v5002 = vmax.f32 %v4930, %v4942
        %v5003 = vmax.f32 %v4931, %v4943
        %v5004 = vmax.f32 %v4932, %v4944
        %v5005 = vmax.f32 %v4933, %v4945
        %v5006 = vmax.f32 %v4934, %v4946
        %v5007 = vmax.f32 %v4935, %v4947
        %v5008 = vmax.f32 %v4936, %v4948
        %v5009 = vmax.f32 %v4937, %v4949
        %v5010 = vmax.f32 %v4938, %v4950
        %v5011 = vmax.f32 %v4939, %v4951
        %v5012 = vmax.f32 %v4940, %v4952
        %v5013 = vmax.f32 %v4953, %v4965
        %v5014 = vmax.f32 %v4954, %v4966
        %v5015 = vmax.f32 %v4955, %v4967
        %v5016 = vmax.f32 %v4956, %v4968
        %v5017 = vmax.f32 %v4957, %v4969
        %v5018 = vmax.f32 %v4958, %v4970
        %v5019 = vmax.f32 %v4959, %v4971
        %v5020 = vmax.f32 %v4960, %v4972
        %v5021 = vmax.f32 %v4961, %v4973
        %v5022 = vmax.f32 %v4962, %v4974
        %v5023 = vmax.f32 %v4963, %v4975
        %v5024 = vmax.f32 %v4964, %v4976
        %v5025 = vmax.f32 %v4965, %v4977
        %v5026 = vmax.f32 %v4966, %v4978
        %v5027 = vmax.f32 %v4967, %v4979
        %v5028 = vmax.f32 %v4968, %v4980
        %v5029 = vmax.f32 %v4969, %v4981
        %v5030 = vmax.f32 %v4970, %v4982
        %v5031 = vmax.f32 %v4971, %v4983
        %v5032 = vmax.f32 %v4972, %v4984
        %v5033 = vmax.f32 %v4973, %v4985
        %v5034 = vmax.f32 %v4974, %v4986
        %v5035 = vmax.f32 %v4975, %v4987
        %v5036 = vmax.f32 %v4976, %v4988
        %v5037 = vmax.f32 %v4977, %v4989
        %v5038 = vmax.f32 %v4978, %v4990
        %v5039 = vmax.f32 %v4979, %v4991
        %v5040 = vmax.f32 %v4980, %v4992
        %v5041 = vmax.f32 %v4981, %v4993
        %v5042 = vmax.f32 %v4982, %v4994
        %v5043 = vmax.f32 %v4983, %v4995
        %v5044 = vmax.f32 %v4984, %v4996
        %v5045 = vmax.f32 %v4985, %v4997
        %v5046 = vmax.f32 %v4986, %v4998
        %v5047 = vmax.f32 %v4987, %v4999
        %v5048 = vmax.f32 %v4988, %v5000
        %v5049 = vmax.f32 %v4989, %v5001
        %v5050 = vmax.f32 %v4990, %v5002
        %v5051 = vmax.f32 %v4991, %v5003
        %v5052 = vmax.f32 %v4992, %v5004
        %v5053 = vmax.f32 %v4993, %v5005
        %v5054 = vmax.f32 %v4994, %v5006
        %v5055 = vmax.f32 %v4995, %v5007
        %v5056 = vmax.f32 %v4996, %v5008
        %v5057 = vmax.f32 %v4997, %v5009
        %v5058 = vmax.f32 %v4998, %v5010
        %v5059 = vmax.f32 %v4999, %v5011
        %v5060 = vmax.f32 %v5000, %v5012
        %v5109 = vrot.slane %v5013, 2
        %v5110 = vrot.slane %v5014, 2
        %v5111 = vsel %vm1771, %v5109, %v5110
        %v5112 = vrot.slane %v5015, 2
        %v5113 = vsel %vm1771, %v5110, %v5112
        %v5114 = vrot.slane %v5016, 2
        %v5115 = vrot.slane %v5017, 2
        %v5116 = vsel %vm1771, %v5114, %v5115
        %v5117 = vrot.slane %v5018, 2
        %v5118 = vsel %vm1771, %v5115, %v5117
        %v5119 = vrot.slane %v5019, 2
        %v5120 = vrot.slane %v5020, 2
        %v5121 = vsel %vm1771, %v5119, %v5120
        %v5122 = vrot.slane %v5021, 2
        %v5123 = vsel %vm1771, %v5120, %v5122
        %v5124 = vrot.slane %v5022, 2
        %v5125 = vrot.slane %v5023, 2
        %v5126 = vsel %vm1771, %v5124, %v5125
        %v5127 = vrot.slane %v5024, 2
        %v5128 = vsel %vm1771, %v5125, %v5127
        %v5129 = vrot.slane %v5025, 2
        %v5130 = vrot.slane %v5026, 2
        %v5131 = vsel %vm1771, %v5129, %v5130
        %v5132 = vrot.slane %v5027, 2
        %v5133 = vsel %vm1771, %v5130, %v5132
        %v5134 = vrot.slane %v5028, 2
        %v5135 = vrot.slane %v5029, 2
        %v5136 = vsel %vm1771, %v5134, %v5135
        %v5137 = vrot.slane %v5030, 2
        %v5138 = vsel %vm1771, %v5135, %v5137
        %v5139 = vrot.slane %v5031, 2
        %v5140 = vrot.slane %v5032, 2
        %v5141 = vsel %vm1771, %v5139, %v5140
        %v5142 = vrot.slane %v5033, 2
        %v5143 = vsel %vm1771, %v5140, %v5142
        %v5144 = vrot.slane %v5034, 2
        %v5145 = vrot.slane %v5035, 2
        %v5146 = vsel %vm1771, %v5144, %v5145
        %v5147 = vrot.slane %v5036, 2
        %v5148 = vsel %vm1771, %v5145, %v5147
        %v5149 = vrot.slane %v5037, 2
        %v5150 = vrot.slane %v5038, 2
        %v5151 = vsel %vm1771, %v5149, %v5150
        %v5152 = vrot.slane %v5039, 2
        %v5153 = vsel %vm1771, %v5150, %v5152
        %v5154 = vrot.slane %v5040, 2
        %v5155 = vrot.slane %v5041, 2
        %v5156 = vsel %vm1771, %v5154, %v5155
        %v5157 = vrot.slane %v5042, 2
        %v5158 = vsel %vm1771, %v5155, %v5157
        %v5159 = vrot.slane %v5043, 2
        %v5160 = vrot.slane %v5044, 2
        %v5161 = vsel %vm1771, %v5159, %v5160
        %v5162 = vrot.slane %v5045, 2
        %v5163 = vsel %vm1771, %v5160, %v5162
        %v5164 = vrot.slane %v5046, 2
        %v5165 = vrot.slane %v5047, 2
        %v5166 = vsel %vm1771, %v5164, %v5165
        %v5167 = vrot.slane %v5048, 2
        %v5168 = vsel %vm1771, %v5165, %v5167
        %v5169 = vrot.slane %v5049, 2
        %v5170 = vrot.slane %v5050, 2
        %v5171 = vsel %vm1771, %v5169, %v5170
        %v5172 = vrot.slane %v5051, 2
        %v5173 = vsel %vm1771, %v5170, %v5172
        %v5174 = vrot.slane %v5052, 2
        %v5175 = vrot.slane %v5053, 2
        %v5176 = vsel %vm1771, %v5174, %v5175
        %v5177 = vrot.slane %v5054, 2
        %v5178 = vsel %vm1771, %v5175, %v5177
        %v5179 = vrot.slane %v5055, 2
        %v5180 = vrot.slane %v5056, 2
        %v5181 = vsel %vm1771, %v5179, %v5180
        %v5182 = vrot.slane %v5057, 2
        %v5183 = vsel %vm1771, %v5180, %v5182
        %v5184 = vrot.slane %v5058, 2
        %v5185 = vrot.slane %v5059, 2
        %v5186 = vsel %vm1771, %v5184, %v5185
        %v5187 = vrot.slane %v5060, 2
        %v5188 = vsel %vm1771, %v5185, %v5187
        %v5221 = vpack.c.bf16 %v5113, %v5111
        %v5222 = vpack.c.bf16 %v5118, %v5116
        %v5223 = vpack.c.bf16 %v5123, %v5121
        %v5224 = vpack.c.bf16 %v5128, %v5126
        %v5225 = vpack.c.bf16 %v5133, %v5131
        %v5226 = vpack.c.bf16 %v5138, %v5136
        %v5227 = vpack.c.bf16 %v5143, %v5141
        %v5228 = vpack.c.bf16 %v5148, %v5146
        %v5229 = vpack.c.bf16 %v5153, %v5151
        %v5230 = vpack.c.bf16 %v5158, %v5156
        %v5231 = vpack.c.bf16 %v5163, %v5161
        %v5232 = vpack.c.bf16 %v5168, %v5166
        %v5233 = vpack.c.bf16 %v5173, %v5171
        %v5234 = vpack.c.bf16 %v5178, %v5176
        %v5235 = vpack.c.bf16 %v5183, %v5181
        %v5236 = vpack.c.bf16 %v5188, %v5186
        %v5237 = vld [vmem:[#allocation8 + $0x180] sm:$0xff]
        %v5238 = vld [vmem:[#allocation8 + $0x188] sm:$0xff]
        %v5239 = vld [vmem:[#allocation8 + $0x190] sm:$0xff]
        %v5240 = vld [vmem:[#allocation8 + $0x198] sm:$0xff]
        %v5241 = vld [vmem:[#allocation8 + $0x1a0] sm:$0xff]
        %v5242 = vld [vmem:[#allocation8 + $0x1a8] sm:$0xff]
        %v5243 = vld [vmem:[#allocation8 + $0x1b0] sm:$0xff]
        %v5244 = vld [vmem:[#allocation8 + $0x1b8] sm:$0xff]
        %v5245 = vld [vmem:[#allocation8 + $0x1c0] sm:$0xff]
        %v5246 = vld [vmem:[#allocation8 + $0x1c8] sm:$0xff]
        %v5247 = vld [vmem:[#allocation8 + $0x1d0] sm:$0xff]
        %v5248 = vld [vmem:[#allocation8 + $0x1d8] sm:$0xff]
        %v5249 = vld [vmem:[#allocation8 + $0x1e0] sm:$0xff]
        %v5250 = vld [vmem:[#allocation8 + $0x1e8] sm:$0xff]
        %v5251 = vld [vmem:[#allocation8 + $0x1f0] sm:$0xff]
        %v5252 = vld [vmem:[#allocation8 + $0x1f8] sm:$0xff]
        %v5269 = vunpack.c.l.b16 %v5237
        %v5270 = vunpack.c.h.b16 %v5237
        %v5271 = vunpack.c.l.b16 %v5238
        %v5272 = vunpack.c.h.b16 %v5238
        %v5273 = vunpack.c.l.b16 %v5239
        %v5274 = vunpack.c.h.b16 %v5239
        %v5275 = vunpack.c.l.b16 %v5240
        %v5276 = vunpack.c.h.b16 %v5240
        %v5277 = vunpack.c.l.b16 %v5241
        %v5278 = vunpack.c.h.b16 %v5241
        %v5279 = vunpack.c.l.b16 %v5242
        %v5280 = vunpack.c.h.b16 %v5242
        %v5281 = vunpack.c.l.b16 %v5243
        %v5282 = vunpack.c.h.b16 %v5243
        %v5283 = vunpack.c.l.b16 %v5244
        %v5284 = vunpack.c.h.b16 %v5244
        %v5285 = vunpack.c.l.b16 %v5245
        %v5286 = vunpack.c.h.b16 %v5245
        %v5287 = vunpack.c.l.b16 %v5246
        %v5288 = vunpack.c.h.b16 %v5246
        %v5289 = vunpack.c.l.b16 %v5247
        %v5290 = vunpack.c.h.b16 %v5247
        %v5291 = vunpack.c.l.b16 %v5248
        %v5292 = vunpack.c.h.b16 %v5248
        %v5293 = vunpack.c.l.b16 %v5249
        %v5294 = vunpack.c.h.b16 %v5249
        %v5295 = vunpack.c.l.b16 %v5250
        %v5296 = vunpack.c.h.b16 %v5250
        %v5297 = vunpack.c.l.b16 %v5251
        %v5298 = vunpack.c.h.b16 %v5251
        %v5299 = vunpack.c.l.b16 %v5252
        %v5300 = vunpack.c.h.b16 %v5252
        %v5301 = vpack.c.b16 %v5271, %v5269
        %v5302 = vpack.c.b16 %v5272, %v5270
        %v5303 = vpack.c.b16 %v5275, %v5273
        %v5304 = vpack.c.b16 %v5276, %v5274
        %v5305 = vpack.c.b16 %v5279, %v5277
        %v5306 = vpack.c.b16 %v5280, %v5278
        %v5307 = vpack.c.b16 %v5283, %v5281
        %v5308 = vpack.c.b16 %v5284, %v5282
        %v5309 = vpack.c.b16 %v5287, %v5285
        %v5310 = vpack.c.b16 %v5288, %v5286
        %v5311 = vpack.c.b16 %v5291, %v5289
        %v5312 = vpack.c.b16 %v5292, %v5290
        %v5313 = vpack.c.b16 %v5295, %v5293
        %v5314 = vpack.c.b16 %v5296, %v5294
        %v5315 = vpack.c.b16 %v5299, %v5297
        %v5316 = vpack.c.b16 %v5300, %v5298
        %5333 = vmatprep.subr.bf16.mxu0 %v5302
        %5334 = vmatpush1.bf16.msra.mxu0 %v5301
        %5335 = vmatprep.subr.bf16.mxu0 %v5304
        %5336 = vmatpush1.bf16.msra.mxu0 %v5303
        %5337 = vmatprep.subr.bf16.mxu0 %v5306
        %5338 = vmatpush1.bf16.msra.mxu0 %v5305
        %5339 = vmatprep.subr.bf16.mxu0 %v5308
        %5340 = vmatpush1.bf16.msra.mxu0 %v5307
        %5341 = vmatprep.subr.bf16.mxu0 %v5310
        %5342 = vmatpush1.bf16.msra.mxu0 %v5309
        %5343 = vmatprep.subr.bf16.mxu0 %v5312
        %5344 = vmatpush1.bf16.msra.mxu0 %v5311
        %5345 = vmatprep.subr.bf16.mxu0 %v5314
        %5346 = vmatpush1.bf16.msra.mxu0 %v5313
        %5347 = vmatprep.subr.bf16.mxu0 %v5316
        %5348 = vmatpush1.bf16.msra.mxu0 %v5315
        %5349 = vmatprep.subr.bf16.mxu0 0
        %5350 = vmatpush1.bf16.msra.mxu0 0
        %5351 = vmatprep.subr.bf16.mxu0 0
        %5352 = vmatpush1.bf16.msra.mxu0 0
        %5353 = vmatprep.subr.bf16.mxu0 0
        %5354 = vmatpush1.bf16.msra.mxu0 0
        %5355 = vmatprep.subr.bf16.mxu0 0
        %5356 = vmatpush1.bf16.msra.mxu0 0
        %5357 = vmatprep.subr.bf16.mxu0 0
        %5358 = vmatpush1.bf16.msra.mxu0 0
        %5359 = vmatprep.subr.bf16.mxu0 0
        %5360 = vmatpush1.bf16.msra.mxu0 0
        %5361 = vmatprep.subr.bf16.mxu0 0
        %5362 = vmatpush1.bf16.msra.mxu0 0
        %5363 = vmatprep.subr.bf16.mxu0 0
        %5364 = vmatpush1.bf16.msra.mxu0 0
        %5365 = vmatprep.mubr.bf16.mxu0 0
        %5366 = vmatmul.mubr.bf16.gmra.mrb[0].mxu0 %v5221
        %v5367 = vpop.f32.mrb[0].mxu0
        %v5368 = vadd.f32 0.0, %v5367
        %v5369 = vpop.f32.mrb[0].mxu0
        %v5370 = vadd.f32 0.0, %v5369
        %v5371 = vpop.f32.mrb[0].mxu0
        %v5372 = vadd.f32 0.0, %v5371
        %v5373 = vpop.f32.mrb[0].mxu0
        %v5374 = vadd.f32 0.0, %v5373
        %5375 = vmatprep.mubr.bf16.mxu0 0
        %5376 = vmatmul.mubr.bf16.gmra.mrb[0].mxu0 %v5222
        %v5377 = vpop.f32.mrb[0].mxu0
        %v5378 = vadd.f32 0.0, %v5377
        %v5379 = vpop.f32.mrb[0].mxu0
        %v5380 = vadd.f32 0.0, %v5379
        %v5381 = vpop.f32.mrb[0].mxu0
        %v5382 = vadd.f32 0.0, %v5381
        %v5383 = vpop.f32.mrb[0].mxu0
        %v5384 = vadd.f32 0.0, %v5383
        %5385 = vmatprep.mubr.bf16.mxu0 0
        %5386 = vmatmul.mubr.bf16.gmra.mrb[0].mxu0 %v5223
        %v5387 = vpop.f32.mrb[0].mxu0
        %v5388 = vadd.f32 0.0, %v5387
        %v5389 = vpop.f32.mrb[0].mxu0
        %v5390 = vadd.f32 0.0, %v5389
        %v5391 = vpop.f32.mrb[0].mxu0
        %v5392 = vadd.f32 0.0, %v5391
        %v5393 = vpop.f32.mrb[0].mxu0
        %v5394 = vadd.f32 0.0, %v5393
        %5395 = vmatprep.mubr.bf16.mxu0 0
        %5396 = vmatmul.mubr.bf16.gmra.mrb[0].mxu0 %v5224
        %v5397 = vpop.f32.mrb[0].mxu0
        %v5398 = vadd.f32 0.0, %v5397
        %v5399 = vpop.f32.mrb[0].mxu0
        %v5400 = vadd.f32 0.0, %v5399
        %v5401 = vpop.f32.mrb[0].mxu0
        %v5402 = vadd.f32 0.0, %v5401
        %v5403 = vpop.f32.mrb[0].mxu0
        %v5404 = vadd.f32 0.0, %v5403
        %5405 = vmatprep.mubr.bf16.mxu0 0
        %5406 = vmatmul.mubr.bf16.gmra.mrb[0].mxu0 %v5225
        %v5407 = vpop.f32.mrb[0].mxu0
        %v5408 = vadd.f32 0.0, %v5407
        %v5409 = vpop.f32.mrb[0].mxu0
        %v5410 = vadd.f32 0.0, %v5409
        %v5411 = vpop.f32.mrb[0].mxu0
        %v5412 = vadd.f32 0.0, %v5411
        %v5413 = vpop.f32.mrb[0].mxu0
        %v5414 = vadd.f32 0.0, %v5413
        %5415 = vmatprep.mubr.bf16.mxu0 0
        %5416 = vmatmul.mubr.bf16.gmra.mrb[0].mxu0 %v5226
        %v5417 = vpop.f32.mrb[0].mxu0
        %v5418 = vadd.f32 0.0, %v5417
        %v5419 = vpop.f32.mrb[0].mxu0
        %v5420 = vadd.f32 0.0, %v5419
        %v5421 = vpop.f32.mrb[0].mxu0
        %v5422 = vadd.f32 0.0, %v5421
        %v5423 = vpop.f32.mrb[0].mxu0
        %v5424 = vadd.f32 0.0, %v5423
        %5425 = vmatprep.mubr.bf16.mxu0 0
        %5426 = vmatmul.mubr.bf16.gmra.mrb[0].mxu0 %v5227
        %v5427 = vpop.f32.mrb[0].mxu0
        %v5428 = vadd.f32 0.0, %v5427
        %v5429 = vpop.f32.mrb[0].mxu0
        %v5430 = vadd.f32 0.0, %v5429
        %v5431 = vpop.f32.mrb[0].mxu0
        %v5432 = vadd.f32 0.0, %v5431
        %v5433 = vpop.f32.mrb[0].mxu0
        %v5434 = vadd.f32 0.0, %v5433
        %5435 = vmatprep.mubr.bf16.mxu0 0
        %5436 = vmatmul.mubr.bf16.gmra.mrb[0].mxu0 %v5228
        %v5437 = vpop.f32.mrb[0].mxu0
        %v5438 = vadd.f32 0.0, %v5437
        %v5439 = vpop.f32.mrb[0].mxu0
        %v5440 = vadd.f32 0.0, %v5439
        %v5441 = vpop.f32.mrb[0].mxu0
        %v5442 = vadd.f32 0.0, %v5441
        %v5443 = vpop.f32.mrb[0].mxu0
        %v5444 = vadd.f32 0.0, %v5443
        %5445 = vmatprep.mubr.bf16.mxu0 0
        %5446 = vmatmul.mubr.bf16.gmra.mrb[0].mxu0 %v5229
        %v5447 = vpop.f32.mrb[0].mxu0
        %v5448 = vadd.f32 0.0, %v5447
        %v5449 = vpop.f32.mrb[0].mxu0
        %v5450 = vadd.f32 0.0, %v5449
        %v5451 = vpop.f32.mrb[0].mxu0
        %v5452 = vadd.f32 0.0, %v5451
        %v5453 = vpop.f32.mrb[0].mxu0
        %v5454 = vadd.f32 0.0, %v5453
        %5455 = vmatprep.mubr.bf16.mxu0 0
        %5456 = vmatmul.mubr.bf16.gmra.mrb[0].mxu0 %v5230
        %v5457 = vpop.f32.mrb[0].mxu0
        %v5458 = vadd.f32 0.0, %v5457
        %v5459 = vpop.f32.mrb[0].mxu0
        %v5460 = vadd.f32 0.0, %v5459
        %v5461 = vpop.f32.mrb[0].mxu0
        %v5462 = vadd.f32 0.0, %v5461
        %v5463 = vpop.f32.mrb[0].mxu0
        %v5464 = vadd.f32 0.0, %v5463
        %5465 = vmatprep.mubr.bf16.mxu0 0
        %5466 = vmatmul.mubr.bf16.gmra.mrb[0].mxu0 %v5231
        %v5467 = vpop.f32.mrb[0].mxu0
        %v5468 = vadd.f32 0.0, %v5467
        %v5469 = vpop.f32.mrb[0].mxu0
        %v5470 = vadd.f32 0.0, %v5469
        %v5471 = vpop.f32.mrb[0].mxu0
        %v5472 = vadd.f32 0.0, %v5471
        %v5473 = vpop.f32.mrb[0].mxu0
        %v5474 = vadd.f32 0.0, %v5473
        %5475 = vmatprep.mubr.bf16.mxu0 0
        %5476 = vmatmul.mubr.bf16.gmra.mrb[0].mxu0 %v5232
        %v5477 = vpop.f32.mrb[0].mxu0
        %v5478 = vadd.f32 0.0, %v5477
        %v5479 = vpop.f32.mrb[0].mxu0
        %v5480 = vadd.f32 0.0, %v5479
        %v5481 = vpop.f32.mrb[0].mxu0
        %v5482 = vadd.f32 0.0, %v5481
        %v5483 = vpop.f32.mrb[0].mxu0
        %v5484 = vadd.f32 0.0, %v5483
        %5485 = vmatprep.mubr.bf16.mxu0 0
        %5486 = vmatmul.mubr.bf16.gmra.mrb[0].mxu0 %v5233
        %v5487 = vpop.f32.mrb[0].mxu0
        %v5488 = vadd.f32 0.0, %v5487
        %v5489 = vpop.f32.mrb[0].mxu0
        %v5490 = vadd.f32 0.0, %v5489
        %v5491 = vpop.f32.mrb[0].mxu0
        %v5492 = vadd.f32 0.0, %v5491
        %v5493 = vpop.f32.mrb[0].mxu0
        %v5494 = vadd.f32 0.0, %v5493
        %5495 = vmatprep.mubr.bf16.mxu0 0
        %5496 = vmatmul.mubr.bf16.gmra.mrb[0].mxu0 %v5234
        %v5497 = vpop.f32.mrb[0].mxu0
        %v5498 = vadd.f32 0.0, %v5497
        %v5499 = vpop.f32.mrb[0].mxu0
        %v5500 = vadd.f32 0.0, %v5499
        %v5501 = vpop.f32.mrb[0].mxu0
        %v5502 = vadd.f32 0.0, %v5501
        %v5503 = vpop.f32.mrb[0].mxu0
        %v5504 = vadd.f32 0.0, %v5503
        %5505 = vmatprep.mubr.bf16.mxu0 0
        %5506 = vmatmul.mubr.bf16.gmra.mrb[0].mxu0 %v5235
        %v5507 = vpop.f32.mrb[0].mxu0
        %v5508 = vadd.f32 0.0, %v5507
        %v5509 = vpop.f32.mrb[0].mxu0
        %v5510 = vadd.f32 0.0, %v5509
        %v5511 = vpop.f32.mrb[0].mxu0
        %v5512 = vadd.f32 0.0, %v5511
        %v5513 = vpop.f32.mrb[0].mxu0
        %v5514 = vadd.f32 0.0, %v5513
        %5515 = vmatprep.mubr.bf16.mxu0 0
        %5516 = vmatmul.mubr.bf16.gmra.mrb[0].mxu0 %v5236
        %v5517 = vpop.f32.mrb[0].mxu0
        %v5518 = vadd.f32 0.0, %v5517
        %v5519 = vpop.f32.mrb[0].mxu0
        %v5520 = vadd.f32 0.0, %v5519
        %v5521 = vpop.f32.mrb[0].mxu0
        %v5522 = vadd.f32 0.0, %v5521
        %v5523 = vpop.f32.mrb[0].mxu0
        %v5524 = vadd.f32 0.0, %v5523
        %5525 = vdwg.mxu0
        %v5526 = vadd.f32 %v4269, %v5368
        %v5527 = vadd.f32 %v4270, %v5370
        %v5528 = vadd.f32 %v4271, %v5372
        %v5529 = vadd.f32 %v4272, %v5374
        %v5530 = vadd.f32 %v4273, %v5378
        %v5531 = vadd.f32 %v4274, %v5380
        %v5532 = vadd.f32 %v4275, %v5382
        %v5533 = vadd.f32 %v4276, %v5384
        %v5534 = vadd.f32 %v4277, %v5388
        %v5535 = vadd.f32 %v4278, %v5390
        %v5536 = vadd.f32 %v4279, %v5392
        %v5537 = vadd.f32 %v4280, %v5394
        %v5538 = vadd.f32 %v4281, %v5398
        %v5539 = vadd.f32 %v4282, %v5400
        %v5540 = vadd.f32 %v4283, %v5402
        %v5541 = vadd.f32 %v4284, %v5404
        %v5542 = vadd.f32 %v4285, %v5408
        %v5543 = vadd.f32 %v4286, %v5410
        %v5544 = vadd.f32 %v4287, %v5412
        %v5545 = vadd.f32 %v4288, %v5414
        %v5546 = vadd.f32 %v4289, %v5418
        %v5547 = vadd.f32 %v4290, %v5420
        %v5548 = vadd.f32 %v4291, %v5422
        %v5549 = vadd.f32 %v4292, %v5424
        %v5550 = vadd.f32 %v4293, %v5428
        %v5551 = vadd.f32 %v4294, %v5430
        %v5552 = vadd.f32 %v4295, %v5432
        %v5553 = vadd.f32 %v4296, %v5434
        %v5554 = vadd.f32 %v4297, %v5438
        %v5555 = vadd.f32 %v4298, %v5440
        %v5556 = vadd.f32 %v4299, %v5442
        %v5557 = vadd.f32 %v4300, %v5444
        %v5558 = vadd.f32 %v4301, %v5448
        %v5559 = vadd.f32 %v4302, %v5450
        %v5560 = vadd.f32 %v4303, %v5452
        %v5561 = vadd.f32 %v4304, %v5454
        %v5562 = vadd.f32 %v4305, %v5458
        %v5563 = vadd.f32 %v4306, %v5460
        %v5564 = vadd.f32 %v4307, %v5462
        %v5565 = vadd.f32 %v4308, %v5464
        %v5566 = vadd.f32 %v4309, %v5468
        %v5567 = vadd.f32 %v4310, %v5470
        %v5568 = vadd.f32 %v4311, %v5472
        %v5569 = vadd.f32 %v4312, %v5474
        %v5570 = vadd.f32 %v4313, %v5478
        %v5571 = vadd.f32 %v4314, %v5480
        %v5572 = vadd.f32 %v4315, %v5482
        %v5573 = vadd.f32 %v4316, %v5484
        %v5574 = vadd.f32 %v4317, %v5488
        %v5575 = vadd.f32 %v4318, %v5490
        %v5576 = vadd.f32 %v4319, %v5492
        %v5577 = vadd.f32 %v4320, %v5494
        %v5578 = vadd.f32 %v4321, %v5498
        %v5579 = vadd.f32 %v4322, %v5500
        %v5580 = vadd.f32 %v4323, %v5502
        %v5581 = vadd.f32 %v4324, %v5504
        %v5582 = vadd.f32 %v4325, %v5508
        %v5583 = vadd.f32 %v4326, %v5510
        %v5584 = vadd.f32 %v4327, %v5512
        %v5585 = vadd.f32 %v4328, %v5514
        %v5586 = vadd.f32 %v4329, %v5518
        %v5587 = vadd.f32 %v4330, %v5520
        %v5588 = vadd.f32 %v4331, %v5522
        %v5589 = vadd.f32 %v4332, %v5524
        %v5590 = vld [vmem:[%s4] sm:$0x3]
        %v5592 = vlaneseq
        %v5593 = vshrl.u32 %v5592, 7
        %v5594 = vsub.s32 0, %v5593
        %v5595 = vrot.slane %v5590, %v5594
        %v5596 = vlaneseq
        %v5597 = vshrl.u32 %v5596, 7
        %v5598 = vsub.s32 1, %v5597
        %v5599 = vrot.slane %v5590, %v5598
        %v5602 = vadd.f32 %v5526, %v5595
        %v5603 = vadd.f32 %v5527, %v5599
        %v5604 = vadd.f32 %v5528, %v5595
        %v5605 = vadd.f32 %v5529, %v5599
        %v5606 = vadd.f32 %v5530, %v5595
        %v5607 = vadd.f32 %v5531, %v5599
        %v5608 = vadd.f32 %v5532, %v5595
        %v5609 = vadd.f32 %v5533, %v5599
        %v5610 = vadd.f32 %v5534, %v5595
        %v5611 = vadd.f32 %v5535, %v5599
        %v5612 = vadd.f32 %v5536, %v5595
        %v5613 = vadd.f32 %v5537, %v5599
        %v5614 = vadd.f32 %v5538, %v5595
        %v5615 = vadd.f32 %v5539, %v5599
        %v5616 = vadd.f32 %v5540, %v5595
        %v5617 = vadd.f32 %v5541, %v5599
        %v5618 = vadd.f32 %v5542, %v5595
        %v5619 = vadd.f32 %v5543, %v5599
        %v5620 = vadd.f32 %v5544, %v5595
        %v5621 = vadd.f32 %v5545, %v5599
        %v5622 = vadd.f32 %v5546, %v5595
        %v5623 = vadd.f32 %v5547, %v5599
        %v5624 = vadd.f32 %v5548, %v5595
        %v5625 = vadd.f32 %v5549, %v5599
        %v5626 = vadd.f32 %v5550, %v5595
        %v5627 = vadd.f32 %v5551, %v5599
        %v5628 = vadd.f32 %v5552, %v5595
        %v5629 = vadd.f32 %v5553, %v5599
        %v5630 = vadd.f32 %v5554, %v5595
        %v5631 = vadd.f32 %v5555, %v5599
        %v5632 = vadd.f32 %v5556, %v5595
        %v5633 = vadd.f32 %v5557, %v5599
        %v5634 = vadd.f32 %v5558, %v5595
        %v5635 = vadd.f32 %v5559, %v5599
        %v5636 = vadd.f32 %v5560, %v5595
        %v5637 = vadd.f32 %v5561, %v5599
        %v5638 = vadd.f32 %v5562, %v5595
        %v5639 = vadd.f32 %v5563, %v5599
        %v5640 = vadd.f32 %v5564, %v5595
        %v5641 = vadd.f32 %v5565, %v5599
        %v5642 = vadd.f32 %v5566, %v5595
        %v5643 = vadd.f32 %v5567, %v5599
        %v5644 = vadd.f32 %v5568, %v5595
        %v5645 = vadd.f32 %v5569, %v5599
        %v5646 = vadd.f32 %v5570, %v5595
        %v5647 = vadd.f32 %v5571, %v5599
        %v5648 = vadd.f32 %v5572, %v5595
        %v5649 = vadd.f32 %v5573, %v5599
        %v5650 = vadd.f32 %v5574, %v5595
        %v5651 = vadd.f32 %v5575, %v5599
        %v5652 = vadd.f32 %v5576, %v5595
        %v5653 = vadd.f32 %v5577, %v5599
        %v5654 = vadd.f32 %v5578, %v5595
        %v5655 = vadd.f32 %v5579, %v5599
        %v5656 = vadd.f32 %v5580, %v5595
        %v5657 = vadd.f32 %v5581, %v5599
        %v5658 = vadd.f32 %v5582, %v5595
        %v5659 = vadd.f32 %v5583, %v5599
        %v5660 = vadd.f32 %v5584, %v5595
        %v5661 = vadd.f32 %v5585, %v5599
        %v5662 = vadd.f32 %v5586, %v5595
        %v5663 = vadd.f32 %v5587, %v5599
        %v5664 = vadd.f32 %v5588, %v5595
        %v5665 = vadd.f32 %v5589, %v5599
        %v5666 = vsub.f32 0.0, %v5602
        %v5667 = vsub.f32 0.0, %v5603
        %v5668 = vsub.f32 0.0, %v5604
        %v5669 = vsub.f32 0.0, %v5605
        %v5670 = vsub.f32 0.0, %v5606
        %v5671 = vsub.f32 0.0, %v5607
        %v5672 = vsub.f32 0.0, %v5608
        %v5673 = vsub.f32 0.0, %v5609
        %v5674 = vsub.f32 0.0, %v5610
        %v5675 = vsub.f32 0.0, %v5611
        %v5676 = vsub.f32 0.0, %v5612
        %v5677 = vsub.f32 0.0, %v5613
        %v5678 = vsub.f32 0.0, %v5614
        %v5679 = vsub.f32 0.0, %v5615
        %v5680 = vsub.f32 0.0, %v5616
        %v5681 = vsub.f32 0.0, %v5617
        %v5682 = vsub.f32 0.0, %v5618
        %v5683 = vsub.f32 0.0, %v5619
        %v5684 = vsub.f32 0.0, %v5620
        %v5685 = vsub.f32 0.0, %v5621
        %v5686 = vsub.f32 0.0, %v5622
        %v5687 = vsub.f32 0.0, %v5623
        %v5688 = vsub.f32 0.0, %v5624
        %v5689 = vsub.f32 0.0, %v5625
        %v5690 = vsub.f32 0.0, %v5626
        %v5691 = vsub.f32 0.0, %v5627
        %v5692 = vsub.f32 0.0, %v5628
        %v5693 = vsub.f32 0.0, %v5629
        %v5694 = vsub.f32 0.0, %v5630
        %v5695 = vsub.f32 0.0, %v5631
        %v5696 = vsub.f32 0.0, %v5632
        %v5697 = vsub.f32 0.0, %v5633
        %v5698 = vsub.f32 0.0, %v5634
        %v5699 = vsub.f32 0.0, %v5635
        %v5700 = vsub.f32 0.0, %v5636
        %v5701 = vsub.f32 0.0, %v5637
        %v5702 = vsub.f32 0.0, %v5638
        %v5703 = vsub.f32 0.0, %v5639
        %v5704 = vsub.f32 0.0, %v5640
        %v5705 = vsub.f32 0.0, %v5641
        %v5706 = vsub.f32 0.0, %v5642
        %v5707 = vsub.f32 0.0, %v5643
        %v5708 = vsub.f32 0.0, %v5644
        %v5709 = vsub.f32 0.0, %v5645
        %v5710 = vsub.f32 0.0, %v5646
        %v5711 = vsub.f32 0.0, %v5647
        %v5712 = vsub.f32 0.0, %v5648
        %v5713 = vsub.f32 0.0, %v5649
        %v5714 = vsub.f32 0.0, %v5650
        %v5715 = vsub.f32 0.0, %v5651
        %v5716 = vsub.f32 0.0, %v5652
        %v5717 = vsub.f32 0.0, %v5653
        %v5718 = vsub.f32 0.0, %v5654
        %v5719 = vsub.f32 0.0, %v5655
        %v5720 = vsub.f32 0.0, %v5656
        %v5721 = vsub.f32 0.0, %v5657
        %v5722 = vsub.f32 0.0, %v5658
        %v5723 = vsub.f32 0.0, %v5659
        %v5724 = vsub.f32 0.0, %v5660
        %v5725 = vsub.f32 0.0, %v5661
        %v5726 = vsub.f32 0.0, %v5662
        %v5727 = vsub.f32 0.0, %v5663
        %v5728 = vsub.f32 0.0, %v5664
        %v5729 = vsub.f32 0.0, %v5665
        %v5730 = vmul.f32 %v5666, 1.442695
        %v5731 = vpow.pop %v5730
        %v5732 = vmul.f32 %v5667, 1.442695
        %v5733 = vpow.pop %v5732
        %v5734 = vmul.f32 %v5668, 1.442695
        %v5735 = vpow.pop %v5734
        %v5736 = vmul.f32 %v5669, 1.442695
        %v5737 = vpow.pop %v5736
        %v5738 = vmul.f32 %v5670, 1.442695
        %v5739 = vpow.pop %v5738
        %v5740 = vmul.f32 %v5671, 1.442695
        %v5741 = vpow.pop %v5740
        %v5742 = vmul.f32 %v5672, 1.442695
        %v5743 = vpow.pop %v5742
        %v5744 = vmul.f32 %v5673, 1.442695
        %v5745 = vpow.pop %v5744
        %v5746 = vmul.f32 %v5674, 1.442695
        %v5747 = vpow.pop %v5746
        %v5748 = vmul.f32 %v5675, 1.442695
        %v5749 = vpow.pop %v5748
        %v5750 = vmul.f32 %v5676, 1.442695
        %v5751 = vpow.pop %v5750
        %v5752 = vmul.f32 %v5677, 1.442695
        %v5753 = vpow.pop %v5752
        %v5754 = vmul.f32 %v5678, 1.442695
        %v5755 = vpow.pop %v5754
        %v5756 = vmul.f32 %v5679, 1.442695
        %v5757 = vpow.pop %v5756
        %v5758 = vmul.f32 %v5680, 1.442695
        %v5759 = vpow.pop %v5758
        %v5760 = vmul.f32 %v5681, 1.442695
        %v5761 = vpow.pop %v5760
        %v5762 = vmul.f32 %v5682, 1.442695
        %v5763 = vpow.pop %v5762
        %v5764 = vmul.f32 %v5683, 1.442695
        %v5765 = vpow.pop %v5764
        %v5766 = vmul.f32 %v5684, 1.442695
        %v5767 = vpow.pop %v5766
        %v5768 = vmul.f32 %v5685, 1.442695
        %v5769 = vpow.pop %v5768
        %v5770 = vmul.f32 %v5686, 1.442695
        %v5771 = vpow.pop %v5770
        %v5772 = vmul.f32 %v5687, 1.442695
        %v5773 = vpow.pop %v5772
        %v5774 = vmul.f32 %v5688, 1.442695
        %v5775 = vpow.pop %v5774
        %v5776 = vmul.f32 %v5689, 1.442695
        %v5777 = vpow.pop %v5776
        %v5778 = vmul.f32 %v5690, 1.442695
        %v5779 = vpow.pop %v5778
        %v5780 = vmul.f32 %v5691, 1.442695
        %v5781 = vpow.pop %v5780
        %v5782 = vmul.f32 %v5692, 1.442695
        %v5783 = vpow.pop %v5782
        %v5784 = vmul.f32 %v5693, 1.442695
        %v5785 = vpow.pop %v5784
        %v5786 = vmul.f32 %v5694, 1.442695
        %v5787 = vpow.pop %v5786
        %v5788 = vmul.f32 %v5695, 1.442695
        %v5789 = vpow.pop %v5788
        %v5790 = vmul.f32 %v5696, 1.442695
        %v5791 = vpow.pop %v5790
        %v5792 = vmul.f32 %v5697, 1.442695
        %v5793 = vpow.pop %v5792
        %v5794 = vmul.f32 %v5698, 1.442695
        %v5795 = vpow.pop %v5794
        %v5796 = vmul.f32 %v5699, 1.442695
        %v5797 = vpow.pop %v5796
        %v5798 = vmul.f32 %v5700, 1.442695
        %v5799 = vpow.pop %v5798
        %v5800 = vmul.f32 %v5701, 1.442695
        %v5801 = vpow.pop %v5800
        %v5802 = vmul.f32 %v5702, 1.442695
        %v5803 = vpow.pop %v5802
        %v5804 = vmul.f32 %v5703, 1.442695
        %v5805 = vpow.pop %v5804
        %v5806 = vmul.f32 %v5704, 1.442695
        %v5807 = vpow.pop %v5806
        %v5808 = vmul.f32 %v5705, 1.442695
        %v5809 = vpow.pop %v5808
        %v5810 = vmul.f32 %v5706, 1.442695
        %v5811 = vpow.pop %v5810
        %v5812 = vmul.f32 %v5707, 1.442695
        %v5813 = vpow.pop %v5812
        %v5814 = vmul.f32 %v5708, 1.442695
        %v5815 = vpow.pop %v5814
        %v5816 = vmul.f32 %v5709, 1.442695
        %v5817 = vpow.pop %v5816
        %v5818 = vmul.f32 %v5710, 1.442695
        %v5819 = vpow.pop %v5818
        %v5820 = vmul.f32 %v5711, 1.442695
        %v5821 = vpow.pop %v5820
        %v5822 = vmul.f32 %v5712, 1.442695
        %v5823 = vpow.pop %v5822
        %v5824 = vmul.f32 %v5713, 1.442695
        %v5825 = vpow.pop %v5824
        %v5826 = vmul.f32 %v5714, 1.442695
        %v5827 = vpow.pop %v5826
        %v5828 = vmul.f32 %v5715, 1.442695
        %v5829 = vpow.pop %v5828
        %v5830 = vmul.f32 %v5716, 1.442695
        %v5831 = vpow.pop %v5830
        %v5832 = vmul.f32 %v5717, 1.442695
        %v5833 = vpow.pop %v5832
        %v5834 = vmul.f32 %v5718, 1.442695
        %v5835 = vpow.pop %v5834
        %v5836 = vmul.f32 %v5719, 1.442695
        %v5837 = vpow.pop %v5836
        %v5838 = vmul.f32 %v5720, 1.442695
        %v5839 = vpow.pop %v5838
        %v5840 = vmul.f32 %v5721, 1.442695
        %v5841 = vpow.pop %v5840
        %v5842 = vmul.f32 %v5722, 1.442695
        %v5843 = vpow.pop %v5842
        %v5844 = vmul.f32 %v5723, 1.442695
        %v5845 = vpow.pop %v5844
        %v5846 = vmul.f32 %v5724, 1.442695
        %v5847 = vpow.pop %v5846
        %v5848 = vmul.f32 %v5725, 1.442695
        %v5849 = vpow.pop %v5848
        %v5850 = vmul.f32 %v5726, 1.442695
        %v5851 = vpow.pop %v5850
        %v5852 = vmul.f32 %v5727, 1.442695
        %v5853 = vpow.pop %v5852
        %v5854 = vmul.f32 %v5728, 1.442695
        %v5855 = vpow.pop %v5854
        %v5856 = vmul.f32 %v5729, 1.442695
        %v5857 = vpow.pop %v5856
        %v5858 = vadd.f32 %v5731, 1.0
        %v5859 = vadd.f32 %v5733, 1.0
        %v5860 = vadd.f32 %v5735, 1.0
        %v5861 = vadd.f32 %v5737, 1.0
        %v5862 = vadd.f32 %v5739, 1.0
        %v5863 = vadd.f32 %v5741, 1.0
        %v5864 = vadd.f32 %v5743, 1.0
        %v5865 = vadd.f32 %v5745, 1.0
        %v5866 = vadd.f32 %v5747, 1.0
        %v5867 = vadd.f32 %v5749, 1.0
        %v5868 = vadd.f32 %v5751, 1.0
        %v5869 = vadd.f32 %v5753, 1.0
        %v5870 = vadd.f32 %v5755, 1.0
        %v5871 = vadd.f32 %v5757, 1.0
        %v5872 = vadd.f32 %v5759, 1.0
        %v5873 = vadd.f32 %v5761, 1.0
        %v5874 = vadd.f32 %v5763, 1.0
        %v5875 = vadd.f32 %v5765, 1.0
        %v5876 = vadd.f32 %v5767, 1.0
        %v5877 = vadd.f32 %v5769, 1.0
        %v5878 = vadd.f32 %v5771, 1.0
        %v5879 = vadd.f32 %v5773, 1.0
        %v5880 = vadd.f32 %v5775, 1.0
        %v5881 = vadd.f32 %v5777, 1.0
        %v5882 = vadd.f32 %v5779, 1.0
        %v5883 = vadd.f32 %v5781, 1.0
        %v5884 = vadd.f32 %v5783, 1.0
        %v5885 = vadd.f32 %v5785, 1.0
        %v5886 = vadd.f32 %v5787, 1.0
        %v5887 = vadd.f32 %v5789, 1.0
        %v5888 = vadd.f32 %v5791, 1.0
        %v5889 = vadd.f32 %v5793, 1.0
        %v5890 = vadd.f32 %v5795, 1.0
        %v5891 = vadd.f32 %v5797, 1.0
        %v5892 = vadd.f32 %v5799, 1.0
        %v5893 = vadd.f32 %v5801, 1.0
        %v5894 = vadd.f32 %v5803, 1.0
        %v5895 = vadd.f32 %v5805, 1.0
        %v5896 = vadd.f32 %v5807, 1.0
        %v5897 = vadd.f32 %v5809, 1.0
        %v5898 = vadd.f32 %v5811, 1.0
        %v5899 = vadd.f32 %v5813, 1.0
        %v5900 = vadd.f32 %v5815, 1.0
        %v5901 = vadd.f32 %v5817, 1.0
        %v5902 = vadd.f32 %v5819, 1.0
        %v5903 = vadd.f32 %v5821, 1.0
        %v5904 = vadd.f32 %v5823, 1.0
        %v5905 = vadd.f32 %v5825, 1.0
        %v5906 = vadd.f32 %v5827, 1.0
        %v5907 = vadd.f32 %v5829, 1.0
        %v5908 = vadd.f32 %v5831, 1.0
        %v5909 = vadd.f32 %v5833, 1.0
        %v5910 = vadd.f32 %v5835, 1.0
        %v5911 = vadd.f32 %v5837, 1.0
        %v5912 = vadd.f32 %v5839, 1.0
        %v5913 = vadd.f32 %v5841, 1.0
        %v5914 = vadd.f32 %v5843, 1.0
        %v5915 = vadd.f32 %v5845, 1.0
        %v5916 = vadd.f32 %v5847, 1.0
        %v5917 = vadd.f32 %v5849, 1.0
        %v5918 = vadd.f32 %v5851, 1.0
        %v5919 = vadd.f32 %v5853, 1.0
        %v5920 = vadd.f32 %v5855, 1.0
        %v5921 = vadd.f32 %v5857, 1.0
        %v5922 = vrcp.pop %v5858
        %v5923 = vrcp.pop %v5859
        %v5924 = vrcp.pop %v5860
        %v5925 = vrcp.pop %v5861
        %v5926 = vrcp.pop %v5862
        %v5927 = vrcp.pop %v5863
        %v5928 = vrcp.pop %v5864
        %v5929 = vrcp.pop %v5865
        %v5930 = vrcp.pop %v5866
        %v5931 = vrcp.pop %v5867
        %v5932 = vrcp.pop %v5868
        %v5933 = vrcp.pop %v5869
        %v5934 = vrcp.pop %v5870
        %v5935 = vrcp.pop %v5871
        %v5936 = vrcp.pop %v5872
        %v5937 = vrcp.pop %v5873
        %v5938 = vrcp.pop %v5874
        %v5939 = vrcp.pop %v5875
        %v5940 = vrcp.pop %v5876
        %v5941 = vrcp.pop %v5877
        %v5942 = vrcp.pop %v5878
        %v5943 = vrcp.pop %v5879
        %v5944 = vrcp.pop %v5880
        %v5945 = vrcp.pop %v5881
        %v5946 = vrcp.pop %v5882
        %v5947 = vrcp.pop %v5883
        %v5948 = vrcp.pop %v5884
        %v5949 = vrcp.pop %v5885
        %v5950 = vrcp.pop %v5886
        %v5951 = vrcp.pop %v5887
        %v5952 = vrcp.pop %v5888
        %v5953 = vrcp.pop %v5889
        %v5954 = vrcp.pop %v5890
        %v5955 = vrcp.pop %v5891
        %v5956 = vrcp.pop %v5892
        %v5957 = vrcp.pop %v5893
        %v5958 = vrcp.pop %v5894
        %v5959 = vrcp.pop %v5895
        %v5960 = vrcp.pop %v5896
        %v5961 = vrcp.pop %v5897
        %v5962 = vrcp.pop %v5898
        %v5963 = vrcp.pop %v5899
        %v5964 = vrcp.pop %v5900
        %v5965 = vrcp.pop %v5901
        %v5966 = vrcp.pop %v5902
        %v5967 = vrcp.pop %v5903
        %v5968 = vrcp.pop %v5904
        %v5969 = vrcp.pop %v5905
        %v5970 = vrcp.pop %v5906
        %v5971 = vrcp.pop %v5907
        %v5972 = vrcp.pop %v5908
        %v5973 = vrcp.pop %v5909
        %v5974 = vrcp.pop %v5910
        %v5975 = vrcp.pop %v5911
        %v5976 = vrcp.pop %v5912
        %v5977 = vrcp.pop %v5913
        %v5978 = vrcp.pop %v5914
        %v5979 = vrcp.pop %v5915
        %v5980 = vrcp.pop %v5916
        %v5981 = vrcp.pop %v5917
        %v5982 = vrcp.pop %v5918
        %v5983 = vrcp.pop %v5919
        %v5984 = vrcp.pop %v5920
        %v5985 = vrcp.pop %v5921
        %v5986 = vmul.f32 %v5602, %v5922
        %v5987 = vmul.f32 %v5603, %v5923
        %v5988 = vmul.f32 %v5604, %v5924
        %v5989 = vmul.f32 %v5605, %v5925
        %v5990 = vmul.f32 %v5606, %v5926
        %v5991 = vmul.f32 %v5607, %v5927
        %v5992 = vmul.f32 %v5608, %v5928
        %v5993 = vmul.f32 %v5609, %v5929
        %v5994 = vmul.f32 %v5610, %v5930
        %v5995 = vmul.f32 %v5611, %v5931
        %v5996 = vmul.f32 %v5612, %v5932
        %v5997 = vmul.f32 %v5613, %v5933
        %v5998 = vmul.f32 %v5614, %v5934
        %v5999 = vmul.f32 %v5615, %v5935
        %v6000 = vmul.f32 %v5616, %v5936
        %v6001 = vmul.f32 %v5617, %v5937
        %v6002 = vmul.f32 %v5618, %v5938
        %v6003 = vmul.f32 %v5619, %v5939
        %v6004 = vmul.f32 %v5620, %v5940
        %v6005 = vmul.f32 %v5621, %v5941
        %v6006 = vmul.f32 %v5622, %v5942
        %v6007 = vmul.f32 %v5623, %v5943
        %v6008 = vmul.f32 %v5624, %v5944
        %v6009 = vmul.f32 %v5625, %v5945
        %v6010 = vmul.f32 %v5626, %v5946
        %v6011 = vmul.f32 %v5627, %v5947
        %v6012 = vmul.f32 %v5628, %v5948
        %v6013 = vmul.f32 %v5629, %v5949
        %v6014 = vmul.f32 %v5630, %v5950
        %v6015 = vmul.f32 %v5631, %v5951
        %v6016 = vmul.f32 %v5632, %v5952
        %v6017 = vmul.f32 %v5633, %v5953
        %v6018 = vmul.f32 %v5634, %v5954
        %v6019 = vmul.f32 %v5635, %v5955
        %v6020 = vmul.f32 %v5636, %v5956
        %v6021 = vmul.f32 %v5637, %v5957
        %v6022 = vmul.f32 %v5638, %v5958
        %v6023 = vmul.f32 %v5639, %v5959
        %v6024 = vmul.f32 %v5640, %v5960
        %v6025 = vmul.f32 %v5641, %v5961
        %v6026 = vmul.f32 %v5642, %v5962
        %v6027 = vmul.f32 %v5643, %v5963
        %v6028 = vmul.f32 %v5644, %v5964
        %v6029 = vmul.f32 %v5645, %v5965
        %v6030 = vmul.f32 %v5646, %v5966
        %v6031 = vmul.f32 %v5647, %v5967
        %v6032 = vmul.f32 %v5648, %v5968
        %v6033 = vmul.f32 %v5649, %v5969
        %v6034 = vmul.f32 %v5650, %v5970
        %v6035 = vmul.f32 %v5651, %v5971
        %v6036 = vmul.f32 %v5652, %v5972
        %v6037 = vmul.f32 %v5653, %v5973
        %v6038 = vmul.f32 %v5654, %v5974
        %v6039 = vmul.f32 %v5655, %v5975
        %v6040 = vmul.f32 %v5656, %v5976
        %v6041 = vmul.f32 %v5657, %v5977
        %v6042 = vmul.f32 %v5658, %v5978
        %v6043 = vmul.f32 %v5659, %v5979
        %v6044 = vmul.f32 %v5660, %v5980
        %v6045 = vmul.f32 %v5661, %v5981
        %v6046 = vmul.f32 %v5662, %v5982
        %v6047 = vmul.f32 %v5663, %v5983
        %v6048 = vmul.f32 %v5664, %v5984
        %v6049 = vmul.f32 %v5665, %v5985
        %6050 = vst [vmem:[%s271] sm:$0xff] %v5986
        %6051 = vst [vmem:[%s271 + $0x8] sm:$0xff] %v5987
        %6052 = vst [vmem:[%s271 + $0x10] sm:$0xff] %v5988
        %6053 = vst [vmem:[%s271 + $0x18] sm:$0xff] %v5989
        %6054 = vst [vmem:[%s271 + $0x20] sm:$0xff] %v5990
        %6055 = vst [vmem:[%s271 + $0x28] sm:$0xff] %v5991
        %6056 = vst [vmem:[%s271 + $0x30] sm:$0xff] %v5992
        %6057 = vst [vmem:[%s271 + $0x38] sm:$0xff] %v5993
        %6058 = vst [vmem:[%s271 + $0x40] sm:$0xff] %v5994
        %6059 = vst [vmem:[%s271 + $0x48] sm:$0xff] %v5995
        %6060 = vst [vmem:[%s271 + $0x50] sm:$0xff] %v5996
        %6061 = vst [vmem:[%s271 + $0x58] sm:$0xff] %v5997
        %6062 = vst [vmem:[%s271 + $0x60] sm:$0xff] %v5998
        %6063 = vst [vmem:[%s271 + $0x68] sm:$0xff] %v5999
        %6064 = vst [vmem:[%s271 + $0x70] sm:$0xff] %v6000
        %6065 = vst [vmem:[%s271 + $0x78] sm:$0xff] %v6001
        %6066 = vst [vmem:[%s271 + $0x80] sm:$0xff] %v6002
        %6067 = vst [vmem:[%s271 + $0x88] sm:$0xff] %v6003
        %6068 = vst [vmem:[%s271 + $0x90] sm:$0xff] %v6004
        %6069 = vst [vmem:[%s271 + $0x98] sm:$0xff] %v6005
        %6070 = vst [vmem:[%s271 + $0xa0] sm:$0xff] %v6006
        %6071 = vst [vmem:[%s271 + $0xa8] sm:$0xff] %v6007
        %6072 = vst [vmem:[%s271 + $0xb0] sm:$0xff] %v6008
        %6073 = vst [vmem:[%s271 + $0xb8] sm:$0xff] %v6009
        %6074 = vst [vmem:[%s271 + $0xc0] sm:$0xff] %v6010
        %6075 = vst [vmem:[%s271 + $0xc8] sm:$0xff] %v6011
        %6076 = vst [vmem:[%s271 + $0xd0] sm:$0xff] %v6012
        %6077 = vst [vmem:[%s271 + $0xd8] sm:$0xff] %v6013
        %6078 = vst [vmem:[%s271 + $0xe0] sm:$0xff] %v6014
        %6079 = vst [vmem:[%s271 + $0xe8] sm:$0xff] %v6015
        %6080 = vst [vmem:[%s271 + $0xf0] sm:$0xff] %v6016
        %6081 = vst [vmem:[%s271 + $0xf8] sm:$0xff] %v6017
        %6082 = vst [vmem:[%s271 + $0x100] sm:$0xff] %v6018
        %6083 = vst [vmem:[%s271 + $0x108] sm:$0xff] %v6019
        %6084 = vst [vmem:[%s271 + $0x110] sm:$0xff] %v6020
        %6085 = vst [vmem:[%s271 + $0x118] sm:$0xff] %v6021
        %6086 = vst [vmem:[%s271 + $0x120] sm:$0xff] %v6022
        %6087 = vst [vmem:[%s271 + $0x128] sm:$0xff] %v6023
        %6088 = vst [vmem:[%s271 + $0x130] sm:$0xff] %v6024
        %6089 = vst [vmem:[%s271 + $0x138] sm:$0xff] %v6025
        %6090 = vst [vmem:[%s271 + $0x140] sm:$0xff] %v6026
        %6091 = vst [vmem:[%s271 + $0x148] sm:$0xff] %v6027
        %6092 = vst [vmem:[%s271 + $0x150] sm:$0xff] %v6028
        %6093 = vst [vmem:[%s271 + $0x158] sm:$0xff] %v6029
        %6094 = vst [vmem:[%s271 + $0x160] sm:$0xff] %v6030
        %6095 = vst [vmem:[%s271 + $0x168] sm:$0xff] %v6031
        %6096 = vst [vmem:[%s271 + $0x170] sm:$0xff] %v6032
        %6097 = vst [vmem:[%s271 + $0x178] sm:$0xff] %v6033
        %6098 = vst [vmem:[%s271 + $0x180] sm:$0xff] %v6034
        %6099 = vst [vmem:[%s271 + $0x188] sm:$0xff] %v6035
        %6100 = vst [vmem:[%s271 + $0x190] sm:$0xff] %v6036
        %6101 = vst [vmem:[%s271 + $0x198] sm:$0xff] %v6037
        %6102 = vst [vmem:[%s271 + $0x1a0] sm:$0xff] %v6038
        %6103 = vst [vmem:[%s271 + $0x1a8] sm:$0xff] %v6039
        %6104 = vst [vmem:[%s271 + $0x1b0] sm:$0xff] %v6040
        %6105 = vst [vmem:[%s271 + $0x1b8] sm:$0xff] %v6041
        %6106 = vst [vmem:[%s271 + $0x1c0] sm:$0xff] %v6042
        %6107 = vst [vmem:[%s271 + $0x1c8] sm:$0xff] %v6043
        %6108 = vst [vmem:[%s271 + $0x1d0] sm:$0xff] %v6044
        %6109 = vst [vmem:[%s271 + $0x1d8] sm:$0xff] %v6045
        %6110 = vst [vmem:[%s271 + $0x1e0] sm:$0xff] %v6046
        %6111 = vst [vmem:[%s271 + $0x1e8] sm:$0xff] %v6047
        %6112 = vst [vmem:[%s271 + $0x1f0] sm:$0xff] %v6048
        %6113 = vst [vmem:[%s271 + $0x1f8] sm:$0xff] %v6049
        %s6114 = sand.u32 %s141, 1
        %s6115 = scalar_lea.sflag [#allocation5], %s6114
        %s6116 = sand.u32 %s141, 1
        %s6117 = smul.addr %s6116, 512
        %s6118 = scalar_lea.vmem [#allocation9], %s6117
        // Predicated region
        $region53: #{tpu_custom_call.1} parent=39 // pred_check
          %p6119 = pneg %p151
        $region54: #{tpu_custom_call.1} parent=39 // pred_check_branch
          %6121 = sbr.rel (%p6119) target = $region56
        $region55: #{tpu_custom_call.1} parent=39 // pred_region
          %s6123 = ssub.s32 8192, 8192
          %6124 = vsyncadd %s6115, %s6123
          %s6125 = smul.addr %s23, 64
          %s6126 = smul.addr %s6125, 128
          %s6127 = scalar_lea.hbm %s5, %s6126
          %s6128 = sshll.u32 %s6118, 4
          %s6129 = int_to_ptr.vmem [resolvable:$true] %s6128
          %6134 = dma.vmem_to_hbm [thread:$0]  %s6129, 8192, %s6127, %s6115, 256, 256, 16
        $region56: #{tpu_custom_call.1} parent=39 // pred_fallthru
          _
      $region40: #{tpu_custom_call.1} parent=5 // pred_fallthru
        _
      %p6135 = scmp.le.s32.totalorder 2, %s18
      // Predicated region
      $region57: #{tpu_custom_call.1} parent=5 // pred_check
        %p6136 = pneg %p6135
      $region58: #{tpu_custom_call.1} parent=5 // pred_check_branch
        %6138 = sbr.rel (%p6136) target = $region60
      $region59: #{tpu_custom_call.1} parent=5 // pred_region
        %s6139 = ssub.s32 %s18, 2
        // Predicated region
        $region61: #{tpu_custom_call.1} parent=59 // pred_check
          %p6140 = pneg %p157
        $region62: #{tpu_custom_call.1} parent=59 // pred_check_branch
          %6142 = sbr.rel (%p6140) target = $region64
        $region63: #{tpu_custom_call.1} parent=59 // pred_region
          %s6143 = sand.u32 %s142, 1
          %s6144 = scalar_lea.sflag [#allocation5], %s6143
          %s6145 = sand.u32 %s142, 1
          %s6146 = smul.addr %s6145, 512
          %s6147 = scalar_lea.vmem [#allocation9], %s6146
          %6148 = dma.done %s6144, 8192
        $region64: #{tpu_custom_call.1} parent=59 // pred_fallthru
          _
      $region60: #{tpu_custom_call.1} parent=5 // pred_fallthru
        _
    $region6: #{tpu_custom_call.1} parent=1 // loop_footer
      %s22 = sadd.s32 1, %s18
    $region7: #{tpu_custom_call.1} parent=1 // loop_footer_branch
      %17 = sbr.rel target = $region3
    $region8: #{tpu_custom_call.1} parent=1 // loop_exit
      _
    %6149 = vsyncpa [#allocation4], 1
    %s6150 = scalar_lea.sflag [#allocation4], 1
    %6151 = vsyncpa %s6150, 1
    %6152 = vsyncpa [#allocation7], 1
    %6153 = vsyncpa [#allocation5], 1
    %s6154 = scalar_lea.sflag [#allocation5], 1
    %6155 = vsyncpa %s6154, 1

</llo_original>
